<compile_context>
chip_gen: v6e
topology: v6e:2x2x1
jax: 0.10.0
libtpu: 0.0.40
codegen_flags: <defaults>
</compile_context>

<pallas_src>
import jax
import jax.numpy as jnp
from jax import lax
from jax.experimental import pallas as pl
from jax.experimental.pallas import tpu as pltpu


def _cdist_kernel(x_ref, y_ref, xsq_ref, ysq_ref, o_ref):
    # x_ref: (tm, D) bf16      y_ref: (tn, D) bf16, already scaled by -2
    # xsq_ref: (tm, 1) f32     ysq_ref: (1, tn) f32
    dot = lax.dot_general(
        x_ref[...], y_ref[...], (((1,), (1,)), ((), ())),
        preferred_element_type=jnp.float32)            # (tm, tn) = -2 * x @ y^T
    d2 = xsq_ref[...] + ysq_ref[...] + dot              # broadcast (tm,1)+(1,tn)
    o_ref[...] = jnp.sqrt(jnp.maximum(d2, 0.0)).astype(o_ref.dtype)


def _round_up(n, m):
    return ((n + m - 1) // m) * m


def cdist_pallas(x, y_neg2_bf16, ysq, *, tn=512, vmem_budget_bytes=24 * (1 << 20)):
    """Euclidean distance matrix between x (f32, (M,D)) and the constant y.

    y_neg2_bf16: (-2 * y) pre-cast to bf16, shape (N, D).
    ysq:         ||y_j||^2 as f32, shape (1, N).
    """
    M, D = x.shape
    N, D2 = y_neg2_bf16.shape
    assert D == D2 and ysq.shape == (1, N)

    # Pad row counts: M up to a multiple of 16 (bf16 sublane tile), N up to tn.
    Mp = _round_up(M, 16)
    Np = _round_up(N, tn)
    xp = jnp.pad(x, ((0, Mp - M), (0, 0))) if Mp != M else x
    yp = jnp.pad(y_neg2_bf16, ((0, Np - N), (0, 0))) if Np != N else y_neg2_bf16
    ysqp = jnp.pad(ysq, ((0, 0), (0, Np - N))) if Np != N else ysq

    # Exact f32 squared norms of x (hoisted out of the kernel), bf16 streamed x.
    xf = xp.astype(jnp.float32)
    xsq = jnp.sum(xf * xf, axis=1, keepdims=True)        # (Mp, 1) f32
    xb = xp.astype(jnp.bfloat16)                          # (Mp, D) bf16

    # tm = full Mp when the double-buffered per-step working set fits the VMEM
    # budget (=> y is read from HBM exactly once); otherwise tile M.
    def step_bytes(tm):
        return 2 * (tm * D * 2 + tn * D * 2 + tm * tn * 4 + tm * 4 + tn * 4)

    tm = Mp
    if step_bytes(tm) > vmem_budget_bytes:
        tm = 512
        Mp2 = _round_up(Mp, tm)
        if Mp2 != Mp:
            xb = jnp.pad(xb, ((0, Mp2 - Mp), (0, 0)))
            xsq = jnp.pad(xsq, ((0, Mp2 - Mp), (0, 0)))
            Mp = Mp2

    grid = (Mp // tm, Np // tn)

    out = pl.pallas_call(
        _cdist_kernel,
        out_shape=jax.ShapeDtypeStruct((Mp, Np), jnp.float32),
        grid_spec=pltpu.PrefetchScalarGridSpec(
            num_scalar_prefetch=0,
            grid=grid,
            in_specs=[
                pl.BlockSpec((tm, D), lambda i, j: (i, 0)),   # x tile (constant over j -> no re-DMA)
                pl.BlockSpec((tn, D), lambda i, j: (j, 0)),   # -2*y tile (streamed)
                pl.BlockSpec((tm, 1), lambda i, j: (i, 0)),   # ||x||^2 column
                pl.BlockSpec((1, tn), lambda i, j: (0, j)),   # ||y||^2 row
            ],
            out_specs=pl.BlockSpec((tm, tn), lambda i, j: (i, j)),
        ),
        compiler_params=pltpu.CompilerParams(
            dimension_semantics=("parallel", "parallel")),
    )(xb, yp, xsq, ysqp)

    return out[:M, :N]


class CdistModule:
    """JAX equivalent of the PyTorch Cdist module (buffer y = ones(N, D))."""

    def __init__(self, n=16000, d=384):
        y = jnp.ones((n, d), dtype=jnp.float32)
        # Constant-buffer precomputation (done once at init, not per call):
        #   exact f32 squared norms, and (-2 * y) cast to bf16 for the MXU.
        self.ysq = jnp.sum(y * y, axis=1)[None, :]           # (1, N) f32
        self.y_neg2_bf16 = (-2.0 * y).astype(jnp.bfloat16)   # (N, D) bf16 (exact)

    def __call__(self, x):
        return cdist_pallas(x, self.y_neg2_bf16, self.ysq)


if __name__ == "__main__":
    key = jax.random.PRNGKey(0)
    # Small shapes consistent with the spec (x ~ (M, 384), y buffer ~ (N, 384));
    # N=1024 keeps >=2 parallel j-blocks at tn=512 for the v7x dual-TC case.
    M, N, D = 256, 1024, 384
    x = jax.random.normal(key, (M, D), dtype=jnp.float32)

    model = CdistModule(n=N, d=D)
    out = jax.block_until_ready(model(x))
    assert out.shape == (M, N)

    y = jnp.ones((N, D), dtype=jnp.float32)

    # Reference 1: the same decomposition in pure f32.
    ref = jnp.sqrt(jnp.maximum(
        jnp.sum(x * x, axis=1, keepdims=True)
        + jnp.sum(y * y, axis=1)[None, :]
        - 2.0 * (x @ y.T), 0.0))
    assert jnp.allclose(out, ref, atol=2e-2, rtol=1e-3), \
        float(jnp.max(jnp.abs(out - ref)))

    # Reference 2: direct (x - y) difference on a small slice, guarding against
    # decomposition/cancellation error relative to true torch.cdist semantics.
    xs, ys = x[:32], y[:64]
    ref_direct = jnp.sqrt(jnp.sum((xs[:, None, :] - ys[None, :, :]) ** 2, axis=-1))
    assert jnp.allclose(out[:32, :64], ref_direct, atol=2e-2, rtol=1e-3), \
        float(jnp.max(jnp.abs(out[:32, :64] - ref_direct)))

    print("KERNEL_OK")
</pallas_src>

<mosaic_0001>
module attributes {stable_mosaic.version = 11 : i64} {
  func.func @_cdist_kernel(%arg0: i32, %arg1: i32, %arg2: memref<256x384xbf16, #tpu.memory_space<vmem>>, %arg3: memref<512x384xbf16, #tpu.memory_space<vmem>>, %arg4: memref<256x1xf32, #tpu.memory_space<vmem>>, %arg5: memref<1x512xf32, #tpu.memory_space<vmem>>, %arg6: memref<256x512xf32, #tpu.memory_space<vmem>>) attributes {dimension_semantics = [#tpu.dimension_semantics<parallel>, #tpu.dimension_semantics<parallel>], iteration_bounds = array<i64: 1, 2>, scalar_prefetch = 0 : i64, scratch_operands = 0 : i64, tpu.core_type = #tpu.core_type<tc>, window_params = [{transform_indices = @transform_0, window_bounds = array<i64: 256, 384>}, {transform_indices = @transform_1, window_bounds = array<i64: 512, 384>}, {transform_indices = @transform_2, window_bounds = array<i64: 256, 1>}, {transform_indices = @transform_3, window_bounds = array<i64: 1, 512>}, {transform_indices = @transform_4, window_bounds = array<i64: 256, 512>}]} {
    %c0 = arith.constant 0 : index
    %c0_0 = arith.constant 0 : index
    %0 = vector.load %arg2[%c0, %c0_0] : memref<256x384xbf16, #tpu.memory_space<vmem>>, vector<256x384xbf16>
    %c0_1 = arith.constant 0 : index
    %c0_2 = arith.constant 0 : index
    %1 = vector.load %arg3[%c0_1, %c0_2] : memref<512x384xbf16, #tpu.memory_space<vmem>>, vector<512x384xbf16>
    %cst = arith.constant dense<0.000000e+00> : vector<256x512xf32>
    %2 = tpu.matmul %0, %1, %cst {dimension_numbers = #tpu.dot_dimension_numbers<[1], [1], [0], [0], [0, 0, 1, 0], [], []>} : vector<256x384xbf16>, vector<512x384xbf16>, vector<256x512xf32> -> vector<256x512xf32>
    %c0_3 = arith.constant 0 : index
    %c0_4 = arith.constant 0 : index
    %3 = vector.load %arg4[%c0_3, %c0_4] : memref<256x1xf32, #tpu.memory_space<vmem>>, vector<256x1xf32>
    %c0_5 = arith.constant 0 : index
    %c0_6 = arith.constant 0 : index
    %4 = vector.load %arg5[%c0_5, %c0_6] : memref<1x512xf32, #tpu.memory_space<vmem>>, vector<1x512xf32>
    %5 = vector.broadcast %3 : vector<256x1xf32> to vector<256x512xf32>
    %6 = vector.broadcast %4 : vector<1x512xf32> to vector<256x512xf32>
    %7 = arith.addf %5, %6 : vector<256x512xf32>
    %8 = arith.addf %7, %2 : vector<256x512xf32>
    %cst_7 = arith.constant 0.000000e+00 : f32
    %9 = vector.broadcast %cst_7 : f32 to vector<256x512xf32>
    %10 = arith.maximumf %8, %9 : vector<256x512xf32>
    %11 = math.sqrt %10 : vector<256x512xf32>
    %c0_8 = arith.constant 0 : index
    %c0_9 = arith.constant 0 : index
    %12 = vector.load %arg6[%c0_8, %c0_9] : memref<256x512xf32, #tpu.memory_space<vmem>>, vector<256x512xf32>
    tpu.vector_store %arg6[%c0_8, %c0_9], %11 {strides = array<i32>} : memref<256x512xf32, #tpu.memory_space<vmem>>, vector<256x512xf32>,
    return
  }
  func.func @transform_0(%arg0: i32, %arg1: i32) -> (i32, i32) {
    %c0_i32 = arith.constant 0 : i32
    %c0_i32_0 = arith.constant 0 : i32
    return %arg0, %c0_i32 : i32, i32
  }
  func.func @transform_1(%arg0: i32, %arg1: i32) -> (i32, i32) {
    %c0_i32 = arith.constant 0 : i32
    %c0_i32_0 = arith.constant 0 : i32
    return %arg1, %c0_i32 : i32, i32
  }
  func.func @transform_2(%arg0: i32, %arg1: i32) -> (i32, i32) {
    %c0_i32 = arith.constant 0 : i32
    %c0_i32_0 = arith.constant 0 : i32
    return %arg0, %c0_i32 : i32, i32
  }
  func.func @transform_3(%arg0: i32, %arg1: i32) -> (i32, i32) {
    %c0_i32 = arith.constant 0 : i32
    %c0_i32_0 = arith.constant 0 : i32
    return %c0_i32, %arg1 : i32, i32
  }
  func.func @transform_4(%arg0: i32, %arg1: i32) -> (i32, i32) {
    %c0_i32 = arith.constant 0 : i32
    return %arg0, %arg1 : i32, i32
  }
}

</mosaic_0001>

<llo_original>
// kernel: tpu_custom_call.1
$region0: #{tpu_custom_call.1}
  #allocation0 [shape = 'u32[]', space=smem, size = 0x4, offset = 0x4, fixed_abs, tag = 'smem constant byte address 0x4 - core index']
  #allocation1 [shape = 'u32[144,128]{1,0:T(1,128)}', space=vmem, size = 0x12000, scoped, tag = 'internal scratch']
  %s0 = inlined_call_operand.hbm [shape: bf16[256,384], index: 0, kind: input, shape index: {}]
  %s1 = inlined_call_operand.hbm [shape: bf16[1024,384], index: 1, kind: input, shape index: {}]
  %s2 = inlined_call_operand.vmem [shape: f32[256,1], index: 2, kind: input, shape index: {}]
  %s3 = inlined_call_operand.vmem [shape: f32[1,1024], index: 3, kind: input, shape index: {}]
  %s4 = inlined_call_operand.hbm [shape: f32[256,1024], index: 4, kind: output, shape index: {}]
  %s5 = sld [smem:[#allocation0]]
  $region57: #{tpu_custom_call.1} parent=0
    _
  %s7 = ssub.s32 1, %s5
  %s8 = scalar_select 0, %s7, %s5
  $region1: #{tpu_custom_call.1} parent=0
    #allocation2 [shape = 'u8[196608]{0}', space=vmem, size = 0x30000, scoped, tag = 'input window, operand 0, single buffered']
    #allocation3 [shape = 's32[2]{0}', space=sflag, size = 0x8, scoped, tag = 'scoped memory for tpu_custom_call.1']
    #allocation4 [shape = 's32[2]{0}', space=sflag, size = 0x8, scoped, tag = 'scoped memory for tpu_custom_call.1']
    #allocation5 [shape = 'u8[786432]{0}', space=vmem, size = 0xc0000, scoped, tag = 'input window, operand 1']
    #allocation6 [shape = 's32[2]{0}', space=sflag, size = 0x8, scoped, tag = 'scoped memory for tpu_custom_call.1']
    #allocation7 [shape = 'u8[1048576]{0}', space=vmem, size = 0x100000, scoped, tag = 'output window, operand 0']
    %9 = vsyncpa [#allocation3], 0
    %10 = vsyncpa [#allocation6], 0
    %s11 = scalar_lea.sflag [#allocation6], 1
    %12 = vsyncpa %s11, 0
    %13 = vsyncpa [#allocation4], 0
    %s14 = scalar_lea.sflag [#allocation4], 1
    %15 = vsyncpa %s14, 0
    loop: start=0, step=1, limit=4
    $region2: #{tpu_custom_call.1} parent=1 // loop_pre_header
      _
    $region3: #{tpu_custom_call.1} parent=1 // loop_header
      %s17 = sphi 0, %s21
      %p18 = scmp.ge.s32.totalorder %s17, 4
      %s24 = sphi 0, %s36
      %s25 = sphi 0, %s32
      %s26 = sphi 0, %s24
      %s27 = sphi 0, %s25
      %s28 = sphi 0, %s26
      %s29 = sphi 0, %s27
      %s39 = sphi 0, %s41
      %s42 = sphi 0, %s39
      %s43 = sphi 0, %s42
      %s59 = sphi 0, %s43
      %s65 = sphi 0, %s67
      %s68 = sphi 0, %s65
      %s69 = sphi 0, %s68
      %s85 = sphi 0, %s69
      %s91 = sphi 0, %s93
      %s94 = sphi 0, %s91
      %s95 = sphi 0, %s94
      %s111 = sphi 0, %s95
      %s117 = sphi 0, %s119
      %s120 = sphi 0, %s117
      %s121 = sphi 0, %s120
      %s137 = sphi 0, %s121
      %s145 = sphi 0, %s147
      %s148 = sphi 0, %s145
      %s149 = sphi 0, %s148
      %s165 = sphi 0, %s149
    $region4: #{tpu_custom_call.1} parent=1 // loop_header_branch
      %20 = sbr.rel (%p18) target = $region8
    $region5: #{tpu_custom_call.1} parent=1 // loop_body
      %s22 = ssub.s32 %s17, 1
      %s23 = ssub.s32 %s17, 2
      %s30 = sadd.s32 1, %s25
      %p31 = scmp.ge.s32.totalorder %s30, 2
      %s32 = scalar_select %p31, 0, %s30
      %s33 = sadd.s32 1, %s24
      %s34 = scalar_select %p31, %s33, %s24
      %p35 = scmp.ge.s32.totalorder %s34, 1
      %s36 = scalar_select %p35, 0, %s34
      %s37 = ssub.s32 %s24, %s36
      %p38 = scmp.eq.s32.totalorder %s37, 0
      %s40 = sadd.s32 %s39, 1
      %s41 = scalar_select %p38, %s39, %s40
      %p44 = pneg %p38
      %p45 = scmp.eq.s32.totalorder %s17, 1
      %p46 = por %p44, %p45
      %p47 = scmp.ne.s32.totalorder %s39, %s42
      %p48 = scmp.eq.s32.totalorder %s17, 0
      %p49 = por %p47, %p48
      %p50 = scmp.ne.s32.totalorder %s39, %s42
      %p51 = scmp.eq.s32.totalorder %s22, 1
      %p52 = por %p50, %p51
      %p53 = scmp.ne.s32.totalorder %s42, %s43
      %p54 = scmp.eq.s32.totalorder %s22, 0
      %p55 = por %p53, %p54
      %p56 = scmp.ne.s32.totalorder %s42, %s43
      %p57 = scmp.eq.s32.totalorder %s23, 1
      %p58 = por %p56, %p57
      %p60 = scmp.ne.s32.totalorder %s43, %s59
      %p61 = scmp.eq.s32.totalorder %s23, 0
      %p62 = por %p60, %p61
      %s63 = ssub.s32 %s25, %s32
      %p64 = scmp.eq.s32.totalorder %s63, 0
      %s66 = sadd.s32 %s65, 1
      %s67 = scalar_select %p64, %s65, %s66
      %p70 = pneg %p64
      %p71 = scmp.eq.s32.totalorder %s17, 1
      %p72 = por %p70, %p71
      %p73 = scmp.ne.s32.totalorder %s65, %s68
      %p74 = scmp.eq.s32.totalorder %s17, 0
      %p75 = por %p73, %p74
      %p76 = scmp.ne.s32.totalorder %s65, %s68
      %p77 = scmp.eq.s32.totalorder %s22, 1
      %p78 = por %p76, %p77
      %p79 = scmp.ne.s32.totalorder %s68, %s69
      %p80 = scmp.eq.s32.totalorder %s22, 0
      %p81 = por %p79, %p80
      %p82 = scmp.ne.s32.totalorder %s68, %s69
      %p83 = scmp.eq.s32.totalorder %s23, 1
      %p84 = por %p82, %p83
      %p86 = scmp.ne.s32.totalorder %s69, %s85
      %p87 = scmp.eq.s32.totalorder %s23, 0
      %p88 = por %p86, %p87
      %s89 = ssub.s32 %s24, %s36
      %p90 = scmp.eq.s32.totalorder %s89, 0
      %s92 = sadd.s32 %s91, 1
      %s93 = scalar_select %p90, %s91, %s92
      %p96 = pneg %p90
      %p97 = scmp.eq.s32.totalorder %s17, 1
      %p98 = por %p96, %p97
      %p99 = scmp.ne.s32.totalorder %s91, %s94
      %p100 = scmp.eq.s32.totalorder %s17, 0
      %p101 = por %p99, %p100
      %p102 = scmp.ne.s32.totalorder %s91, %s94
      %p103 = scmp.eq.s32.totalorder %s22, 1
      %p104 = por %p102, %p103
      %p105 = scmp.ne.s32.totalorder %s94, %s95
      %p106 = scmp.eq.s32.totalorder %s22, 0
      %p107 = por %p105, %p106
      %p108 = scmp.ne.s32.totalorder %s94, %s95
      %p109 = scmp.eq.s32.totalorder %s23, 1
      %p110 = por %p108, %p109
      %p112 = scmp.ne.s32.totalorder %s95, %s111
      %p113 = scmp.eq.s32.totalorder %s23, 0
      %p114 = por %p112, %p113
      %s115 = ssub.s32 %s25, %s32
      %p116 = scmp.eq.s32.totalorder %s115, 0
      %s118 = sadd.s32 %s117, 1
      %s119 = scalar_select %p116, %s117, %s118
      %p122 = pneg %p116
      %p123 = scmp.eq.s32.totalorder %s17, 1
      %p124 = por %p122, %p123
      %p125 = scmp.ne.s32.totalorder %s117, %s120
      %p126 = scmp.eq.s32.totalorder %s17, 0
      %p127 = por %p125, %p126
      %p128 = scmp.ne.s32.totalorder %s117, %s120
      %p129 = scmp.eq.s32.totalorder %s22, 1
      %p130 = por %p128, %p129
      %p131 = scmp.ne.s32.totalorder %s120, %s121
      %p132 = scmp.eq.s32.totalorder %s22, 0
      %p133 = por %p131, %p132
      %p134 = scmp.ne.s32.totalorder %s120, %s121
      %p135 = scmp.eq.s32.totalorder %s23, 1
      %p136 = por %p134, %p135
      %p138 = scmp.ne.s32.totalorder %s121, %s137
      %p139 = scmp.eq.s32.totalorder %s23, 0
      %p140 = por %p138, %p139
      %s141 = ssub.s32 %s24, %s36
      %s142 = ssub.s32 %s25, %s32
      %s143 = sor.u32 %s141, %s142
      %p144 = scmp.eq.s32.totalorder %s143, 0
      %s146 = sadd.s32 %s145, 1
      %s147 = scalar_select %p144, %s145, %s146
      %p150 = pneg %p144
      %p151 = scmp.eq.s32.totalorder %s17, 1
      %p152 = por %p150, %p151
      %p153 = scmp.ne.s32.totalorder %s145, %s148
      %p154 = scmp.eq.s32.totalorder %s17, 0
      %p155 = por %p153, %p154
      %p156 = scmp.ne.s32.totalorder %s145, %s148
      %p157 = scmp.eq.s32.totalorder %s22, 1
      %p158 = por %p156, %p157
      %p159 = scmp.ne.s32.totalorder %s148, %s149
      %p160 = scmp.eq.s32.totalorder %s22, 0
      %p161 = por %p159, %p160
      %p162 = scmp.ne.s32.totalorder %s148, %s149
      %p163 = scmp.eq.s32.totalorder %s23, 1
      %p164 = por %p162, %p163
      %p166 = scmp.ne.s32.totalorder %s149, %s165
      %p167 = scmp.eq.s32.totalorder %s23, 0
      %p168 = por %p166, %p167
      %p169 = scmp.le.s32.totalorder 1, %s17
      %p170 = scmp.lt.s32.totalorder %s17, 3
      %p171 = pnand %p169, %p170
      %p172 = pneg %p171
      // Predicated region
      $region9: #{tpu_custom_call.1} parent=5 // pred_check
        _
      $region10: #{tpu_custom_call.1} parent=5 // pred_check_branch
        %174 = sbr.rel (%p171) target = $region12
      $region11: #{tpu_custom_call.1} parent=5 // pred_region
        %s175 = ssub.s32 %s17, 1
        // Predicated region
        $region13: #{tpu_custom_call.1} parent=11 // pred_check
          %p176 = pneg %p55
        $region14: #{tpu_custom_call.1} parent=11 // pred_check_branch
          %178 = sbr.rel (%p176) target = $region16
        $region15: #{tpu_custom_call.1} parent=11 // pred_region
          %s179 = smul.u32 32, %s26
          %s181 = ssub.s32 6144, 6144
          %182 = vsyncadd [#allocation3], %s181
          %s183 = smul.addr %s179, 3
          %s184 = smul.addr %s183, 64
          %s185 = scalar_lea.hbm %s0, %s184
          %s186 = sshll.u32 [#allocation2], 4
          %s187 = int_to_ptr.vmem [resolvable:$true] %s186
          %192 = dma.hbm_to_vmem [thread:$0]  %s185, 6144, %s187, [#allocation3], 192, 192, 12
        $region16: #{tpu_custom_call.1} parent=11 // pred_fallthru
          _
        // Predicated region
        $region17: #{tpu_custom_call.1} parent=11 // pred_check
          %p193 = pneg %p107
        $region18: #{tpu_custom_call.1} parent=11 // pred_check_branch
          %195 = sbr.rel (%p193) target = $region20
        $region19: #{tpu_custom_call.1} parent=11 // pred_region
          %s196 = smul.u32 32, %s26
          %p197 = scmp.lt.s32.totalorder %s196, 31
          %s198 = scalar_select %p197, %s196, 31
          %s199 = smul.addr %s198, 8
          %s200 = scalar_lea.vmem %s2, %s199
          %s201 = smul.u32 32, %s26
        $region20: #{tpu_custom_call.1} parent=11 // pred_fallthru
          _
      $region12: #{tpu_custom_call.1} parent=5 // pred_fallthru
        _
      %p202 = scmp.lt.s32.totalorder %s17, 2
      // Predicated region
      $region21: #{tpu_custom_call.1} parent=5 // pred_check
        %p203 = pneg %p202
      $region22: #{tpu_custom_call.1} parent=5 // pred_check_branch
        %205 = sbr.rel (%p203) target = $region24
      $region23: #{tpu_custom_call.1} parent=5 // pred_region
        // Predicated region
        $region25: #{tpu_custom_call.1} parent=23 // pred_check
          %p206 = pneg %p75
        $region26: #{tpu_custom_call.1} parent=23 // pred_check_branch
          %208 = sbr.rel (%p206) target = $region28
        $region27: #{tpu_custom_call.1} parent=23 // pred_region
          %s209 = sand.u32 %s65, 1
          %s210 = scalar_lea.sflag [#allocation6], %s209
          %s211 = sand.u32 %s65, 1
          %s212 = smul.addr %s211, 768
          %s213 = scalar_lea.vmem [#allocation5], %s212
          %s214 = smul.u32 64, %s25
          %s216 = ssub.s32 12288, 12288
          %217 = vsyncadd %s210, %s216
          %s218 = smul.addr %s214, 3
          %s219 = smul.addr %s218, 64
          %s220 = scalar_lea.hbm %s1, %s219
          %s221 = sshll.u32 %s213, 4
          %s222 = int_to_ptr.vmem [resolvable:$true] %s221
          %227 = dma.hbm_to_vmem [thread:$0]  %s220, 12288, %s222, %s210, 192, 192, 12
        $region28: #{tpu_custom_call.1} parent=23 // pred_fallthru
          _
        // Predicated region
        $region29: #{tpu_custom_call.1} parent=23 // pred_check
          %p228 = pneg %p127
        $region30: #{tpu_custom_call.1} parent=23 // pred_check_branch
          %230 = sbr.rel (%p228) target = $region32
        $region31: #{tpu_custom_call.1} parent=23 // pred_region
          %s231 = smul.u32 4, %s25
          %p232 = scmp.lt.s32.totalorder %s231, 7
          %s233 = scalar_select %p232, %s231, 7
          %s234 = scalar_lea.vmem %s3, %s233
          %s235 = smul.u32 4, %s25
        $region32: #{tpu_custom_call.1} parent=23 // pred_fallthru
          _
      $region24: #{tpu_custom_call.1} parent=5 // pred_fallthru
        _
      %p236 = scmp.le.s32.totalorder 1, %s17
      %p237 = scmp.lt.s32.totalorder %s17, 3
      %p238 = pnand %p236, %p237
      %p239 = pneg %p238
      // Predicated region
      $region33: #{tpu_custom_call.1} parent=5 // pred_check
        _
      $region34: #{tpu_custom_call.1} parent=5 // pred_check_branch
        %241 = sbr.rel (%p238) target = $region36
      $region35: #{tpu_custom_call.1} parent=5 // pred_region
        %s242 = ssub.s32 %s17, 1
        // Predicated region
        $region37: #{tpu_custom_call.1} parent=35 // pred_check
          %p243 = pneg %p55
        $region38: #{tpu_custom_call.1} parent=35 // pred_check_branch
          %245 = sbr.rel (%p243) target = $region40
        $region39: #{tpu_custom_call.1} parent=35 // pred_region
          %246 = dma.done [#allocation3], 6144
        $region40: #{tpu_custom_call.1} parent=35 // pred_fallthru
          _
        %s247 = sand.u32 %s68, 1
        %s248 = scalar_lea.sflag [#allocation6], %s247
        %s249 = sand.u32 %s68, 1
        %s250 = smul.addr %s249, 768
        %s251 = scalar_lea.vmem [#allocation5], %s250
        // Predicated region
        $region41: #{tpu_custom_call.1} parent=35 // pred_check
          %p252 = pneg %p81
        $region42: #{tpu_custom_call.1} parent=35 // pred_check_branch
          %254 = sbr.rel (%p252) target = $region44
        $region43: #{tpu_custom_call.1} parent=35 // pred_region
          %255 = dma.done %s248, 12288
        $region44: #{tpu_custom_call.1} parent=35 // pred_fallthru
          _
        %p256 = pneg %p55
        %p257 = pneg %p52
        %s258 = sand.u32 %s68, 1
        %s259 = scalar_lea.sflag [#allocation6], %s258
        %s260 = sand.u32 %s68, 1
        %s261 = smul.addr %s260, 768
        %s262 = scalar_lea.vmem [#allocation5], %s261
        %p263 = pneg %p81
        %p264 = pneg %p78
        %s265 = smul.u32 32, %s26
        %p266 = scmp.lt.s32.totalorder %s265, 31
        %s267 = scalar_select %p266, %s265, 31
        %s268 = smul.addr %s267, 8
        %s269 = scalar_lea.vmem %s2, %s268
        %p270 = pneg %p107
        %p271 = pneg %p104
        %s272 = smul.u32 4, %s27
        %p273 = scmp.lt.s32.totalorder %s272, 7
        %s274 = scalar_select %p273, %s272, 7
        %s275 = scalar_lea.vmem %s3, %s274
        %p276 = pneg %p133
        %p277 = pneg %p130
        %p278 = pneg %p161
        %p279 = pneg %p158
        %s280 = sand.u32 %s148, 1
        %s281 = scalar_lea.sflag [#allocation4], %s280
        %s282 = sand.u32 %s148, 1
        %s283 = smul.addr %s282, 1024
        %s284 = scalar_lea.vmem [#allocation7], %s283
        %s285 = smul.u32 32, %s26
        %s286 = smul.u32 64, %s27
        %s287 = smul.u32 32, %s26
        %p288 = scmp.lt.s32.totalorder %s287, 31
        %s289 = scalar_select %p288, %s287, 31
        %s290 = smul.addr %s289, 8
        %s291 = scalar_lea.vmem %s2, %s290
        %s292 = smul.u32 32, %s26
        %s293 = smul.u32 4, %s27
        %p294 = scmp.lt.s32.totalorder %s293, 7
        %s295 = scalar_select %p294, %s293, 7
        %s296 = scalar_lea.vmem %s3, %s295
        %s297 = smul.u32 4, %s27
        %s298 = smul.u32 32, %s26
        %s299 = smul.u32 4, %s27
        %v301 = vld [vmem:[#allocation2] sm:$0xff]
        %v302 = vld [vmem:[#allocation2 + $0x8] sm:$0xf]
        %v303 = vld [vmem:[#allocation2 + $0xc] sm:$0xff]
        %v304 = vld [vmem:[#allocation2 + $0x14] sm:$0xf]
        %v305 = vld [vmem:[#allocation2 + $0x18] sm:$0xff]
        %v306 = vld [vmem:[#allocation2 + $0x20] sm:$0xf]
        %v307 = vld [vmem:[#allocation2 + $0x24] sm:$0xff]
        %v308 = vld [vmem:[#allocation2 + $0x2c] sm:$0xf]
        %v309 = vld [vmem:[#allocation2 + $0x30] sm:$0xff]
        %v310 = vld [vmem:[#allocation2 + $0x38] sm:$0xf]
        %v311 = vld [vmem:[#allocation2 + $0x3c] sm:$0xff]
        %v312 = vld [vmem:[#allocation2 + $0x44] sm:$0xf]
        %v313 = vld [vmem:[#allocation2 + $0x48] sm:$0xff]
        %v314 = vld [vmem:[#allocation2 + $0x50] sm:$0xf]
        %v315 = vld [vmem:[#allocation2 + $0x54] sm:$0xff]
        %v316 = vld [vmem:[#allocation2 + $0x5c] sm:$0xf]
        %v317 = vld [vmem:[#allocation2 + $0x60] sm:$0xff]
        %v318 = vld [vmem:[#allocation2 + $0x68] sm:$0xf]
        %v319 = vld [vmem:[#allocation2 + $0x6c] sm:$0xff]
        %v320 = vld [vmem:[#allocation2 + $0x74] sm:$0xf]
        %v321 = vld [vmem:[#allocation2 + $0x78] sm:$0xff]
        %v322 = vld [vmem:[#allocation2 + $0x80] sm:$0xf]
        %v323 = vld [vmem:[#allocation2 + $0x84] sm:$0xff]
        %v324 = vld [vmem:[#allocation2 + $0x8c] sm:$0xf]
        %v325 = vld [vmem:[#allocation2 + $0x90] sm:$0xff]
        %v326 = vld [vmem:[#allocation2 + $0x98] sm:$0xf]
        %v327 = vld [vmem:[#allocation2 + $0x9c] sm:$0xff]
        %v328 = vld [vmem:[#allocation2 + $0xa4] sm:$0xf]
        %v329 = vld [vmem:[#allocation2 + $0xa8] sm:$0xff]
        %v330 = vld [vmem:[#allocation2 + $0xb0] sm:$0xf]
        %v331 = vld [vmem:[#allocation2 + $0xb4] sm:$0xff]
        %v332 = vld [vmem:[#allocation2 + $0xbc] sm:$0xf]
        %v333 = vld [vmem:[#allocation2 + $0xc0] sm:$0xff]
        %v334 = vld [vmem:[#allocation2 + $0xc8] sm:$0xf]
        %v335 = vld [vmem:[#allocation2 + $0xcc] sm:$0xff]
        %v336 = vld [vmem:[#allocation2 + $0xd4] sm:$0xf]
        %v337 = vld [vmem:[#allocation2 + $0xd8] sm:$0xff]
        %v338 = vld [vmem:[#allocation2 + $0xe0] sm:$0xf]
        %v339 = vld [vmem:[#allocation2 + $0xe4] sm:$0xff]
        %v340 = vld [vmem:[#allocation2 + $0xec] sm:$0xf]
        %v341 = vld [vmem:[#allocation2 + $0xf0] sm:$0xff]
        %v342 = vld [vmem:[#allocation2 + $0xf8] sm:$0xf]
        %v343 = vld [vmem:[#allocation2 + $0xfc] sm:$0xff]
        %v344 = vld [vmem:[#allocation2 + $0x104] sm:$0xf]
        %v345 = vld [vmem:[#allocation2 + $0x108] sm:$0xff]
        %v346 = vld [vmem:[#allocation2 + $0x110] sm:$0xf]
        %v347 = vld [vmem:[#allocation2 + $0x114] sm:$0xff]
        %v348 = vld [vmem:[#allocation2 + $0x11c] sm:$0xf]
        %v349 = vld [vmem:[#allocation2 + $0x120] sm:$0xff]
        %v350 = vld [vmem:[#allocation2 + $0x128] sm:$0xf]
        %v351 = vld [vmem:[#allocation2 + $0x12c] sm:$0xff]
        %v352 = vld [vmem:[#allocation2 + $0x134] sm:$0xf]
        %v353 = vld [vmem:[#allocation2 + $0x138] sm:$0xff]
        %v354 = vld [vmem:[#allocation2 + $0x140] sm:$0xf]
        %v355 = vld [vmem:[#allocation2 + $0x144] sm:$0xff]
        %v356 = vld [vmem:[#allocation2 + $0x14c] sm:$0xf]
        %v357 = vld [vmem:[#allocation2 + $0x150] sm:$0xff]
        %v358 = vld [vmem:[#allocation2 + $0x158] sm:$0xf]
        %v359 = vld [vmem:[#allocation2 + $0x15c] sm:$0xff]
        %v360 = vld [vmem:[#allocation2 + $0x164] sm:$0xf]
        %v361 = vld [vmem:[#allocation2 + $0x168] sm:$0xff]
        %v362 = vld [vmem:[#allocation2 + $0x170] sm:$0xf]
        %v363 = vld [vmem:[#allocation2 + $0x174] sm:$0xff]
        %v364 = vld [vmem:[#allocation2 + $0x17c] sm:$0xf]
        %v365 = vld [vmem:[%s251] sm:$0xff]
        %v366 = vld [vmem:[%s251 + $0x8] sm:$0xf]
        %v367 = vld [vmem:[%s251 + $0xc] sm:$0xff]
        %v368 = vld [vmem:[%s251 + $0x14] sm:$0xf]
        %v369 = vld [vmem:[%s251 + $0x18] sm:$0xff]
        %v370 = vld [vmem:[%s251 + $0x20] sm:$0xf]
        %v371 = vld [vmem:[%s251 + $0x24] sm:$0xff]
        %v372 = vld [vmem:[%s251 + $0x2c] sm:$0xf]
        %v373 = vld [vmem:[%s251 + $0x30] sm:$0xff]
        %v374 = vld [vmem:[%s251 + $0x38] sm:$0xf]
        %v375 = vld [vmem:[%s251 + $0x3c] sm:$0xff]
        %v376 = vld [vmem:[%s251 + $0x44] sm:$0xf]
        %v377 = vld [vmem:[%s251 + $0x48] sm:$0xff]
        %v378 = vld [vmem:[%s251 + $0x50] sm:$0xf]
        %v379 = vld [vmem:[%s251 + $0x54] sm:$0xff]
        %v380 = vld [vmem:[%s251 + $0x5c] sm:$0xf]
        %v381 = vld [vmem:[%s251 + $0x60] sm:$0xff]
        %v382 = vld [vmem:[%s251 + $0x68] sm:$0xf]
        %v383 = vld [vmem:[%s251 + $0x6c] sm:$0xff]
        %v384 = vld [vmem:[%s251 + $0x74] sm:$0xf]
        %v385 = vld [vmem:[%s251 + $0x78] sm:$0xff]
        %v386 = vld [vmem:[%s251 + $0x80] sm:$0xf]
        %v387 = vld [vmem:[%s251 + $0x84] sm:$0xff]
        %v388 = vld [vmem:[%s251 + $0x8c] sm:$0xf]
        %v389 = vld [vmem:[%s251 + $0x90] sm:$0xff]
        %v390 = vld [vmem:[%s251 + $0x98] sm:$0xf]
        %v391 = vld [vmem:[%s251 + $0x9c] sm:$0xff]
        %v392 = vld [vmem:[%s251 + $0xa4] sm:$0xf]
        %v393 = vld [vmem:[%s251 + $0xa8] sm:$0xff]
        %v394 = vld [vmem:[%s251 + $0xb0] sm:$0xf]
        %v395 = vld [vmem:[%s251 + $0xb4] sm:$0xff]
        %v396 = vld [vmem:[%s251 + $0xbc] sm:$0xf]
        %v397 = vld [vmem:[%s251 + $0xc0] sm:$0xff]
        %v398 = vld [vmem:[%s251 + $0xc8] sm:$0xf]
        %v399 = vld [vmem:[%s251 + $0xcc] sm:$0xff]
        %v400 = vld [vmem:[%s251 + $0xd4] sm:$0xf]
        %v401 = vld [vmem:[%s251 + $0xd8] sm:$0xff]
        %v402 = vld [vmem:[%s251 + $0xe0] sm:$0xf]
        %v403 = vld [vmem:[%s251 + $0xe4] sm:$0xff]
        %v404 = vld [vmem:[%s251 + $0xec] sm:$0xf]
        %v405 = vld [vmem:[%s251 + $0xf0] sm:$0xff]
        %v406 = vld [vmem:[%s251 + $0xf8] sm:$0xf]
        %v407 = vld [vmem:[%s251 + $0xfc] sm:$0xff]
        %v408 = vld [vmem:[%s251 + $0x104] sm:$0xf]
        %v409 = vld [vmem:[%s251 + $0x108] sm:$0xff]
        %v410 = vld [vmem:[%s251 + $0x110] sm:$0xf]
        %v411 = vld [vmem:[%s251 + $0x114] sm:$0xff]
        %v412 = vld [vmem:[%s251 + $0x11c] sm:$0xf]
        %v413 = vld [vmem:[%s251 + $0x120] sm:$0xff]
        %v414 = vld [vmem:[%s251 + $0x128] sm:$0xf]
        %v415 = vld [vmem:[%s251 + $0x12c] sm:$0xff]
        %v416 = vld [vmem:[%s251 + $0x134] sm:$0xf]
        %v417 = vld [vmem:[%s251 + $0x138] sm:$0xff]
        %v418 = vld [vmem:[%s251 + $0x140] sm:$0xf]
        %v419 = vld [vmem:[%s251 + $0x144] sm:$0xff]
        %v420 = vld [vmem:[%s251 + $0x14c] sm:$0xf]
        %v421 = vld [vmem:[%s251 + $0x150] sm:$0xff]
        %v422 = vld [vmem:[%s251 + $0x158] sm:$0xf]
        %v423 = vld [vmem:[%s251 + $0x15c] sm:$0xff]
        %v424 = vld [vmem:[%s251 + $0x164] sm:$0xf]
        %v425 = vld [vmem:[%s251 + $0x168] sm:$0xff]
        %v426 = vld [vmem:[%s251 + $0x170] sm:$0xf]
        %v427 = vld [vmem:[%s251 + $0x174] sm:$0xff]
        %v428 = vld [vmem:[%s251 + $0x17c] sm:$0xf]
        %v429 = vld [vmem:[%s251 + $0x180] sm:$0xff]
        %v430 = vld [vmem:[%s251 + $0x188] sm:$0xf]
        %v431 = vld [vmem:[%s251 + $0x18c] sm:$0xff]
        %v432 = vld [vmem:[%s251 + $0x194] sm:$0xf]
        %v433 = vld [vmem:[%s251 + $0x198] sm:$0xff]
        %v434 = vld [vmem:[%s251 + $0x1a0] sm:$0xf]
        %v435 = vld [vmem:[%s251 + $0x1a4] sm:$0xff]
        %v436 = vld [vmem:[%s251 + $0x1ac] sm:$0xf]
        %v437 = vld [vmem:[%s251 + $0x1b0] sm:$0xff]
        %v438 = vld [vmem:[%s251 + $0x1b8] sm:$0xf]
        %v439 = vld [vmem:[%s251 + $0x1bc] sm:$0xff]
        %v440 = vld [vmem:[%s251 + $0x1c4] sm:$0xf]
        %v441 = vld [vmem:[%s251 + $0x1c8] sm:$0xff]
        %v442 = vld [vmem:[%s251 + $0x1d0] sm:$0xf]
        %v443 = vld [vmem:[%s251 + $0x1d4] sm:$0xff]
        %v444 = vld [vmem:[%s251 + $0x1dc] sm:$0xf]
        %v445 = vld [vmem:[%s251 + $0x1e0] sm:$0xff]
        %v446 = vld [vmem:[%s251 + $0x1e8] sm:$0xf]
        %v447 = vld [vmem:[%s251 + $0x1ec] sm:$0xff]
        %v448 = vld [vmem:[%s251 + $0x1f4] sm:$0xf]
        %v449 = vld [vmem:[%s251 + $0x1f8] sm:$0xff]
        %v450 = vld [vmem:[%s251 + $0x200] sm:$0xf]
        %v451 = vld [vmem:[%s251 + $0x204] sm:$0xff]
        %v452 = vld [vmem:[%s251 + $0x20c] sm:$0xf]
        %v453 = vld [vmem:[%s251 + $0x210] sm:$0xff]
        %v454 = vld [vmem:[%s251 + $0x218] sm:$0xf]
        %v455 = vld [vmem:[%s251 + $0x21c] sm:$0xff]
        %v456 = vld [vmem:[%s251 + $0x224] sm:$0xf]
        %v457 = vld [vmem:[%s251 + $0x228] sm:$0xff]
        %v458 = vld [vmem:[%s251 + $0x230] sm:$0xf]
        %v459 = vld [vmem:[%s251 + $0x234] sm:$0xff]
        %v460 = vld [vmem:[%s251 + $0x23c] sm:$0xf]
        %v461 = vld [vmem:[%s251 + $0x240] sm:$0xff]
        %v462 = vld [vmem:[%s251 + $0x248] sm:$0xf]
        %v463 = vld [vmem:[%s251 + $0x24c] sm:$0xff]
        %v464 = vld [vmem:[%s251 + $0x254] sm:$0xf]
        %v465 = vld [vmem:[%s251 + $0x258] sm:$0xff]
        %v466 = vld [vmem:[%s251 + $0x260] sm:$0xf]
        %v467 = vld [vmem:[%s251 + $0x264] sm:$0xff]
        %v468 = vld [vmem:[%s251 + $0x26c] sm:$0xf]
        %v469 = vld [vmem:[%s251 + $0x270] sm:$0xff]
        %v470 = vld [vmem:[%s251 + $0x278] sm:$0xf]
        %v471 = vld [vmem:[%s251 + $0x27c] sm:$0xff]
        %v472 = vld [vmem:[%s251 + $0x284] sm:$0xf]
        %v473 = vld [vmem:[%s251 + $0x288] sm:$0xff]
        %v474 = vld [vmem:[%s251 + $0x290] sm:$0xf]
        %v475 = vld [vmem:[%s251 + $0x294] sm:$0xff]
        %v476 = vld [vmem:[%s251 + $0x29c] sm:$0xf]
        %v477 = vld [vmem:[%s251 + $0x2a0] sm:$0xff]
        %v478 = vld [vmem:[%s251 + $0x2a8] sm:$0xf]
        %v479 = vld [vmem:[%s251 + $0x2ac] sm:$0xff]
        %v480 = vld [vmem:[%s251 + $0x2b4] sm:$0xf]
        %v481 = vld [vmem:[%s251 + $0x2b8] sm:$0xff]
        %v482 = vld [vmem:[%s251 + $0x2c0] sm:$0xf]
        %v483 = vld [vmem:[%s251 + $0x2c4] sm:$0xff]
        %v484 = vld [vmem:[%s251 + $0x2cc] sm:$0xf]
        %v485 = vld [vmem:[%s251 + $0x2d0] sm:$0xff]
        %v486 = vld [vmem:[%s251 + $0x2d8] sm:$0xf]
        %v487 = vld [vmem:[%s251 + $0x2dc] sm:$0xff]
        %v488 = vld [vmem:[%s251 + $0x2e4] sm:$0xf]
        %v489 = vld [vmem:[%s251 + $0x2e8] sm:$0xff]
        %v490 = vld [vmem:[%s251 + $0x2f0] sm:$0xf]
        %v491 = vld [vmem:[%s251 + $0x2f4] sm:$0xff]
        %v492 = vld [vmem:[%s251 + $0x2fc] sm:$0xf]
        %v557 = vunpack.c.l.b16 %v301
        %v558 = vunpack.c.h.b16 %v301
        %v559 = vunpack.c.l.b16 %v302
        %v560 = vunpack.c.l.b16 %v303
        %v561 = vunpack.c.h.b16 %v303
        %v562 = vunpack.c.l.b16 %v304
        %v563 = vunpack.c.l.b16 %v305
        %v564 = vunpack.c.h.b16 %v305
        %v565 = vunpack.c.l.b16 %v306
        %v566 = vunpack.c.l.b16 %v307
        %v567 = vunpack.c.h.b16 %v307
        %v568 = vunpack.c.l.b16 %v308
        %v569 = vunpack.c.l.b16 %v309
        %v570 = vunpack.c.h.b16 %v309
        %v571 = vunpack.c.l.b16 %v310
        %v572 = vunpack.c.l.b16 %v311
        %v573 = vunpack.c.h.b16 %v311
        %v574 = vunpack.c.l.b16 %v312
        %v575 = vunpack.c.l.b16 %v313
        %v576 = vunpack.c.h.b16 %v313
        %v577 = vunpack.c.l.b16 %v314
        %v578 = vunpack.c.l.b16 %v315
        %v579 = vunpack.c.h.b16 %v315
        %v580 = vunpack.c.l.b16 %v316
        %v581 = vunpack.c.l.b16 %v317
        %v582 = vunpack.c.h.b16 %v317
        %v583 = vunpack.c.l.b16 %v318
        %v584 = vunpack.c.l.b16 %v319
        %v585 = vunpack.c.h.b16 %v319
        %v586 = vunpack.c.l.b16 %v320
        %v587 = vunpack.c.l.b16 %v321
        %v588 = vunpack.c.h.b16 %v321
        %v589 = vunpack.c.l.b16 %v322
        %v590 = vunpack.c.l.b16 %v323
        %v591 = vunpack.c.h.b16 %v323
        %v592 = vunpack.c.l.b16 %v324
        %v593 = vunpack.c.l.b16 %v325
        %v594 = vunpack.c.h.b16 %v325
        %v595 = vunpack.c.l.b16 %v326
        %v596 = vunpack.c.l.b16 %v327
        %v597 = vunpack.c.h.b16 %v327
        %v598 = vunpack.c.l.b16 %v328
        %v599 = vunpack.c.l.b16 %v329
        %v600 = vunpack.c.h.b16 %v329
        %v601 = vunpack.c.l.b16 %v330
        %v602 = vunpack.c.l.b16 %v331
        %v603 = vunpack.c.h.b16 %v331
        %v604 = vunpack.c.l.b16 %v332
        %v605 = vunpack.c.l.b16 %v333
        %v606 = vunpack.c.h.b16 %v333
        %v607 = vunpack.c.l.b16 %v334
        %v608 = vunpack.c.l.b16 %v335
        %v609 = vunpack.c.h.b16 %v335
        %v610 = vunpack.c.l.b16 %v336
        %v611 = vunpack.c.l.b16 %v337
        %v612 = vunpack.c.h.b16 %v337
        %v613 = vunpack.c.l.b16 %v338
        %v614 = vunpack.c.l.b16 %v339
        %v615 = vunpack.c.h.b16 %v339
        %v616 = vunpack.c.l.b16 %v340
        %v617 = vunpack.c.l.b16 %v341
        %v618 = vunpack.c.h.b16 %v341
        %v619 = vunpack.c.l.b16 %v342
        %v620 = vunpack.c.l.b16 %v343
        %v621 = vunpack.c.h.b16 %v343
        %v622 = vunpack.c.l.b16 %v344
        %v623 = vunpack.c.l.b16 %v345
        %v624 = vunpack.c.h.b16 %v345
        %v625 = vunpack.c.l.b16 %v346
        %v626 = vunpack.c.l.b16 %v347
        %v627 = vunpack.c.h.b16 %v347
        %v628 = vunpack.c.l.b16 %v348
        %v629 = vunpack.c.l.b16 %v349
        %v630 = vunpack.c.h.b16 %v349
        %v631 = vunpack.c.l.b16 %v350
        %v632 = vunpack.c.l.b16 %v351
        %v633 = vunpack.c.h.b16 %v351
        %v634 = vunpack.c.l.b16 %v352
        %v635 = vunpack.c.l.b16 %v353
        %v636 = vunpack.c.h.b16 %v353
        %v637 = vunpack.c.l.b16 %v354
        %v638 = vunpack.c.l.b16 %v355
        %v639 = vunpack.c.h.b16 %v355
        %v640 = vunpack.c.l.b16 %v356
        %v641 = vunpack.c.l.b16 %v357
        %v642 = vunpack.c.h.b16 %v357
        %v643 = vunpack.c.l.b16 %v358
        %v644 = vunpack.c.l.b16 %v359
        %v645 = vunpack.c.h.b16 %v359
        %v646 = vunpack.c.l.b16 %v360
        %v647 = vunpack.c.l.b16 %v361
        %v648 = vunpack.c.h.b16 %v361
        %v649 = vunpack.c.l.b16 %v362
        %v650 = vunpack.c.l.b16 %v363
        %v651 = vunpack.c.h.b16 %v363
        %v652 = vunpack.c.l.b16 %v364
        %v653 = vpack.c.b16 %v560, %v557
        %v654 = vpack.c.b16 %v561, %v558
        %v655 = vpack.c.b16 %v562, %v559
        %v656 = vpack.c.b16 %v566, %v563
        %v657 = vpack.c.b16 %v567, %v564
        %v658 = vpack.c.b16 %v568, %v565
        %v659 = vpack.c.b16 %v572, %v569
        %v660 = vpack.c.b16 %v573, %v570
        %v661 = vpack.c.b16 %v574, %v571
        %v662 = vpack.c.b16 %v578, %v575
        %v663 = vpack.c.b16 %v579, %v576
        %v664 = vpack.c.b16 %v580, %v577
        %v665 = vpack.c.b16 %v584, %v581
        %v666 = vpack.c.b16 %v585, %v582
        %v667 = vpack.c.b16 %v586, %v583
        %v668 = vpack.c.b16 %v590, %v587
        %v669 = vpack.c.b16 %v591, %v588
        %v670 = vpack.c.b16 %v592, %v589
        %v671 = vpack.c.b16 %v596, %v593
        %v672 = vpack.c.b16 %v597, %v594
        %v673 = vpack.c.b16 %v598, %v595
        %v674 = vpack.c.b16 %v602, %v599
        %v675 = vpack.c.b16 %v603, %v600
        %v676 = vpack.c.b16 %v604, %v601
        %v677 = vpack.c.b16 %v608, %v605
        %v678 = vpack.c.b16 %v609, %v606
        %v679 = vpack.c.b16 %v610, %v607
        %v680 = vpack.c.b16 %v614, %v611
        %v681 = vpack.c.b16 %v615, %v612
        %v682 = vpack.c.b16 %v616, %v613
        %v683 = vpack.c.b16 %v620, %v617
        %v684 = vpack.c.b16 %v621, %v618
        %v685 = vpack.c.b16 %v622, %v619
        %v686 = vpack.c.b16 %v626, %v623
        %v687 = vpack.c.b16 %v627, %v624
        %v688 = vpack.c.b16 %v628, %v625
        %v689 = vpack.c.b16 %v632, %v629
        %v690 = vpack.c.b16 %v633, %v630
        %v691 = vpack.c.b16 %v634, %v631
        %v692 = vpack.c.b16 %v638, %v635
        %v693 = vpack.c.b16 %v639, %v636
        %v694 = vpack.c.b16 %v640, %v637
        %v695 = vpack.c.b16 %v644, %v641
        %v696 = vpack.c.b16 %v645, %v642
        %v697 = vpack.c.b16 %v646, %v643
        %v698 = vpack.c.b16 %v650, %v647
        %v699 = vpack.c.b16 %v651, %v648
        %v700 = vpack.c.b16 %v652, %v649
        %v877 = vunpack.c.l.b16 %v365
        %v878 = vunpack.c.h.b16 %v365
        %v879 = vunpack.c.l.b16 %v366
        %v880 = vunpack.c.l.b16 %v367
        %v881 = vunpack.c.h.b16 %v367
        %v882 = vunpack.c.l.b16 %v368
        %v883 = vunpack.c.l.b16 %v369
        %v884 = vunpack.c.h.b16 %v369
        %v885 = vunpack.c.l.b16 %v370
        %v886 = vunpack.c.l.b16 %v371
        %v887 = vunpack.c.h.b16 %v371
        %v888 = vunpack.c.l.b16 %v372
        %v889 = vunpack.c.l.b16 %v373
        %v890 = vunpack.c.h.b16 %v373
        %v891 = vunpack.c.l.b16 %v374
        %v892 = vunpack.c.l.b16 %v375
        %v893 = vunpack.c.h.b16 %v375
        %v894 = vunpack.c.l.b16 %v376
        %v895 = vunpack.c.l.b16 %v377
        %v896 = vunpack.c.h.b16 %v377
        %v897 = vunpack.c.l.b16 %v378
        %v898 = vunpack.c.l.b16 %v379
        %v899 = vunpack.c.h.b16 %v379
        %v900 = vunpack.c.l.b16 %v380
        %v901 = vunpack.c.l.b16 %v381
        %v902 = vunpack.c.h.b16 %v381
        %v903 = vunpack.c.l.b16 %v382
        %v904 = vunpack.c.l.b16 %v383
        %v905 = vunpack.c.h.b16 %v383
        %v906 = vunpack.c.l.b16 %v384
        %v907 = vunpack.c.l.b16 %v385
        %v908 = vunpack.c.h.b16 %v385
        %v909 = vunpack.c.l.b16 %v386
        %v910 = vunpack.c.l.b16 %v387
        %v911 = vunpack.c.h.b16 %v387
        %v912 = vunpack.c.l.b16 %v388
        %v913 = vunpack.c.l.b16 %v389
        %v914 = vunpack.c.h.b16 %v389
        %v915 = vunpack.c.l.b16 %v390
        %v916 = vunpack.c.l.b16 %v391
        %v917 = vunpack.c.h.b16 %v391
        %v918 = vunpack.c.l.b16 %v392
        %v919 = vunpack.c.l.b16 %v393
        %v920 = vunpack.c.h.b16 %v393
        %v921 = vunpack.c.l.b16 %v394
        %v922 = vunpack.c.l.b16 %v395
        %v923 = vunpack.c.h.b16 %v395
        %v924 = vunpack.c.l.b16 %v396
        %v925 = vunpack.c.l.b16 %v397
        %v926 = vunpack.c.h.b16 %v397
        %v927 = vunpack.c.l.b16 %v398
        %v928 = vunpack.c.l.b16 %v399
        %v929 = vunpack.c.h.b16 %v399
        %v930 = vunpack.c.l.b16 %v400
        %v931 = vunpack.c.l.b16 %v401
        %v932 = vunpack.c.h.b16 %v401
        %v933 = vunpack.c.l.b16 %v402
        %v934 = vunpack.c.l.b16 %v403
        %v935 = vunpack.c.h.b16 %v403
        %v936 = vunpack.c.l.b16 %v404
        %v937 = vunpack.c.l.b16 %v405
        %v938 = vunpack.c.h.b16 %v405
        %v939 = vunpack.c.l.b16 %v406
        %v940 = vunpack.c.l.b16 %v407
        %v941 = vunpack.c.h.b16 %v407
        %v942 = vunpack.c.l.b16 %v408
        %v943 = vunpack.c.l.b16 %v409
        %v944 = vunpack.c.h.b16 %v409
        %v945 = vunpack.c.l.b16 %v410
        %v946 = vunpack.c.l.b16 %v411
        %v947 = vunpack.c.h.b16 %v411
        %v948 = vunpack.c.l.b16 %v412
        %v949 = vunpack.c.l.b16 %v413
        %v950 = vunpack.c.h.b16 %v413
        %v951 = vunpack.c.l.b16 %v414
        %v952 = vunpack.c.l.b16 %v415
        %v953 = vunpack.c.h.b16 %v415
        %v954 = vunpack.c.l.b16 %v416
        %v955 = vunpack.c.l.b16 %v417
        %v956 = vunpack.c.h.b16 %v417
        %v957 = vunpack.c.l.b16 %v418
        %v958 = vunpack.c.l.b16 %v419
        %v959 = vunpack.c.h.b16 %v419
        %v960 = vunpack.c.l.b16 %v420
        %v961 = vunpack.c.l.b16 %v421
        %v962 = vunpack.c.h.b16 %v421
        %v963 = vunpack.c.l.b16 %v422
        %v964 = vunpack.c.l.b16 %v423
        %v965 = vunpack.c.h.b16 %v423
        %v966 = vunpack.c.l.b16 %v424
        %v967 = vunpack.c.l.b16 %v425
        %v968 = vunpack.c.h.b16 %v425
        %v969 = vunpack.c.l.b16 %v426
        %v970 = vunpack.c.l.b16 %v427
        %v971 = vunpack.c.h.b16 %v427
        %v972 = vunpack.c.l.b16 %v428
        %v973 = vunpack.c.l.b16 %v429
        %v974 = vunpack.c.h.b16 %v429
        %v975 = vunpack.c.l.b16 %v430
        %v976 = vunpack.c.l.b16 %v431
        %v977 = vunpack.c.h.b16 %v431
        %v978 = vunpack.c.l.b16 %v432
        %v979 = vunpack.c.l.b16 %v433
        %v980 = vunpack.c.h.b16 %v433
        %v981 = vunpack.c.l.b16 %v434
        %v982 = vunpack.c.l.b16 %v435
        %v983 = vunpack.c.h.b16 %v435
        %v984 = vunpack.c.l.b16 %v436
        %v985 = vunpack.c.l.b16 %v437
        %v986 = vunpack.c.h.b16 %v437
        %v987 = vunpack.c.l.b16 %v438
        %v988 = vunpack.c.l.b16 %v439
        %v989 = vunpack.c.h.b16 %v439
        %v990 = vunpack.c.l.b16 %v440
        %v991 = vunpack.c.l.b16 %v441
        %v992 = vunpack.c.h.b16 %v441
        %v993 = vunpack.c.l.b16 %v442
        %v994 = vunpack.c.l.b16 %v443
        %v995 = vunpack.c.h.b16 %v443
        %v996 = vunpack.c.l.b16 %v444
        %v997 = vunpack.c.l.b16 %v445
        %v998 = vunpack.c.h.b16 %v445
        %v999 = vunpack.c.l.b16 %v446
        %v1000 = vunpack.c.l.b16 %v447
        %v1001 = vunpack.c.h.b16 %v447
        %v1002 = vunpack.c.l.b16 %v448
        %v1003 = vunpack.c.l.b16 %v449
        %v1004 = vunpack.c.h.b16 %v449
        %v1005 = vunpack.c.l.b16 %v450
        %v1006 = vunpack.c.l.b16 %v451
        %v1007 = vunpack.c.h.b16 %v451
        %v1008 = vunpack.c.l.b16 %v452
        %v1009 = vunpack.c.l.b16 %v453
        %v1010 = vunpack.c.h.b16 %v453
        %v1011 = vunpack.c.l.b16 %v454
        %v1012 = vunpack.c.l.b16 %v455
        %v1013 = vunpack.c.h.b16 %v455
        %v1014 = vunpack.c.l.b16 %v456
        %v1015 = vunpack.c.l.b16 %v457
        %v1016 = vunpack.c.h.b16 %v457
        %v1017 = vunpack.c.l.b16 %v458
        %v1018 = vunpack.c.l.b16 %v459
        %v1019 = vunpack.c.h.b16 %v459
        %v1020 = vunpack.c.l.b16 %v460
        %v1021 = vunpack.c.l.b16 %v461
        %v1022 = vunpack.c.h.b16 %v461
        %v1023 = vunpack.c.l.b16 %v462
        %v1024 = vunpack.c.l.b16 %v463
        %v1025 = vunpack.c.h.b16 %v463
        %v1026 = vunpack.c.l.b16 %v464
        %v1027 = vunpack.c.l.b16 %v465
        %v1028 = vunpack.c.h.b16 %v465
        %v1029 = vunpack.c.l.b16 %v466
        %v1030 = vunpack.c.l.b16 %v467
        %v1031 = vunpack.c.h.b16 %v467
        %v1032 = vunpack.c.l.b16 %v468
        %v1033 = vunpack.c.l.b16 %v469
        %v1034 = vunpack.c.h.b16 %v469
        %v1035 = vunpack.c.l.b16 %v470
        %v1036 = vunpack.c.l.b16 %v471
        %v1037 = vunpack.c.h.b16 %v471
        %v1038 = vunpack.c.l.b16 %v472
        %v1039 = vunpack.c.l.b16 %v473
        %v1040 = vunpack.c.h.b16 %v473
        %v1041 = vunpack.c.l.b16 %v474
        %v1042 = vunpack.c.l.b16 %v475
        %v1043 = vunpack.c.h.b16 %v475
        %v1044 = vunpack.c.l.b16 %v476
        %v1045 = vunpack.c.l.b16 %v477
        %v1046 = vunpack.c.h.b16 %v477
        %v1047 = vunpack.c.l.b16 %v478
        %v1048 = vunpack.c.l.b16 %v479
        %v1049 = vunpack.c.h.b16 %v479
        %v1050 = vunpack.c.l.b16 %v480
        %v1051 = vunpack.c.l.b16 %v481
        %v1052 = vunpack.c.h.b16 %v481
        %v1053 = vunpack.c.l.b16 %v482
        %v1054 = vunpack.c.l.b16 %v483
        %v1055 = vunpack.c.h.b16 %v483
        %v1056 = vunpack.c.l.b16 %v484
        %v1057 = vunpack.c.l.b16 %v485
        %v1058 = vunpack.c.h.b16 %v485
        %v1059 = vunpack.c.l.b16 %v486
        %v1060 = vunpack.c.l.b16 %v487
        %v1061 = vunpack.c.h.b16 %v487
        %v1062 = vunpack.c.l.b16 %v488
        %v1063 = vunpack.c.l.b16 %v489
        %v1064 = vunpack.c.h.b16 %v489
        %v1065 = vunpack.c.l.b16 %v490
        %v1066 = vunpack.c.l.b16 %v491
        %v1067 = vunpack.c.h.b16 %v491
        %v1068 = vunpack.c.l.b16 %v492
        %v1069 = vpack.c.b16 %v880, %v877
        %v1070 = vpack.c.b16 %v881, %v878
        %v1071 = vpack.c.b16 %v882, %v879
        %v1072 = vpack.c.b16 %v886, %v883
        %v1073 = vpack.c.b16 %v887, %v884
        %v1074 = vpack.c.b16 %v888, %v885
        %v1075 = vpack.c.b16 %v892, %v889
        %v1076 = vpack.c.b16 %v893, %v890
        %v1077 = vpack.c.b16 %v894, %v891
        %v1078 = vpack.c.b16 %v898, %v895
        %v1079 = vpack.c.b16 %v899, %v896
        %v1080 = vpack.c.b16 %v900, %v897
        %v1081 = vpack.c.b16 %v904, %v901
        %v1082 = vpack.c.b16 %v905, %v902
        %v1083 = vpack.c.b16 %v906, %v903
        %v1084 = vpack.c.b16 %v910, %v907
        %v1085 = vpack.c.b16 %v911, %v908
        %v1086 = vpack.c.b16 %v912, %v909
        %v1087 = vpack.c.b16 %v916, %v913
        %v1088 = vpack.c.b16 %v917, %v914
        %v1089 = vpack.c.b16 %v918, %v915
        %v1090 = vpack.c.b16 %v922, %v919
        %v1091 = vpack.c.b16 %v923, %v920
        %v1092 = vpack.c.b16 %v924, %v921
        %v1093 = vpack.c.b16 %v928, %v925
        %v1094 = vpack.c.b16 %v929, %v926
        %v1095 = vpack.c.b16 %v930, %v927
        %v1096 = vpack.c.b16 %v934, %v931
        %v1097 = vpack.c.b16 %v935, %v932
        %v1098 = vpack.c.b16 %v936, %v933
        %v1099 = vpack.c.b16 %v940, %v937
        %v1100 = vpack.c.b16 %v941, %v938
        %v1101 = vpack.c.b16 %v942, %v939
        %v1102 = vpack.c.b16 %v946, %v943
        %v1103 = vpack.c.b16 %v947, %v944
        %v1104 = vpack.c.b16 %v948, %v945
        %v1105 = vpack.c.b16 %v952, %v949
        %v1106 = vpack.c.b16 %v953, %v950
        %v1107 = vpack.c.b16 %v954, %v951
        %v1108 = vpack.c.b16 %v958, %v955
        %v1109 = vpack.c.b16 %v959, %v956
        %v1110 = vpack.c.b16 %v960, %v957
        %v1111 = vpack.c.b16 %v964, %v961
        %v1112 = vpack.c.b16 %v965, %v962
        %v1113 = vpack.c.b16 %v966, %v963
        %v1114 = vpack.c.b16 %v970, %v967
        %v1115 = vpack.c.b16 %v971, %v968
        %v1116 = vpack.c.b16 %v972, %v969
        %v1117 = vpack.c.b16 %v976, %v973
        %v1118 = vpack.c.b16 %v977, %v974
        %v1119 = vpack.c.b16 %v978, %v975
        %v1120 = vpack.c.b16 %v982, %v979
        %v1121 = vpack.c.b16 %v983, %v980
        %v1122 = vpack.c.b16 %v984, %v981
        %v1123 = vpack.c.b16 %v988, %v985
        %v1124 = vpack.c.b16 %v989, %v986
        %v1125 = vpack.c.b16 %v990, %v987
        %v1126 = vpack.c.b16 %v994, %v991
        %v1127 = vpack.c.b16 %v995, %v992
        %v1128 = vpack.c.b16 %v996, %v993
        %v1129 = vpack.c.b16 %v1000, %v997
        %v1130 = vpack.c.b16 %v1001, %v998
        %v1131 = vpack.c.b16 %v1002, %v999
        %v1132 = vpack.c.b16 %v1006, %v1003
        %v1133 = vpack.c.b16 %v1007, %v1004
        %v1134 = vpack.c.b16 %v1008, %v1005
        %v1135 = vpack.c.b16 %v1012, %v1009
        %v1136 = vpack.c.b16 %v1013, %v1010
        %v1137 = vpack.c.b16 %v1014, %v1011
        %v1138 = vpack.c.b16 %v1018, %v1015
        %v1139 = vpack.c.b16 %v1019, %v1016
        %v1140 = vpack.c.b16 %v1020, %v1017
        %v1141 = vpack.c.b16 %v1024, %v1021
        %v1142 = vpack.c.b16 %v1025, %v1022
        %v1143 = vpack.c.b16 %v1026, %v1023
        %v1144 = vpack.c.b16 %v1030, %v1027
        %v1145 = vpack.c.b16 %v1031, %v1028
        %v1146 = vpack.c.b16 %v1032, %v1029
        %v1147 = vpack.c.b16 %v1036, %v1033
        %v1148 = vpack.c.b16 %v1037, %v1034
        %v1149 = vpack.c.b16 %v1038, %v1035
        %v1150 = vpack.c.b16 %v1042, %v1039
        %v1151 = vpack.c.b16 %v1043, %v1040
        %v1152 = vpack.c.b16 %v1044, %v1041
        %v1153 = vpack.c.b16 %v1048, %v1045
        %v1154 = vpack.c.b16 %v1049, %v1046
        %v1155 = vpack.c.b16 %v1050, %v1047
        %v1156 = vpack.c.b16 %v1054, %v1051
        %v1157 = vpack.c.b16 %v1055, %v1052
        %v1158 = vpack.c.b16 %v1056, %v1053
        %v1159 = vpack.c.b16 %v1060, %v1057
        %v1160 = vpack.c.b16 %v1061, %v1058
        %v1161 = vpack.c.b16 %v1062, %v1059
        %v1162 = vpack.c.b16 %v1066, %v1063
        %v1163 = vpack.c.b16 %v1067, %v1064
        %v1164 = vpack.c.b16 %v1068, %v1065
        %1261 = vmatprep.subr.bf16.mxu0 %v1091
        %1262 = vmatpush1.bf16.xpose.msra.mxu0 %v1090
        %1263 = vmatprep.subr.bf16.mxu0 %v1088
        %1264 = vmatpush1.bf16.xpose.msra.mxu0 %v1087
        %1265 = vmatprep.subr.bf16.mxu0 %v1085
        %1266 = vmatpush1.bf16.xpose.msra.mxu0 %v1084
        %1267 = vmatprep.subr.bf16.mxu0 %v1082
        %1268 = vmatpush1.bf16.xpose.msra.mxu0 %v1081
        %1269 = vmatprep.subr.bf16.mxu0 %v1079
        %1270 = vmatpush1.bf16.xpose.msra.mxu0 %v1078
        %1271 = vmatprep.subr.bf16.mxu0 %v1076
        %1272 = vmatpush1.bf16.xpose.msra.mxu0 %v1075
        %1273 = vmatprep.subr.bf16.mxu0 %v1073
        %1274 = vmatpush1.bf16.xpose.msra.mxu0 %v1072
        %1275 = vmatprep.subr.bf16.mxu0 %v1070
        %1276 = vmatpush1.bf16.xpose.msra.mxu0 %v1069
        %1277 = vmatprep.subr.bf16.mxu0 %v1115
        %1278 = vmatpush2.bf16.xpose.msra.mxu0 %v1114
        %1279 = vmatprep.subr.bf16.mxu0 %v1112
        %1280 = vmatpush2.bf16.xpose.msra.mxu0 %v1111
        %1281 = vmatprep.subr.bf16.mxu0 %v1109
        %1282 = vmatpush2.bf16.xpose.msra.mxu0 %v1108
        %1283 = vmatprep.subr.bf16.mxu0 %v1106
        %1284 = vmatpush2.bf16.xpose.msra.mxu0 %v1105
        %1285 = vmatprep.subr.bf16.mxu0 %v1103
        %1286 = vmatpush2.bf16.xpose.msra.mxu0 %v1102
        %1287 = vmatprep.subr.bf16.mxu0 %v1100
        %1288 = vmatpush2.bf16.xpose.msra.mxu0 %v1099
        %1289 = vmatprep.subr.bf16.mxu0 %v1097
        %1290 = vmatpush2.bf16.xpose.msra.mxu0 %v1096
        %1291 = vmatprep.subr.bf16.mxu0 %v1094
        %1292 = vmatpush2.bf16.xpose.msra.mxu0 %v1093
        %1293 = vmatprep.mubr.bf16.mxu0 %v654
        %1294 = vmatmul.mubr.bf16.gmra.mxu0 %v653
        %v1295 = vpop.f32.mrf.mxu0
        %v1296 = vadd.f32 0.0, %v1295
        %v1297 = vpop.f32.mrf.mxu0
        %v1298 = vadd.f32 0.0, %v1297
        %v1299 = vpop.f32.mrf.mxu0
        %v1300 = vadd.f32 0.0, %v1299
        %v1301 = vpop.f32.mrf.mxu0
        %v1302 = vadd.f32 0.0, %v1301
        %1303 = vmatprep.mubr.bf16.mxu0 %v657
        %1304 = vmatmul.mubr.bf16.gmra.mxu0 %v656
        %v1305 = vpop.f32.mrf.mxu0
        %v1306 = vadd.f32 0.0, %v1305
        %v1307 = vpop.f32.mrf.mxu0
        %v1308 = vadd.f32 0.0, %v1307
        %v1309 = vpop.f32.mrf.mxu0
        %v1310 = vadd.f32 0.0, %v1309
        %v1311 = vpop.f32.mrf.mxu0
        %v1312 = vadd.f32 0.0, %v1311
        %1313 = vmatprep.mubr.bf16.mxu0 %v660
        %1314 = vmatmul.mubr.bf16.gmra.mxu0 %v659
        %v1315 = vpop.f32.mrf.mxu0
        %v1316 = vadd.f32 0.0, %v1315
        %v1317 = vpop.f32.mrf.mxu0
        %v1318 = vadd.f32 0.0, %v1317
        %v1319 = vpop.f32.mrf.mxu0
        %v1320 = vadd.f32 0.0, %v1319
        %v1321 = vpop.f32.mrf.mxu0
        %v1322 = vadd.f32 0.0, %v1321
        %1323 = vmatprep.mubr.bf16.mxu0 %v663
        %1324 = vmatmul.mubr.bf16.gmra.mxu0 %v662
        %v1325 = vpop.f32.mrf.mxu0
        %v1326 = vadd.f32 0.0, %v1325
        %v1327 = vpop.f32.mrf.mxu0
        %v1328 = vadd.f32 0.0, %v1327
        %v1329 = vpop.f32.mrf.mxu0
        %v1330 = vadd.f32 0.0, %v1329
        %v1331 = vpop.f32.mrf.mxu0
        %v1332 = vadd.f32 0.0, %v1331
        %1333 = vmatprep.mubr.bf16.mxu0 %v666
        %1334 = vmatmul.mubr.bf16.gmra.mxu0 %v665
        %v1335 = vpop.f32.mrf.mxu0
        %v1336 = vadd.f32 0.0, %v1335
        %v1337 = vpop.f32.mrf.mxu0
        %v1338 = vadd.f32 0.0, %v1337
        %v1339 = vpop.f32.mrf.mxu0
        %v1340 = vadd.f32 0.0, %v1339
        %v1341 = vpop.f32.mrf.mxu0
        %v1342 = vadd.f32 0.0, %v1341
        %1343 = vmatprep.mubr.bf16.mxu0 %v669
        %1344 = vmatmul.mubr.bf16.gmra.mxu0 %v668
        %v1345 = vpop.f32.mrf.mxu0
        %v1346 = vadd.f32 0.0, %v1345
        %v1347 = vpop.f32.mrf.mxu0
        %v1348 = vadd.f32 0.0, %v1347
        %v1349 = vpop.f32.mrf.mxu0
        %v1350 = vadd.f32 0.0, %v1349
        %v1351 = vpop.f32.mrf.mxu0
        %v1352 = vadd.f32 0.0, %v1351
        %1353 = vmatprep.mubr.bf16.mxu0 %v672
        %1354 = vmatmul.mubr.bf16.gmra.mxu0 %v671
        %v1355 = vpop.f32.mrf.mxu0
        %v1356 = vadd.f32 0.0, %v1355
        %v1357 = vpop.f32.mrf.mxu0
        %v1358 = vadd.f32 0.0, %v1357
        %v1359 = vpop.f32.mrf.mxu0
        %v1360 = vadd.f32 0.0, %v1359
        %v1361 = vpop.f32.mrf.mxu0
        %v1362 = vadd.f32 0.0, %v1361
        %1363 = vmatprep.mubr.bf16.mxu0 %v675
        %1364 = vmatmul.mubr.bf16.gmra.mxu0 %v674
        %v1365 = vpop.f32.mrf.mxu0
        %v1366 = vadd.f32 0.0, %v1365
        %v1367 = vpop.f32.mrf.mxu0
        %v1368 = vadd.f32 0.0, %v1367
        %v1369 = vpop.f32.mrf.mxu0
        %v1370 = vadd.f32 0.0, %v1369
        %v1371 = vpop.f32.mrf.mxu0
        %v1372 = vadd.f32 0.0, %v1371
        %1373 = vmatprep.mubr.bf16.mxu0 %v678
        %1374 = vmatmul.mubr.bf16.gmra.mxu0 %v677
        %v1375 = vpop.f32.mrf.mxu0
        %v1376 = vadd.f32 0.0, %v1375
        %v1377 = vpop.f32.mrf.mxu0
        %v1378 = vadd.f32 0.0, %v1377
        %v1379 = vpop.f32.mrf.mxu0
        %v1380 = vadd.f32 0.0, %v1379
        %v1381 = vpop.f32.mrf.mxu0
        %v1382 = vadd.f32 0.0, %v1381
        %1383 = vmatprep.mubr.bf16.mxu0 %v681
        %1384 = vmatmul.mubr.bf16.gmra.mxu0 %v680
        %v1385 = vpop.f32.mrf.mxu0
        %v1386 = vadd.f32 0.0, %v1385
        %v1387 = vpop.f32.mrf.mxu0
        %v1388 = vadd.f32 0.0, %v1387
        %v1389 = vpop.f32.mrf.mxu0
        %v1390 = vadd.f32 0.0, %v1389
        %v1391 = vpop.f32.mrf.mxu0
        %v1392 = vadd.f32 0.0, %v1391
        %1393 = vmatprep.mubr.bf16.mxu0 %v684
        %1394 = vmatmul.mubr.bf16.gmra.mxu0 %v683
        %v1395 = vpop.f32.mrf.mxu0
        %v1396 = vadd.f32 0.0, %v1395
        %v1397 = vpop.f32.mrf.mxu0
        %v1398 = vadd.f32 0.0, %v1397
        %v1399 = vpop.f32.mrf.mxu0
        %v1400 = vadd.f32 0.0, %v1399
        %v1401 = vpop.f32.mrf.mxu0
        %v1402 = vadd.f32 0.0, %v1401
        %1403 = vmatprep.mubr.bf16.mxu0 %v687
        %1404 = vmatmul.mubr.bf16.gmra.mxu0 %v686
        %v1405 = vpop.f32.mrf.mxu0
        %v1406 = vadd.f32 0.0, %v1405
        %v1407 = vpop.f32.mrf.mxu0
        %v1408 = vadd.f32 0.0, %v1407
        %v1409 = vpop.f32.mrf.mxu0
        %v1410 = vadd.f32 0.0, %v1409
        %v1411 = vpop.f32.mrf.mxu0
        %v1412 = vadd.f32 0.0, %v1411
        %1413 = vmatprep.mubr.bf16.mxu0 %v690
        %1414 = vmatmul.mubr.bf16.gmra.mxu0 %v689
        %v1415 = vpop.f32.mrf.mxu0
        %v1416 = vadd.f32 0.0, %v1415
        %v1417 = vpop.f32.mrf.mxu0
        %v1418 = vadd.f32 0.0, %v1417
        %v1419 = vpop.f32.mrf.mxu0
        %v1420 = vadd.f32 0.0, %v1419
        %v1421 = vpop.f32.mrf.mxu0
        %v1422 = vadd.f32 0.0, %v1421
        %1423 = vmatprep.mubr.bf16.mxu0 %v693
        %1424 = vmatmul.mubr.bf16.gmra.mxu0 %v692
        %v1425 = vpop.f32.mrf.mxu0
        %v1426 = vadd.f32 0.0, %v1425
        %v1427 = vpop.f32.mrf.mxu0
        %v1428 = vadd.f32 0.0, %v1427
        %v1429 = vpop.f32.mrf.mxu0
        %v1430 = vadd.f32 0.0, %v1429
        %v1431 = vpop.f32.mrf.mxu0
        %v1432 = vadd.f32 0.0, %v1431
        %1433 = vmatprep.mubr.bf16.mxu0 %v696
        %1434 = vmatmul.mubr.bf16.gmra.mxu0 %v695
        %v1435 = vpop.f32.mrf.mxu0
        %v1436 = vadd.f32 0.0, %v1435
        %v1437 = vpop.f32.mrf.mxu0
        %v1438 = vadd.f32 0.0, %v1437
        %v1439 = vpop.f32.mrf.mxu0
        %v1440 = vadd.f32 0.0, %v1439
        %v1441 = vpop.f32.mrf.mxu0
        %v1442 = vadd.f32 0.0, %v1441
        %1443 = vmatprep.mubr.bf16.mxu0 %v699
        %1444 = vmatmul.mubr.bf16.gmra.mxu0 %v698
        %v1445 = vpop.f32.mrf.mxu0
        %v1446 = vadd.f32 0.0, %v1445
        %v1447 = vpop.f32.mrf.mxu0
        %v1448 = vadd.f32 0.0, %v1447
        %v1449 = vpop.f32.mrf.mxu0
        %v1450 = vadd.f32 0.0, %v1449
        %v1451 = vpop.f32.mrf.mxu0
        %v1452 = vadd.f32 0.0, %v1451
        %1453 = vdwg.mxu0
        %1454 = vmatprep.subr.bf16.mxu0 0
        %1455 = vmatpush1.bf16.xpose.msra.mxu0 %v1092
        %1456 = vmatprep.subr.bf16.mxu0 0
        %1457 = vmatpush1.bf16.xpose.msra.mxu0 %v1089
        %1458 = vmatprep.subr.bf16.mxu0 0
        %1459 = vmatpush1.bf16.xpose.msra.mxu0 %v1086
        %1460 = vmatprep.subr.bf16.mxu0 0
        %1461 = vmatpush1.bf16.xpose.msra.mxu0 %v1083
        %1462 = vmatprep.subr.bf16.mxu0 0
        %1463 = vmatpush1.bf16.xpose.msra.mxu0 %v1080
        %1464 = vmatprep.subr.bf16.mxu0 0
        %1465 = vmatpush1.bf16.xpose.msra.mxu0 %v1077
        %1466 = vmatprep.subr.bf16.mxu0 0
        %1467 = vmatpush1.bf16.xpose.msra.mxu0 %v1074
        %1468 = vmatprep.subr.bf16.mxu0 0
        %1469 = vmatpush1.bf16.xpose.msra.mxu0 %v1071
        %1470 = vmatprep.subr.bf16.mxu0 0
        %1471 = vmatpush2.bf16.xpose.msra.mxu0 %v1116
        %1472 = vmatprep.subr.bf16.mxu0 0
        %1473 = vmatpush2.bf16.xpose.msra.mxu0 %v1113
        %1474 = vmatprep.subr.bf16.mxu0 0
        %1475 = vmatpush2.bf16.xpose.msra.mxu0 %v1110
        %1476 = vmatprep.subr.bf16.mxu0 0
        %1477 = vmatpush2.bf16.xpose.msra.mxu0 %v1107
        %1478 = vmatprep.subr.bf16.mxu0 0
        %1479 = vmatpush2.bf16.xpose.msra.mxu0 %v1104
        %1480 = vmatprep.subr.bf16.mxu0 0
        %1481 = vmatpush2.bf16.xpose.msra.mxu0 %v1101
        %1482 = vmatprep.subr.bf16.mxu0 0
        %1483 = vmatpush2.bf16.xpose.msra.mxu0 %v1098
        %1484 = vmatprep.subr.bf16.mxu0 0
        %1485 = vmatpush2.bf16.xpose.msra.mxu0 %v1095
        %1486 = vmatprep.mubr.bf16.mxu0 0
        %1487 = vmatmul.mubr.bf16.gmra.mxu0 %v655
        %v1488 = vpop.f32.mrf.mxu0
        %v1489 = vadd.f32 %v1296, %v1488
        %v1490 = vpop.f32.mrf.mxu0
        %v1491 = vadd.f32 %v1298, %v1490
        %v1492 = vpop.f32.mrf.mxu0
        %v1493 = vadd.f32 %v1300, %v1492
        %v1494 = vpop.f32.mrf.mxu0
        %v1495 = vadd.f32 %v1302, %v1494
        %1496 = vmatprep.mubr.bf16.mxu0 0
        %1497 = vmatmul.mubr.bf16.gmra.mxu0 %v658
        %v1498 = vpop.f32.mrf.mxu0
        %v1499 = vadd.f32 %v1306, %v1498
        %v1500 = vpop.f32.mrf.mxu0
        %v1501 = vadd.f32 %v1308, %v1500
        %v1502 = vpop.f32.mrf.mxu0
        %v1503 = vadd.f32 %v1310, %v1502
        %v1504 = vpop.f32.mrf.mxu0
        %v1505 = vadd.f32 %v1312, %v1504
        %1506 = vmatprep.mubr.bf16.mxu0 0
        %1507 = vmatmul.mubr.bf16.gmra.mxu0 %v661
        %v1508 = vpop.f32.mrf.mxu0
        %v1509 = vadd.f32 %v1316, %v1508
        %v1510 = vpop.f32.mrf.mxu0
        %v1511 = vadd.f32 %v1318, %v1510
        %v1512 = vpop.f32.mrf.mxu0
        %v1513 = vadd.f32 %v1320, %v1512
        %v1514 = vpop.f32.mrf.mxu0
        %v1515 = vadd.f32 %v1322, %v1514
        %1516 = vmatprep.mubr.bf16.mxu0 0
        %1517 = vmatmul.mubr.bf16.gmra.mxu0 %v664
        %v1518 = vpop.f32.mrf.mxu0
        %v1519 = vadd.f32 %v1326, %v1518
        %v1520 = vpop.f32.mrf.mxu0
        %v1521 = vadd.f32 %v1328, %v1520
        %v1522 = vpop.f32.mrf.mxu0
        %v1523 = vadd.f32 %v1330, %v1522
        %v1524 = vpop.f32.mrf.mxu0
        %v1525 = vadd.f32 %v1332, %v1524
        %1526 = vmatprep.mubr.bf16.mxu0 0
        %1527 = vmatmul.mubr.bf16.gmra.mxu0 %v667
        %v1528 = vpop.f32.mrf.mxu0
        %v1529 = vadd.f32 %v1336, %v1528
        %v1530 = vpop.f32.mrf.mxu0
        %v1531 = vadd.f32 %v1338, %v1530
        %v1532 = vpop.f32.mrf.mxu0
        %v1533 = vadd.f32 %v1340, %v1532
        %v1534 = vpop.f32.mrf.mxu0
        %v1535 = vadd.f32 %v1342, %v1534
        %1536 = vmatprep.mubr.bf16.mxu0 0
        %1537 = vmatmul.mubr.bf16.gmra.mxu0 %v670
        %v1538 = vpop.f32.mrf.mxu0
        %v1539 = vadd.f32 %v1346, %v1538
        %v1540 = vpop.f32.mrf.mxu0
        %v1541 = vadd.f32 %v1348, %v1540
        %v1542 = vpop.f32.mrf.mxu0
        %v1543 = vadd.f32 %v1350, %v1542
        %v1544 = vpop.f32.mrf.mxu0
        %v1545 = vadd.f32 %v1352, %v1544
        %1546 = vmatprep.mubr.bf16.mxu0 0
        %1547 = vmatmul.mubr.bf16.gmra.mxu0 %v673
        %v1548 = vpop.f32.mrf.mxu0
        %v1549 = vadd.f32 %v1356, %v1548
        %v1550 = vpop.f32.mrf.mxu0
        %v1551 = vadd.f32 %v1358, %v1550
        %v1552 = vpop.f32.mrf.mxu0
        %v1553 = vadd.f32 %v1360, %v1552
        %v1554 = vpop.f32.mrf.mxu0
        %v1555 = vadd.f32 %v1362, %v1554
        %1556 = vmatprep.mubr.bf16.mxu0 0
        %1557 = vmatmul.mubr.bf16.gmra.mxu0 %v676
        %v1558 = vpop.f32.mrf.mxu0
        %v1559 = vadd.f32 %v1366, %v1558
        %v1560 = vpop.f32.mrf.mxu0
        %v1561 = vadd.f32 %v1368, %v1560
        %v1562 = vpop.f32.mrf.mxu0
        %v1563 = vadd.f32 %v1370, %v1562
        %v1564 = vpop.f32.mrf.mxu0
        %v1565 = vadd.f32 %v1372, %v1564
        %1566 = vmatprep.mubr.bf16.mxu0 0
        %1567 = vmatmul.mubr.bf16.gmra.mxu0 %v679
        %v1568 = vpop.f32.mrf.mxu0
        %v1569 = vadd.f32 %v1376, %v1568
        %v1570 = vpop.f32.mrf.mxu0
        %v1571 = vadd.f32 %v1378, %v1570
        %v1572 = vpop.f32.mrf.mxu0
        %v1573 = vadd.f32 %v1380, %v1572
        %v1574 = vpop.f32.mrf.mxu0
        %v1575 = vadd.f32 %v1382, %v1574
        %1576 = vmatprep.mubr.bf16.mxu0 0
        %1577 = vmatmul.mubr.bf16.gmra.mxu0 %v682
        %v1578 = vpop.f32.mrf.mxu0
        %v1579 = vadd.f32 %v1386, %v1578
        %v1580 = vpop.f32.mrf.mxu0
        %v1581 = vadd.f32 %v1388, %v1580
        %v1582 = vpop.f32.mrf.mxu0
        %v1583 = vadd.f32 %v1390, %v1582
        %v1584 = vpop.f32.mrf.mxu0
        %v1585 = vadd.f32 %v1392, %v1584
        %1586 = vmatprep.mubr.bf16.mxu0 0
        %1587 = vmatmul.mubr.bf16.gmra.mxu0 %v685
        %v1588 = vpop.f32.mrf.mxu0
        %v1589 = vadd.f32 %v1396, %v1588
        %v1590 = vpop.f32.mrf.mxu0
        %v1591 = vadd.f32 %v1398, %v1590
        %v1592 = vpop.f32.mrf.mxu0
        %v1593 = vadd.f32 %v1400, %v1592
        %v1594 = vpop.f32.mrf.mxu0
        %v1595 = vadd.f32 %v1402, %v1594
        %1596 = vmatprep.mubr.bf16.mxu0 0
        %1597 = vmatmul.mubr.bf16.gmra.mxu0 %v688
        %v1598 = vpop.f32.mrf.mxu0
        %v1599 = vadd.f32 %v1406, %v1598
        %v1600 = vpop.f32.mrf.mxu0
        %v1601 = vadd.f32 %v1408, %v1600
        %v1602 = vpop.f32.mrf.mxu0
        %v1603 = vadd.f32 %v1410, %v1602
        %v1604 = vpop.f32.mrf.mxu0
        %v1605 = vadd.f32 %v1412, %v1604
        %1606 = vmatprep.mubr.bf16.mxu0 0
        %1607 = vmatmul.mubr.bf16.gmra.mxu0 %v691
        %v1608 = vpop.f32.mrf.mxu0
        %v1609 = vadd.f32 %v1416, %v1608
        %v1610 = vpop.f32.mrf.mxu0
        %v1611 = vadd.f32 %v1418, %v1610
        %v1612 = vpop.f32.mrf.mxu0
        %v1613 = vadd.f32 %v1420, %v1612
        %v1614 = vpop.f32.mrf.mxu0
        %v1615 = vadd.f32 %v1422, %v1614
        %1616 = vmatprep.mubr.bf16.mxu0 0
        %1617 = vmatmul.mubr.bf16.gmra.mxu0 %v694
        %v1618 = vpop.f32.mrf.mxu0
        %v1619 = vadd.f32 %v1426, %v1618
        %v1620 = vpop.f32.mrf.mxu0
        %v1621 = vadd.f32 %v1428, %v1620
        %v1622 = vpop.f32.mrf.mxu0
        %v1623 = vadd.f32 %v1430, %v1622
        %v1624 = vpop.f32.mrf.mxu0
        %v1625 = vadd.f32 %v1432, %v1624
        %1626 = vmatprep.mubr.bf16.mxu0 0
        %1627 = vmatmul.mubr.bf16.gmra.mxu0 %v697
        %v1628 = vpop.f32.mrf.mxu0
        %v1629 = vadd.f32 %v1436, %v1628
        %v1630 = vpop.f32.mrf.mxu0
        %v1631 = vadd.f32 %v1438, %v1630
        %v1632 = vpop.f32.mrf.mxu0
        %v1633 = vadd.f32 %v1440, %v1632
        %v1634 = vpop.f32.mrf.mxu0
        %v1635 = vadd.f32 %v1442, %v1634
        %1636 = vmatprep.mubr.bf16.mxu0 0
        %1637 = vmatmul.mubr.bf16.gmra.mxu0 %v700
        %v1638 = vpop.f32.mrf.mxu0
        %v1639 = vadd.f32 %v1446, %v1638
        %v1640 = vpop.f32.mrf.mxu0
        %v1641 = vadd.f32 %v1448, %v1640
        %v1642 = vpop.f32.mrf.mxu0
        %v1643 = vadd.f32 %v1450, %v1642
        %v1644 = vpop.f32.mrf.mxu0
        %v1645 = vadd.f32 %v1452, %v1644
        %1646 = vdwg.mxu0
        %1647 = vmatprep.subr.bf16.mxu0 %v1139
        %1648 = vmatpush1.bf16.xpose.msra.mxu0 %v1138
        %1649 = vmatprep.subr.bf16.mxu0 %v1136
        %1650 = vmatpush1.bf16.xpose.msra.mxu0 %v1135
        %1651 = vmatprep.subr.bf16.mxu0 %v1133
        %1652 = vmatpush1.bf16.xpose.msra.mxu0 %v1132
        %1653 = vmatprep.subr.bf16.mxu0 %v1130
        %1654 = vmatpush1.bf16.xpose.msra.mxu0 %v1129
        %1655 = vmatprep.subr.bf16.mxu0 %v1127
        %1656 = vmatpush1.bf16.xpose.msra.mxu0 %v1126
        %1657 = vmatprep.subr.bf16.mxu0 %v1124
        %1658 = vmatpush1.bf16.xpose.msra.mxu0 %v1123
        %1659 = vmatprep.subr.bf16.mxu0 %v1121
        %1660 = vmatpush1.bf16.xpose.msra.mxu0 %v1120
        %1661 = vmatprep.subr.bf16.mxu0 %v1118
        %1662 = vmatpush1.bf16.xpose.msra.mxu0 %v1117
        %1663 = vmatprep.subr.bf16.mxu0 %v1163
        %1664 = vmatpush2.bf16.xpose.msra.mxu0 %v1162
        %1665 = vmatprep.subr.bf16.mxu0 %v1160
        %1666 = vmatpush2.bf16.xpose.msra.mxu0 %v1159
        %1667 = vmatprep.subr.bf16.mxu0 %v1157
        %1668 = vmatpush2.bf16.xpose.msra.mxu0 %v1156
        %1669 = vmatprep.subr.bf16.mxu0 %v1154
        %1670 = vmatpush2.bf16.xpose.msra.mxu0 %v1153
        %1671 = vmatprep.subr.bf16.mxu0 %v1151
        %1672 = vmatpush2.bf16.xpose.msra.mxu0 %v1150
        %1673 = vmatprep.subr.bf16.mxu0 %v1148
        %1674 = vmatpush2.bf16.xpose.msra.mxu0 %v1147
        %1675 = vmatprep.subr.bf16.mxu0 %v1145
        %1676 = vmatpush2.bf16.xpose.msra.mxu0 %v1144
        %1677 = vmatprep.subr.bf16.mxu0 %v1142
        %1678 = vmatpush2.bf16.xpose.msra.mxu0 %v1141
        %1679 = vmatprep.mubr.bf16.mxu0 %v654
        %1680 = vmatmul.mubr.bf16.gmra.mxu0 %v653
        %v1681 = vpop.f32.mrf.mxu0
        %v1682 = vadd.f32 0.0, %v1681
        %v1683 = vpop.f32.mrf.mxu0
        %v1684 = vadd.f32 0.0, %v1683
        %v1685 = vpop.f32.mrf.mxu0
        %v1686 = vadd.f32 0.0, %v1685
        %v1687 = vpop.f32.mrf.mxu0
        %v1688 = vadd.f32 0.0, %v1687
        %1689 = vmatprep.mubr.bf16.mxu0 %v657
        %1690 = vmatmul.mubr.bf16.gmra.mxu0 %v656
        %v1691 = vpop.f32.mrf.mxu0
        %v1692 = vadd.f32 0.0, %v1691
        %v1693 = vpop.f32.mrf.mxu0
        %v1694 = vadd.f32 0.0, %v1693
        %v1695 = vpop.f32.mrf.mxu0
        %v1696 = vadd.f32 0.0, %v1695
        %v1697 = vpop.f32.mrf.mxu0
        %v1698 = vadd.f32 0.0, %v1697
        %1699 = vmatprep.mubr.bf16.mxu0 %v660
        %1700 = vmatmul.mubr.bf16.gmra.mxu0 %v659
        %v1701 = vpop.f32.mrf.mxu0
        %v1702 = vadd.f32 0.0, %v1701
        %v1703 = vpop.f32.mrf.mxu0
        %v1704 = vadd.f32 0.0, %v1703
        %v1705 = vpop.f32.mrf.mxu0
        %v1706 = vadd.f32 0.0, %v1705
        %v1707 = vpop.f32.mrf.mxu0
        %v1708 = vadd.f32 0.0, %v1707
        %1709 = vmatprep.mubr.bf16.mxu0 %v663
        %1710 = vmatmul.mubr.bf16.gmra.mxu0 %v662
        %v1711 = vpop.f32.mrf.mxu0
        %v1712 = vadd.f32 0.0, %v1711
        %v1713 = vpop.f32.mrf.mxu0
        %v1714 = vadd.f32 0.0, %v1713
        %v1715 = vpop.f32.mrf.mxu0
        %v1716 = vadd.f32 0.0, %v1715
        %v1717 = vpop.f32.mrf.mxu0
        %v1718 = vadd.f32 0.0, %v1717
        %1719 = vmatprep.mubr.bf16.mxu0 %v666
        %1720 = vmatmul.mubr.bf16.gmra.mxu0 %v665
        %v1721 = vpop.f32.mrf.mxu0
        %v1722 = vadd.f32 0.0, %v1721
        %v1723 = vpop.f32.mrf.mxu0
        %v1724 = vadd.f32 0.0, %v1723
        %v1725 = vpop.f32.mrf.mxu0
        %v1726 = vadd.f32 0.0, %v1725
        %v1727 = vpop.f32.mrf.mxu0
        %v1728 = vadd.f32 0.0, %v1727
        %1729 = vmatprep.mubr.bf16.mxu0 %v669
        %1730 = vmatmul.mubr.bf16.gmra.mxu0 %v668
        %v1731 = vpop.f32.mrf.mxu0
        %v1732 = vadd.f32 0.0, %v1731
        %v1733 = vpop.f32.mrf.mxu0
        %v1734 = vadd.f32 0.0, %v1733
        %v1735 = vpop.f32.mrf.mxu0
        %v1736 = vadd.f32 0.0, %v1735
        %v1737 = vpop.f32.mrf.mxu0
        %v1738 = vadd.f32 0.0, %v1737
        %1739 = vmatprep.mubr.bf16.mxu0 %v672
        %1740 = vmatmul.mubr.bf16.gmra.mxu0 %v671
        %v1741 = vpop.f32.mrf.mxu0
        %v1742 = vadd.f32 0.0, %v1741
        %v1743 = vpop.f32.mrf.mxu0
        %v1744 = vadd.f32 0.0, %v1743
        %v1745 = vpop.f32.mrf.mxu0
        %v1746 = vadd.f32 0.0, %v1745
        %v1747 = vpop.f32.mrf.mxu0
        %v1748 = vadd.f32 0.0, %v1747
        %1749 = vmatprep.mubr.bf16.mxu0 %v675
        %1750 = vmatmul.mubr.bf16.gmra.mxu0 %v674
        %v1751 = vpop.f32.mrf.mxu0
        %v1752 = vadd.f32 0.0, %v1751
        %v1753 = vpop.f32.mrf.mxu0
        %v1754 = vadd.f32 0.0, %v1753
        %v1755 = vpop.f32.mrf.mxu0
        %v1756 = vadd.f32 0.0, %v1755
        %v1757 = vpop.f32.mrf.mxu0
        %v1758 = vadd.f32 0.0, %v1757
        %1759 = vmatprep.mubr.bf16.mxu0 %v678
        %1760 = vmatmul.mubr.bf16.gmra.mxu0 %v677
        %v1761 = vpop.f32.mrf.mxu0
        %v1762 = vadd.f32 0.0, %v1761
        %v1763 = vpop.f32.mrf.mxu0
        %v1764 = vadd.f32 0.0, %v1763
        %v1765 = vpop.f32.mrf.mxu0
        %v1766 = vadd.f32 0.0, %v1765
        %v1767 = vpop.f32.mrf.mxu0
        %v1768 = vadd.f32 0.0, %v1767
        %1769 = vmatprep.mubr.bf16.mxu0 %v681
        %1770 = vmatmul.mubr.bf16.gmra.mxu0 %v680
        %v1771 = vpop.f32.mrf.mxu0
        %v1772 = vadd.f32 0.0, %v1771
        %v1773 = vpop.f32.mrf.mxu0
        %v1774 = vadd.f32 0.0, %v1773
        %v1775 = vpop.f32.mrf.mxu0
        %v1776 = vadd.f32 0.0, %v1775
        %v1777 = vpop.f32.mrf.mxu0
        %v1778 = vadd.f32 0.0, %v1777
        %1779 = vmatprep.mubr.bf16.mxu0 %v684
        %1780 = vmatmul.mubr.bf16.gmra.mxu0 %v683
        %v1781 = vpop.f32.mrf.mxu0
        %v1782 = vadd.f32 0.0, %v1781
        %v1783 = vpop.f32.mrf.mxu0
        %v1784 = vadd.f32 0.0, %v1783
        %v1785 = vpop.f32.mrf.mxu0
        %v1786 = vadd.f32 0.0, %v1785
        %v1787 = vpop.f32.mrf.mxu0
        %v1788 = vadd.f32 0.0, %v1787
        %1789 = vmatprep.mubr.bf16.mxu0 %v687
        %1790 = vmatmul.mubr.bf16.gmra.mxu0 %v686
        %v1791 = vpop.f32.mrf.mxu0
        %v1792 = vadd.f32 0.0, %v1791
        %v1793 = vpop.f32.mrf.mxu0
        %v1794 = vadd.f32 0.0, %v1793
        %v1795 = vpop.f32.mrf.mxu0
        %v1796 = vadd.f32 0.0, %v1795
        %v1797 = vpop.f32.mrf.mxu0
        %v1798 = vadd.f32 0.0, %v1797
        %1799 = vmatprep.mubr.bf16.mxu0 %v690
        %1800 = vmatmul.mubr.bf16.gmra.mxu0 %v689
        %v1801 = vpop.f32.mrf.mxu0
        %v1802 = vadd.f32 0.0, %v1801
        %v1803 = vpop.f32.mrf.mxu0
        %v1804 = vadd.f32 0.0, %v1803
        %v1805 = vpop.f32.mrf.mxu0
        %v1806 = vadd.f32 0.0, %v1805
        %v1807 = vpop.f32.mrf.mxu0
        %v1808 = vadd.f32 0.0, %v1807
        %1809 = vmatprep.mubr.bf16.mxu0 %v693
        %1810 = vmatmul.mubr.bf16.gmra.mxu0 %v692
        %v1811 = vpop.f32.mrf.mxu0
        %v1812 = vadd.f32 0.0, %v1811
        %v1813 = vpop.f32.mrf.mxu0
        %v1814 = vadd.f32 0.0, %v1813
        %v1815 = vpop.f32.mrf.mxu0
        %v1816 = vadd.f32 0.0, %v1815
        %v1817 = vpop.f32.mrf.mxu0
        %v1818 = vadd.f32 0.0, %v1817
        %1819 = vmatprep.mubr.bf16.mxu0 %v696
        %1820 = vmatmul.mubr.bf16.gmra.mxu0 %v695
        %v1821 = vpop.f32.mrf.mxu0
        %v1822 = vadd.f32 0.0, %v1821
        %v1823 = vpop.f32.mrf.mxu0
        %v1824 = vadd.f32 0.0, %v1823
        %v1825 = vpop.f32.mrf.mxu0
        %v1826 = vadd.f32 0.0, %v1825
        %v1827 = vpop.f32.mrf.mxu0
        %v1828 = vadd.f32 0.0, %v1827
        %1829 = vmatprep.mubr.bf16.mxu0 %v699
        %1830 = vmatmul.mubr.bf16.gmra.mxu0 %v698
        %v1831 = vpop.f32.mrf.mxu0
        %v1832 = vadd.f32 0.0, %v1831
        %v1833 = vpop.f32.mrf.mxu0
        %v1834 = vadd.f32 0.0, %v1833
        %v1835 = vpop.f32.mrf.mxu0
        %v1836 = vadd.f32 0.0, %v1835
        %v1837 = vpop.f32.mrf.mxu0
        %v1838 = vadd.f32 0.0, %v1837
        %1839 = vdwg.mxu0
        %1840 = vmatprep.subr.bf16.mxu0 0
        %1841 = vmatpush1.bf16.xpose.msra.mxu0 %v1140
        %1842 = vmatprep.subr.bf16.mxu0 0
        %1843 = vmatpush1.bf16.xpose.msra.mxu0 %v1137
        %1844 = vmatprep.subr.bf16.mxu0 0
        %1845 = vmatpush1.bf16.xpose.msra.mxu0 %v1134
        %1846 = vmatprep.subr.bf16.mxu0 0
        %1847 = vmatpush1.bf16.xpose.msra.mxu0 %v1131
        %1848 = vmatprep.subr.bf16.mxu0 0
        %1849 = vmatpush1.bf16.xpose.msra.mxu0 %v1128
        %1850 = vmatprep.subr.bf16.mxu0 0
        %1851 = vmatpush1.bf16.xpose.msra.mxu0 %v1125
        %1852 = vmatprep.subr.bf16.mxu0 0
        %1853 = vmatpush1.bf16.xpose.msra.mxu0 %v1122
        %1854 = vmatprep.subr.bf16.mxu0 0
        %1855 = vmatpush1.bf16.xpose.msra.mxu0 %v1119
        %1856 = vmatprep.subr.bf16.mxu0 0
        %1857 = vmatpush2.bf16.xpose.msra.mxu0 %v1164
        %1858 = vmatprep.subr.bf16.mxu0 0
        %1859 = vmatpush2.bf16.xpose.msra.mxu0 %v1161
        %1860 = vmatprep.subr.bf16.mxu0 0
        %1861 = vmatpush2.bf16.xpose.msra.mxu0 %v1158
        %1862 = vmatprep.subr.bf16.mxu0 0
        %1863 = vmatpush2.bf16.xpose.msra.mxu0 %v1155
        %1864 = vmatprep.subr.bf16.mxu0 0
        %1865 = vmatpush2.bf16.xpose.msra.mxu0 %v1152
        %1866 = vmatprep.subr.bf16.mxu0 0
        %1867 = vmatpush2.bf16.xpose.msra.mxu0 %v1149
        %1868 = vmatprep.subr.bf16.mxu0 0
        %1869 = vmatpush2.bf16.xpose.msra.mxu0 %v1146
        %1870 = vmatprep.subr.bf16.mxu0 0
        %1871 = vmatpush2.bf16.xpose.msra.mxu0 %v1143
        %1872 = vmatprep.mubr.bf16.mxu0 0
        %1873 = vmatmul.mubr.bf16.gmra.mxu0 %v655
        %v1874 = vpop.f32.mrf.mxu0
        %v1875 = vadd.f32 %v1682, %v1874
        %v1876 = vpop.f32.mrf.mxu0
        %v1877 = vadd.f32 %v1684, %v1876
        %v1878 = vpop.f32.mrf.mxu0
        %v1879 = vadd.f32 %v1686, %v1878
        %v1880 = vpop.f32.mrf.mxu0
        %v1881 = vadd.f32 %v1688, %v1880
        %1882 = vmatprep.mubr.bf16.mxu0 0
        %1883 = vmatmul.mubr.bf16.gmra.mxu0 %v658
        %v1884 = vpop.f32.mrf.mxu0
        %v1885 = vadd.f32 %v1692, %v1884
        %v1886 = vpop.f32.mrf.mxu0
        %v1887 = vadd.f32 %v1694, %v1886
        %v1888 = vpop.f32.mrf.mxu0
        %v1889 = vadd.f32 %v1696, %v1888
        %v1890 = vpop.f32.mrf.mxu0
        %v1891 = vadd.f32 %v1698, %v1890
        %1892 = vmatprep.mubr.bf16.mxu0 0
        %1893 = vmatmul.mubr.bf16.gmra.mxu0 %v661
        %v1894 = vpop.f32.mrf.mxu0
        %v1895 = vadd.f32 %v1702, %v1894
        %v1896 = vpop.f32.mrf.mxu0
        %v1897 = vadd.f32 %v1704, %v1896
        %v1898 = vpop.f32.mrf.mxu0
        %v1899 = vadd.f32 %v1706, %v1898
        %v1900 = vpop.f32.mrf.mxu0
        %v1901 = vadd.f32 %v1708, %v1900
        %1902 = vmatprep.mubr.bf16.mxu0 0
        %1903 = vmatmul.mubr.bf16.gmra.mxu0 %v664
        %v1904 = vpop.f32.mrf.mxu0
        %v1905 = vadd.f32 %v1712, %v1904
        %v1906 = vpop.f32.mrf.mxu0
        %v1907 = vadd.f32 %v1714, %v1906
        %v1908 = vpop.f32.mrf.mxu0
        %v1909 = vadd.f32 %v1716, %v1908
        %v1910 = vpop.f32.mrf.mxu0
        %v1911 = vadd.f32 %v1718, %v1910
        %1912 = vmatprep.mubr.bf16.mxu0 0
        %1913 = vmatmul.mubr.bf16.gmra.mxu0 %v667
        %v1914 = vpop.f32.mrf.mxu0
        %v1915 = vadd.f32 %v1722, %v1914
        %v1916 = vpop.f32.mrf.mxu0
        %v1917 = vadd.f32 %v1724, %v1916
        %v1918 = vpop.f32.mrf.mxu0
        %v1919 = vadd.f32 %v1726, %v1918
        %v1920 = vpop.f32.mrf.mxu0
        %v1921 = vadd.f32 %v1728, %v1920
        %1922 = vmatprep.mubr.bf16.mxu0 0
        %1923 = vmatmul.mubr.bf16.gmra.mxu0 %v670
        %v1924 = vpop.f32.mrf.mxu0
        %v1925 = vadd.f32 %v1732, %v1924
        %v1926 = vpop.f32.mrf.mxu0
        %v1927 = vadd.f32 %v1734, %v1926
        %v1928 = vpop.f32.mrf.mxu0
        %v1929 = vadd.f32 %v1736, %v1928
        %v1930 = vpop.f32.mrf.mxu0
        %v1931 = vadd.f32 %v1738, %v1930
        %1932 = vmatprep.mubr.bf16.mxu0 0
        %1933 = vmatmul.mubr.bf16.gmra.mxu0 %v673
        %v1934 = vpop.f32.mrf.mxu0
        %v1935 = vadd.f32 %v1742, %v1934
        %v1936 = vpop.f32.mrf.mxu0
        %v1937 = vadd.f32 %v1744, %v1936
        %v1938 = vpop.f32.mrf.mxu0
        %v1939 = vadd.f32 %v1746, %v1938
        %v1940 = vpop.f32.mrf.mxu0
        %v1941 = vadd.f32 %v1748, %v1940
        %1942 = vmatprep.mubr.bf16.mxu0 0
        %1943 = vmatmul.mubr.bf16.gmra.mxu0 %v676
        %v1944 = vpop.f32.mrf.mxu0
        %v1945 = vadd.f32 %v1752, %v1944
        %v1946 = vpop.f32.mrf.mxu0
        %v1947 = vadd.f32 %v1754, %v1946
        %v1948 = vpop.f32.mrf.mxu0
        %v1949 = vadd.f32 %v1756, %v1948
        %v1950 = vpop.f32.mrf.mxu0
        %v1951 = vadd.f32 %v1758, %v1950
        %1952 = vmatprep.mubr.bf16.mxu0 0
        %1953 = vmatmul.mubr.bf16.gmra.mxu0 %v679
        %v1954 = vpop.f32.mrf.mxu0
        %v1955 = vadd.f32 %v1762, %v1954
        %v1956 = vpop.f32.mrf.mxu0
        %v1957 = vadd.f32 %v1764, %v1956
        %v1958 = vpop.f32.mrf.mxu0
        %v1959 = vadd.f32 %v1766, %v1958
        %v1960 = vpop.f32.mrf.mxu0
        %v1961 = vadd.f32 %v1768, %v1960
        %1962 = vmatprep.mubr.bf16.mxu0 0
        %1963 = vmatmul.mubr.bf16.gmra.mxu0 %v682
        %v1964 = vpop.f32.mrf.mxu0
        %v1965 = vadd.f32 %v1772, %v1964
        %v1966 = vpop.f32.mrf.mxu0
        %v1967 = vadd.f32 %v1774, %v1966
        %v1968 = vpop.f32.mrf.mxu0
        %v1969 = vadd.f32 %v1776, %v1968
        %v1970 = vpop.f32.mrf.mxu0
        %v1971 = vadd.f32 %v1778, %v1970
        %1972 = vmatprep.mubr.bf16.mxu0 0
        %1973 = vmatmul.mubr.bf16.gmra.mxu0 %v685
        %v1974 = vpop.f32.mrf.mxu0
        %v1975 = vadd.f32 %v1782, %v1974
        %v1976 = vpop.f32.mrf.mxu0
        %v1977 = vadd.f32 %v1784, %v1976
        %v1978 = vpop.f32.mrf.mxu0
        %v1979 = vadd.f32 %v1786, %v1978
        %v1980 = vpop.f32.mrf.mxu0
        %v1981 = vadd.f32 %v1788, %v1980
        %1982 = vmatprep.mubr.bf16.mxu0 0
        %1983 = vmatmul.mubr.bf16.gmra.mxu0 %v688
        %v1984 = vpop.f32.mrf.mxu0
        %v1985 = vadd.f32 %v1792, %v1984
        %v1986 = vpop.f32.mrf.mxu0
        %v1987 = vadd.f32 %v1794, %v1986
        %v1988 = vpop.f32.mrf.mxu0
        %v1989 = vadd.f32 %v1796, %v1988
        %v1990 = vpop.f32.mrf.mxu0
        %v1991 = vadd.f32 %v1798, %v1990
        %1992 = vmatprep.mubr.bf16.mxu0 0
        %1993 = vmatmul.mubr.bf16.gmra.mxu0 %v691
        %v1994 = vpop.f32.mrf.mxu0
        %v1995 = vadd.f32 %v1802, %v1994
        %v1996 = vpop.f32.mrf.mxu0
        %v1997 = vadd.f32 %v1804, %v1996
        %v1998 = vpop.f32.mrf.mxu0
        %v1999 = vadd.f32 %v1806, %v1998
        %v2000 = vpop.f32.mrf.mxu0
        %v2001 = vadd.f32 %v1808, %v2000
        %2002 = vmatprep.mubr.bf16.mxu0 0
        %2003 = vmatmul.mubr.bf16.gmra.mxu0 %v694
        %v2004 = vpop.f32.mrf.mxu0
        %v2005 = vadd.f32 %v1812, %v2004
        %v2006 = vpop.f32.mrf.mxu0
        %v2007 = vadd.f32 %v1814, %v2006
        %v2008 = vpop.f32.mrf.mxu0
        %v2009 = vadd.f32 %v1816, %v2008
        %v2010 = vpop.f32.mrf.mxu0
        %v2011 = vadd.f32 %v1818, %v2010
        %2012 = vmatprep.mubr.bf16.mxu0 0
        %2013 = vmatmul.mubr.bf16.gmra.mxu0 %v697
        %v2014 = vpop.f32.mrf.mxu0
        %v2015 = vadd.f32 %v1822, %v2014
        %v2016 = vpop.f32.mrf.mxu0
        %v2017 = vadd.f32 %v1824, %v2016
        %v2018 = vpop.f32.mrf.mxu0
        %v2019 = vadd.f32 %v1826, %v2018
        %v2020 = vpop.f32.mrf.mxu0
        %v2021 = vadd.f32 %v1828, %v2020
        %2022 = vmatprep.mubr.bf16.mxu0 0
        %2023 = vmatmul.mubr.bf16.gmra.mxu0 %v700
        %v2024 = vpop.f32.mrf.mxu0
        %v2025 = vadd.f32 %v1832, %v2024
        %v2026 = vpop.f32.mrf.mxu0
        %v2027 = vadd.f32 %v1834, %v2026
        %v2028 = vpop.f32.mrf.mxu0
        %v2029 = vadd.f32 %v1836, %v2028
        %v2030 = vpop.f32.mrf.mxu0
        %v2031 = vadd.f32 %v1838, %v2030
        %2032 = vdwg.mxu0
        %v2033 = vld [vmem:[%s291] sm:$0xff]
        %v2034 = vld [vmem:[%s291 + $0x8] sm:$0xff]
        %v2035 = vld [vmem:[%s291 + $0x10] sm:$0xff]
        %v2036 = vld [vmem:[%s291 + $0x18] sm:$0xff]
        %v2037 = vld [vmem:[%s291 + $0x20] sm:$0xff]
        %v2038 = vld [vmem:[%s291 + $0x28] sm:$0xff]
        %v2039 = vld [vmem:[%s291 + $0x30] sm:$0xff]
        %v2040 = vld [vmem:[%s291 + $0x38] sm:$0xff]
        %v2041 = vld [vmem:[%s291 + $0x40] sm:$0xff]
        %v2042 = vld [vmem:[%s291 + $0x48] sm:$0xff]
        %v2043 = vld [vmem:[%s291 + $0x50] sm:$0xff]
        %v2044 = vld [vmem:[%s291 + $0x58] sm:$0xff]
        %v2045 = vld [vmem:[%s291 + $0x60] sm:$0xff]
        %v2046 = vld [vmem:[%s291 + $0x68] sm:$0xff]
        %v2047 = vld [vmem:[%s291 + $0x70] sm:$0xff]
        %v2048 = vld [vmem:[%s291 + $0x78] sm:$0xff]
        %v2049 = vld [vmem:[%s291 + $0x80] sm:$0xff]
        %v2050 = vld [vmem:[%s291 + $0x88] sm:$0xff]
        %v2051 = vld [vmem:[%s291 + $0x90] sm:$0xff]
        %v2052 = vld [vmem:[%s291 + $0x98] sm:$0xff]
        %v2053 = vld [vmem:[%s291 + $0xa0] sm:$0xff]
        %v2054 = vld [vmem:[%s291 + $0xa8] sm:$0xff]
        %v2055 = vld [vmem:[%s291 + $0xb0] sm:$0xff]
        %v2056 = vld [vmem:[%s291 + $0xb8] sm:$0xff]
        %v2057 = vld [vmem:[%s291 + $0xc0] sm:$0xff]
        %v2058 = vld [vmem:[%s291 + $0xc8] sm:$0xff]
        %v2059 = vld [vmem:[%s291 + $0xd0] sm:$0xff]
        %v2060 = vld [vmem:[%s291 + $0xd8] sm:$0xff]
        %v2061 = vld [vmem:[%s291 + $0xe0] sm:$0xff]
        %v2062 = vld [vmem:[%s291 + $0xe8] sm:$0xff]
        %v2063 = vld [vmem:[%s291 + $0xf0] sm:$0xff]
        %v2064 = vld [vmem:[%s291 + $0xf8] sm:$0xff]
        %v2065 = vld [vmem:[%s296] sm:$0xf]
        %2067 = vset.pattern.permute.xlu0 0
        %2068 = vperm.xlu0 %2067, %v2033
        %v2069 = vpop.permute.xlu0 %2068
        %2072 = vset.pattern.permute.xlu0 0
        %2073 = vperm.xlu0 %2072, %v2034
        %v2074 = vpop.permute.xlu0 %2073
        %2077 = vset.pattern.permute.xlu0 0
        %2078 = vperm.xlu0 %2077, %v2035
        %v2079 = vpop.permute.xlu0 %2078
        %2082 = vset.pattern.permute.xlu0 0
        %2083 = vperm.xlu0 %2082, %v2036
        %v2084 = vpop.permute.xlu0 %2083
        %2087 = vset.pattern.permute.xlu0 0
        %2088 = vperm.xlu0 %2087, %v2037
        %v2089 = vpop.permute.xlu0 %2088
        %2092 = vset.pattern.permute.xlu0 0
        %2093 = vperm.xlu0 %2092, %v2038
        %v2094 = vpop.permute.xlu0 %2093
        %2097 = vset.pattern.permute.xlu0 0
        %2098 = vperm.xlu0 %2097, %v2039
        %v2099 = vpop.permute.xlu0 %2098
        %2102 = vset.pattern.permute.xlu0 0
        %2103 = vperm.xlu0 %2102, %v2040
        %v2104 = vpop.permute.xlu0 %2103
        %2107 = vset.pattern.permute.xlu0 0
        %2108 = vperm.xlu0 %2107, %v2041
        %v2109 = vpop.permute.xlu0 %2108
        %2112 = vset.pattern.permute.xlu0 0
        %2113 = vperm.xlu0 %2112, %v2042
        %v2114 = vpop.permute.xlu0 %2113
        %2117 = vset.pattern.permute.xlu0 0
        %2118 = vperm.xlu0 %2117, %v2043
        %v2119 = vpop.permute.xlu0 %2118
        %2122 = vset.pattern.permute.xlu0 0
        %2123 = vperm.xlu0 %2122, %v2044
        %v2124 = vpop.permute.xlu0 %2123
        %2127 = vset.pattern.permute.xlu0 0
        %2128 = vperm.xlu0 %2127, %v2045
        %v2129 = vpop.permute.xlu0 %2128
        %2132 = vset.pattern.permute.xlu0 0
        %2133 = vperm.xlu0 %2132, %v2046
        %v2134 = vpop.permute.xlu0 %2133
        %2137 = vset.pattern.permute.xlu0 0
        %2138 = vperm.xlu0 %2137, %v2047
        %v2139 = vpop.permute.xlu0 %2138
        %2142 = vset.pattern.permute.xlu0 0
        %2143 = vperm.xlu0 %2142, %v2048
        %v2144 = vpop.permute.xlu0 %2143
        %2147 = vset.pattern.permute.xlu0 0
        %2148 = vperm.xlu0 %2147, %v2049
        %v2149 = vpop.permute.xlu0 %2148
        %2152 = vset.pattern.permute.xlu0 0
        %2153 = vperm.xlu0 %2152, %v2050
        %v2154 = vpop.permute.xlu0 %2153
        %2157 = vset.pattern.permute.xlu0 0
        %2158 = vperm.xlu0 %2157, %v2051
        %v2159 = vpop.permute.xlu0 %2158
        %2162 = vset.pattern.permute.xlu0 0
        %2163 = vperm.xlu0 %2162, %v2052
        %v2164 = vpop.permute.xlu0 %2163
        %2167 = vset.pattern.permute.xlu0 0
        %2168 = vperm.xlu0 %2167, %v2053
        %v2169 = vpop.permute.xlu0 %2168
        %2172 = vset.pattern.permute.xlu0 0
        %2173 = vperm.xlu0 %2172, %v2054
        %v2174 = vpop.permute.xlu0 %2173
        %2177 = vset.pattern.permute.xlu0 0
        %2178 = vperm.xlu0 %2177, %v2055
        %v2179 = vpop.permute.xlu0 %2178
        %2182 = vset.pattern.permute.xlu0 0
        %2183 = vperm.xlu0 %2182, %v2056
        %v2184 = vpop.permute.xlu0 %2183
        %2187 = vset.pattern.permute.xlu0 0
        %2188 = vperm.xlu0 %2187, %v2057
        %v2189 = vpop.permute.xlu0 %2188
        %2192 = vset.pattern.permute.xlu0 0
        %2193 = vperm.xlu0 %2192, %v2058
        %v2194 = vpop.permute.xlu0 %2193
        %2197 = vset.pattern.permute.xlu0 0
        %2198 = vperm.xlu0 %2197, %v2059
        %v2199 = vpop.permute.xlu0 %2198
        %2202 = vset.pattern.permute.xlu0 0
        %2203 = vperm.xlu0 %2202, %v2060
        %v2204 = vpop.permute.xlu0 %2203
        %2207 = vset.pattern.permute.xlu0 0
        %2208 = vperm.xlu0 %2207, %v2061
        %v2209 = vpop.permute.xlu0 %2208
        %2212 = vset.pattern.permute.xlu0 0
        %2213 = vperm.xlu0 %2212, %v2062
        %v2214 = vpop.permute.xlu0 %2213
        %2217 = vset.pattern.permute.xlu0 0
        %2218 = vperm.xlu0 %2217, %v2063
        %v2219 = vpop.permute.xlu0 %2218
        %2222 = vset.pattern.permute.xlu0 0
        %2223 = vperm.xlu0 %2222, %v2064
        %v2224 = vpop.permute.xlu0 %2223
        %v2227 = vlaneseq
        %v2228 = vshrl.u32 %v2227, 7
        %v2229 = vsub.s32 0, %v2228
        %v2230 = vrot.slane %v2065, %v2229
        %v2231 = vlaneseq
        %v2232 = vshrl.u32 %v2231, 7
        %v2233 = vsub.s32 1, %v2232
        %v2234 = vrot.slane %v2065, %v2233
        %v2235 = vlaneseq
        %v2236 = vshrl.u32 %v2235, 7
        %v2237 = vsub.s32 2, %v2236
        %v2238 = vrot.slane %v2065, %v2237
        %v2239 = vlaneseq
        %v2240 = vshrl.u32 %v2239, 7
        %v2241 = vsub.s32 3, %v2240
        %v2242 = vrot.slane %v2065, %v2241
        %v2247 = vadd.f32 %v2069, %v2230
        %v2248 = vadd.f32 %v2069, %v2234
        %v2249 = vadd.f32 %v2069, %v2238
        %v2250 = vadd.f32 %v2069, %v2242
        %v2251 = vadd.f32 %v2074, %v2230
        %v2252 = vadd.f32 %v2074, %v2234
        %v2253 = vadd.f32 %v2074, %v2238
        %v2254 = vadd.f32 %v2074, %v2242
        %v2255 = vadd.f32 %v2079, %v2230
        %v2256 = vadd.f32 %v2079, %v2234
        %v2257 = vadd.f32 %v2079, %v2238
        %v2258 = vadd.f32 %v2079, %v2242
        %v2259 = vadd.f32 %v2084, %v2230
        %v2260 = vadd.f32 %v2084, %v2234
        %v2261 = vadd.f32 %v2084, %v2238
        %v2262 = vadd.f32 %v2084, %v2242
        %v2263 = vadd.f32 %v2089, %v2230
        %v2264 = vadd.f32 %v2089, %v2234
        %v2265 = vadd.f32 %v2089, %v2238
        %v2266 = vadd.f32 %v2089, %v2242
        %v2267 = vadd.f32 %v2094, %v2230
        %v2268 = vadd.f32 %v2094, %v2234
        %v2269 = vadd.f32 %v2094, %v2238
        %v2270 = vadd.f32 %v2094, %v2242
        %v2271 = vadd.f32 %v2099, %v2230
        %v2272 = vadd.f32 %v2099, %v2234
        %v2273 = vadd.f32 %v2099, %v2238
        %v2274 = vadd.f32 %v2099, %v2242
        %v2275 = vadd.f32 %v2104, %v2230
        %v2276 = vadd.f32 %v2104, %v2234
        %v2277 = vadd.f32 %v2104, %v2238
        %v2278 = vadd.f32 %v2104, %v2242
        %v2279 = vadd.f32 %v2109, %v2230
        %v2280 = vadd.f32 %v2109, %v2234
        %v2281 = vadd.f32 %v2109, %v2238
        %v2282 = vadd.f32 %v2109, %v2242
        %v2283 = vadd.f32 %v2114, %v2230
        %v2284 = vadd.f32 %v2114, %v2234
        %v2285 = vadd.f32 %v2114, %v2238
        %v2286 = vadd.f32 %v2114, %v2242
        %v2287 = vadd.f32 %v2119, %v2230
        %v2288 = vadd.f32 %v2119, %v2234
        %v2289 = vadd.f32 %v2119, %v2238
        %v2290 = vadd.f32 %v2119, %v2242
        %v2291 = vadd.f32 %v2124, %v2230
        %v2292 = vadd.f32 %v2124, %v2234
        %v2293 = vadd.f32 %v2124, %v2238
        %v2294 = vadd.f32 %v2124, %v2242
        %v2295 = vadd.f32 %v2129, %v2230
        %v2296 = vadd.f32 %v2129, %v2234
        %v2297 = vadd.f32 %v2129, %v2238
        %v2298 = vadd.f32 %v2129, %v2242
        %v2299 = vadd.f32 %v2134, %v2230
        %v2300 = vadd.f32 %v2134, %v2234
        %v2301 = vadd.f32 %v2134, %v2238
        %v2302 = vadd.f32 %v2134, %v2242
        %v2303 = vadd.f32 %v2139, %v2230
        %v2304 = vadd.f32 %v2139, %v2234
        %v2305 = vadd.f32 %v2139, %v2238
        %v2306 = vadd.f32 %v2139, %v2242
        %v2307 = vadd.f32 %v2144, %v2230
        %v2308 = vadd.f32 %v2144, %v2234
        %v2309 = vadd.f32 %v2144, %v2238
        %v2310 = vadd.f32 %v2144, %v2242
        %v2311 = vadd.f32 %v2149, %v2230
        %v2312 = vadd.f32 %v2149, %v2234
        %v2313 = vadd.f32 %v2149, %v2238
        %v2314 = vadd.f32 %v2149, %v2242
        %v2315 = vadd.f32 %v2154, %v2230
        %v2316 = vadd.f32 %v2154, %v2234
        %v2317 = vadd.f32 %v2154, %v2238
        %v2318 = vadd.f32 %v2154, %v2242
        %v2319 = vadd.f32 %v2159, %v2230
        %v2320 = vadd.f32 %v2159, %v2234
        %v2321 = vadd.f32 %v2159, %v2238
        %v2322 = vadd.f32 %v2159, %v2242
        %v2323 = vadd.f32 %v2164, %v2230
        %v2324 = vadd.f32 %v2164, %v2234
        %v2325 = vadd.f32 %v2164, %v2238
        %v2326 = vadd.f32 %v2164, %v2242
        %v2327 = vadd.f32 %v2169, %v2230
        %v2328 = vadd.f32 %v2169, %v2234
        %v2329 = vadd.f32 %v2169, %v2238
        %v2330 = vadd.f32 %v2169, %v2242
        %v2331 = vadd.f32 %v2174, %v2230
        %v2332 = vadd.f32 %v2174, %v2234
        %v2333 = vadd.f32 %v2174, %v2238
        %v2334 = vadd.f32 %v2174, %v2242
        %v2335 = vadd.f32 %v2179, %v2230
        %v2336 = vadd.f32 %v2179, %v2234
        %v2337 = vadd.f32 %v2179, %v2238
        %v2338 = vadd.f32 %v2179, %v2242
        %v2339 = vadd.f32 %v2184, %v2230
        %v2340 = vadd.f32 %v2184, %v2234
        %v2341 = vadd.f32 %v2184, %v2238
        %v2342 = vadd.f32 %v2184, %v2242
        %v2343 = vadd.f32 %v2189, %v2230
        %v2344 = vadd.f32 %v2189, %v2234
        %v2345 = vadd.f32 %v2189, %v2238
        %v2346 = vadd.f32 %v2189, %v2242
        %v2347 = vadd.f32 %v2194, %v2230
        %v2348 = vadd.f32 %v2194, %v2234
        %v2349 = vadd.f32 %v2194, %v2238
        %v2350 = vadd.f32 %v2194, %v2242
        %v2351 = vadd.f32 %v2199, %v2230
        %v2352 = vadd.f32 %v2199, %v2234
        %v2353 = vadd.f32 %v2199, %v2238
        %v2354 = vadd.f32 %v2199, %v2242
        %v2355 = vadd.f32 %v2204, %v2230
        %v2356 = vadd.f32 %v2204, %v2234
        %v2357 = vadd.f32 %v2204, %v2238
        %v2358 = vadd.f32 %v2204, %v2242
        %v2359 = vadd.f32 %v2209, %v2230
        %v2360 = vadd.f32 %v2209, %v2234
        %v2361 = vadd.f32 %v2209, %v2238
        %v2362 = vadd.f32 %v2209, %v2242
        %v2363 = vadd.f32 %v2214, %v2230
        %v2364 = vadd.f32 %v2214, %v2234
        %v2365 = vadd.f32 %v2214, %v2238
        %v2366 = vadd.f32 %v2214, %v2242
        %v2367 = vadd.f32 %v2219, %v2230
        %v2368 = vadd.f32 %v2219, %v2234
        %v2369 = vadd.f32 %v2219, %v2238
        %v2370 = vadd.f32 %v2219, %v2242
        %v2371 = vadd.f32 %v2224, %v2230
        %v2372 = vadd.f32 %v2224, %v2234
        %v2373 = vadd.f32 %v2224, %v2238
        %v2374 = vadd.f32 %v2224, %v2242
        %v2375 = vadd.f32 %v2247, %v1489
        %v2376 = vadd.f32 %v2248, %v1491
        %v2377 = vadd.f32 %v2249, %v1875
        %v2378 = vadd.f32 %v2250, %v1877
        %v2379 = vadd.f32 %v2251, %v1493
        %v2380 = vadd.f32 %v2252, %v1495
        %v2381 = vadd.f32 %v2253, %v1879
        %v2382 = vadd.f32 %v2254, %v1881
        %v2383 = vadd.f32 %v2255, %v1499
        %v2384 = vadd.f32 %v2256, %v1501
        %v2385 = vadd.f32 %v2257, %v1885
        %v2386 = vadd.f32 %v2258, %v1887
        %v2387 = vadd.f32 %v2259, %v1503
        %v2388 = vadd.f32 %v2260, %v1505
        %v2389 = vadd.f32 %v2261, %v1889
        %v2390 = vadd.f32 %v2262, %v1891
        %v2391 = vadd.f32 %v2263, %v1509
        %v2392 = vadd.f32 %v2264, %v1511
        %v2393 = vadd.f32 %v2265, %v1895
        %v2394 = vadd.f32 %v2266, %v1897
        %v2395 = vadd.f32 %v2267, %v1513
        %v2396 = vadd.f32 %v2268, %v1515
        %v2397 = vadd.f32 %v2269, %v1899
        %v2398 = vadd.f32 %v2270, %v1901
        %v2399 = vadd.f32 %v2271, %v1519
        %v2400 = vadd.f32 %v2272, %v1521
        %v2401 = vadd.f32 %v2273, %v1905
        %v2402 = vadd.f32 %v2274, %v1907
        %v2403 = vadd.f32 %v2275, %v1523
        %v2404 = vadd.f32 %v2276, %v1525
        %v2405 = vadd.f32 %v2277, %v1909
        %v2406 = vadd.f32 %v2278, %v1911
        %v2407 = vadd.f32 %v2279, %v1529
        %v2408 = vadd.f32 %v2280, %v1531
        %v2409 = vadd.f32 %v2281, %v1915
        %v2410 = vadd.f32 %v2282, %v1917
        %v2411 = vadd.f32 %v2283, %v1533
        %v2412 = vadd.f32 %v2284, %v1535
        %v2413 = vadd.f32 %v2285, %v1919
        %v2414 = vadd.f32 %v2286, %v1921
        %v2415 = vadd.f32 %v2287, %v1539
        %v2416 = vadd.f32 %v2288, %v1541
        %v2417 = vadd.f32 %v2289, %v1925
        %v2418 = vadd.f32 %v2290, %v1927
        %v2419 = vadd.f32 %v2291, %v1543
        %v2420 = vadd.f32 %v2292, %v1545
        %v2421 = vadd.f32 %v2293, %v1929
        %v2422 = vadd.f32 %v2294, %v1931
        %v2423 = vadd.f32 %v2295, %v1549
        %v2424 = vadd.f32 %v2296, %v1551
        %v2425 = vadd.f32 %v2297, %v1935
        %v2426 = vadd.f32 %v2298, %v1937
        %v2427 = vadd.f32 %v2299, %v1553
        %v2428 = vadd.f32 %v2300, %v1555
        %v2429 = vadd.f32 %v2301, %v1939
        %v2430 = vadd.f32 %v2302, %v1941
        %v2431 = vadd.f32 %v2303, %v1559
        %v2432 = vadd.f32 %v2304, %v1561
        %v2433 = vadd.f32 %v2305, %v1945
        %v2434 = vadd.f32 %v2306, %v1947
        %v2435 = vadd.f32 %v2307, %v1563
        %v2436 = vadd.f32 %v2308, %v1565
        %v2437 = vadd.f32 %v2309, %v1949
        %v2438 = vadd.f32 %v2310, %v1951
        %v2439 = vadd.f32 %v2311, %v1569
        %v2440 = vadd.f32 %v2312, %v1571
        %v2441 = vadd.f32 %v2313, %v1955
        %v2442 = vadd.f32 %v2314, %v1957
        %v2443 = vadd.f32 %v2315, %v1573
        %v2444 = vadd.f32 %v2316, %v1575
        %v2445 = vadd.f32 %v2317, %v1959
        %v2446 = vadd.f32 %v2318, %v1961
        %v2447 = vadd.f32 %v2319, %v1579
        %v2448 = vadd.f32 %v2320, %v1581
        %v2449 = vadd.f32 %v2321, %v1965
        %v2450 = vadd.f32 %v2322, %v1967
        %v2451 = vadd.f32 %v2323, %v1583
        %v2452 = vadd.f32 %v2324, %v1585
        %v2453 = vadd.f32 %v2325, %v1969
        %v2454 = vadd.f32 %v2326, %v1971
        %v2455 = vadd.f32 %v2327, %v1589
        %v2456 = vadd.f32 %v2328, %v1591
        %v2457 = vadd.f32 %v2329, %v1975
        %v2458 = vadd.f32 %v2330, %v1977
        %v2459 = vadd.f32 %v2331, %v1593
        %v2460 = vadd.f32 %v2332, %v1595
        %v2461 = vadd.f32 %v2333, %v1979
        %v2462 = vadd.f32 %v2334, %v1981
        %v2463 = vadd.f32 %v2335, %v1599
        %v2464 = vadd.f32 %v2336, %v1601
        %v2465 = vadd.f32 %v2337, %v1985
        %v2466 = vadd.f32 %v2338, %v1987
        %v2467 = vadd.f32 %v2339, %v1603
        %v2468 = vadd.f32 %v2340, %v1605
        %v2469 = vadd.f32 %v2341, %v1989
        %v2470 = vadd.f32 %v2342, %v1991
        %v2471 = vadd.f32 %v2343, %v1609
        %v2472 = vadd.f32 %v2344, %v1611
        %v2473 = vadd.f32 %v2345, %v1995
        %v2474 = vadd.f32 %v2346, %v1997
        %v2475 = vadd.f32 %v2347, %v1613
        %v2476 = vadd.f32 %v2348, %v1615
        %v2477 = vadd.f32 %v2349, %v1999
        %v2478 = vadd.f32 %v2350, %v2001
        %v2479 = vadd.f32 %v2351, %v1619
        %v2480 = vadd.f32 %v2352, %v1621
        %v2481 = vadd.f32 %v2353, %v2005
        %v2482 = vadd.f32 %v2354, %v2007
        %v2483 = vadd.f32 %v2355, %v1623
        %v2484 = vadd.f32 %v2356, %v1625
        %v2485 = vadd.f32 %v2357, %v2009
        %v2486 = vadd.f32 %v2358, %v2011
        %v2487 = vadd.f32 %v2359, %v1629
        %v2488 = vadd.f32 %v2360, %v1631
        %v2489 = vadd.f32 %v2361, %v2015
        %v2490 = vadd.f32 %v2362, %v2017
        %v2491 = vadd.f32 %v2363, %v1633
        %v2492 = vadd.f32 %v2364, %v1635
        %v2493 = vadd.f32 %v2365, %v2019
        %v2494 = vadd.f32 %v2366, %v2021
        %v2495 = vadd.f32 %v2367, %v1639
        %v2496 = vadd.f32 %v2368, %v1641
        %v2497 = vadd.f32 %v2369, %v2025
        %v2498 = vadd.f32 %v2370, %v2027
        %v2499 = vadd.f32 %v2371, %v1643
        %v2500 = vadd.f32 %v2372, %v1645
        %v2501 = vadd.f32 %v2373, %v2029
        %v2502 = vadd.f32 %v2374, %v2031
        %v2503 = vmax.f32 %v2375, 0.0
        %v2504 = vmax.f32 %v2376, 0.0
        %v2505 = vmax.f32 %v2377, 0.0
        %v2506 = vmax.f32 %v2378, 0.0
        %v2507 = vmax.f32 %v2379, 0.0
        %v2508 = vmax.f32 %v2380, 0.0
        %v2509 = vmax.f32 %v2381, 0.0
        %v2510 = vmax.f32 %v2382, 0.0
        %v2511 = vmax.f32 %v2383, 0.0
        %v2512 = vmax.f32 %v2384, 0.0
        %v2513 = vmax.f32 %v2385, 0.0
        %v2514 = vmax.f32 %v2386, 0.0
        %v2515 = vmax.f32 %v2387, 0.0
        %v2516 = vmax.f32 %v2388, 0.0
        %v2517 = vmax.f32 %v2389, 0.0
        %v2518 = vmax.f32 %v2390, 0.0
        %v2519 = vmax.f32 %v2391, 0.0
        %v2520 = vmax.f32 %v2392, 0.0
        %v2521 = vmax.f32 %v2393, 0.0
        %v2522 = vmax.f32 %v2394, 0.0
        %v2523 = vmax.f32 %v2395, 0.0
        %v2524 = vmax.f32 %v2396, 0.0
        %v2525 = vmax.f32 %v2397, 0.0
        %v2526 = vmax.f32 %v2398, 0.0
        %v2527 = vmax.f32 %v2399, 0.0
        %v2528 = vmax.f32 %v2400, 0.0
        %v2529 = vmax.f32 %v2401, 0.0
        %v2530 = vmax.f32 %v2402, 0.0
        %v2531 = vmax.f32 %v2403, 0.0
        %v2532 = vmax.f32 %v2404, 0.0
        %v2533 = vmax.f32 %v2405, 0.0
        %v2534 = vmax.f32 %v2406, 0.0
        %v2535 = vmax.f32 %v2407, 0.0
        %v2536 = vmax.f32 %v2408, 0.0
        %v2537 = vmax.f32 %v2409, 0.0
        %v2538 = vmax.f32 %v2410, 0.0
        %v2539 = vmax.f32 %v2411, 0.0
        %v2540 = vmax.f32 %v2412, 0.0
        %v2541 = vmax.f32 %v2413, 0.0
        %v2542 = vmax.f32 %v2414, 0.0
        %v2543 = vmax.f32 %v2415, 0.0
        %v2544 = vmax.f32 %v2416, 0.0
        %v2545 = vmax.f32 %v2417, 0.0
        %v2546 = vmax.f32 %v2418, 0.0
        %v2547 = vmax.f32 %v2419, 0.0
        %v2548 = vmax.f32 %v2420, 0.0
        %v2549 = vmax.f32 %v2421, 0.0
        %v2550 = vmax.f32 %v2422, 0.0
        %v2551 = vmax.f32 %v2423, 0.0
        %v2552 = vmax.f32 %v2424, 0.0
        %v2553 = vmax.f32 %v2425, 0.0
        %v2554 = vmax.f32 %v2426, 0.0
        %v2555 = vmax.f32 %v2427, 0.0
        %v2556 = vmax.f32 %v2428, 0.0
        %v2557 = vmax.f32 %v2429, 0.0
        %v2558 = vmax.f32 %v2430, 0.0
        %v2559 = vmax.f32 %v2431, 0.0
        %v2560 = vmax.f32 %v2432, 0.0
        %v2561 = vmax.f32 %v2433, 0.0
        %v2562 = vmax.f32 %v2434, 0.0
        %v2563 = vmax.f32 %v2435, 0.0
        %v2564 = vmax.f32 %v2436, 0.0
        %v2565 = vmax.f32 %v2437, 0.0
        %v2566 = vmax.f32 %v2438, 0.0
        %v2567 = vmax.f32 %v2439, 0.0
        %v2568 = vmax.f32 %v2440, 0.0
        %v2569 = vmax.f32 %v2441, 0.0
        %v2570 = vmax.f32 %v2442, 0.0
        %v2571 = vmax.f32 %v2443, 0.0
        %v2572 = vmax.f32 %v2444, 0.0
        %v2573 = vmax.f32 %v2445, 0.0
        %v2574 = vmax.f32 %v2446, 0.0
        %v2575 = vmax.f32 %v2447, 0.0
        %v2576 = vmax.f32 %v2448, 0.0
        %v2577 = vmax.f32 %v2449, 0.0
        %v2578 = vmax.f32 %v2450, 0.0
        %v2579 = vmax.f32 %v2451, 0.0
        %v2580 = vmax.f32 %v2452, 0.0
        %v2581 = vmax.f32 %v2453, 0.0
        %v2582 = vmax.f32 %v2454, 0.0
        %v2583 = vmax.f32 %v2455, 0.0
        %v2584 = vmax.f32 %v2456, 0.0
        %v2585 = vmax.f32 %v2457, 0.0
        %v2586 = vmax.f32 %v2458, 0.0
        %v2587 = vmax.f32 %v2459, 0.0
        %v2588 = vmax.f32 %v2460, 0.0
        %v2589 = vmax.f32 %v2461, 0.0
        %v2590 = vmax.f32 %v2462, 0.0
        %v2591 = vmax.f32 %v2463, 0.0
        %v2592 = vmax.f32 %v2464, 0.0
        %v2593 = vmax.f32 %v2465, 0.0
        %v2594 = vmax.f32 %v2466, 0.0
        %v2595 = vmax.f32 %v2467, 0.0
        %v2596 = vmax.f32 %v2468, 0.0
        %v2597 = vmax.f32 %v2469, 0.0
        %v2598 = vmax.f32 %v2470, 0.0
        %v2599 = vmax.f32 %v2471, 0.0
        %v2600 = vmax.f32 %v2472, 0.0
        %v2601 = vmax.f32 %v2473, 0.0
        %v2602 = vmax.f32 %v2474, 0.0
        %v2603 = vmax.f32 %v2475, 0.0
        %v2604 = vmax.f32 %v2476, 0.0
        %v2605 = vmax.f32 %v2477, 0.0
        %v2606 = vmax.f32 %v2478, 0.0
        %v2607 = vmax.f32 %v2479, 0.0
        %v2608 = vmax.f32 %v2480, 0.0
        %v2609 = vmax.f32 %v2481, 0.0
        %v2610 = vmax.f32 %v2482, 0.0
        %v2611 = vmax.f32 %v2483, 0.0
        %v2612 = vmax.f32 %v2484, 0.0
        %v2613 = vmax.f32 %v2485, 0.0
        %v2614 = vmax.f32 %v2486, 0.0
        %v2615 = vmax.f32 %v2487, 0.0
        %v2616 = vmax.f32 %v2488, 0.0
        %v2617 = vmax.f32 %v2489, 0.0
        %v2618 = vmax.f32 %v2490, 0.0
        %v2619 = vmax.f32 %v2491, 0.0
        %v2620 = vmax.f32 %v2492, 0.0
        %v2621 = vmax.f32 %v2493, 0.0
        %v2622 = vmax.f32 %v2494, 0.0
        %v2623 = vmax.f32 %v2495, 0.0
        %v2624 = vmax.f32 %v2496, 0.0
        %v2625 = vmax.f32 %v2497, 0.0
        %v2626 = vmax.f32 %v2498, 0.0
        %v2627 = vmax.f32 %v2499, 0.0
        %v2628 = vmax.f32 %v2500, 0.0
        %v2629 = vmax.f32 %v2501, 0.0
        %v2630 = vmax.f32 %v2502, 0.0
        %v2631 = vrsqrt.pop %v2503
        %v2632 = vmul.f32 %v2503, %v2631
        %vm2633 = vcmp.eq.f32.partialorder %v2503, inf
        %v2634 = vsel %vm2633, %v2503, %v2632
        %vm2635 = vcmp.eq.f32.partialorder %v2503, 0.0
        %v2636 = vand.u32 %v2503, 2147483648
        %v2637 = vsel %vm2635, %v2636, %v2634
        %v2638 = vrsqrt.pop %v2504
        %v2639 = vmul.f32 %v2504, %v2638
        %vm2640 = vcmp.eq.f32.partialorder %v2504, inf
        %v2641 = vsel %vm2640, %v2504, %v2639
        %vm2642 = vcmp.eq.f32.partialorder %v2504, 0.0
        %v2643 = vand.u32 %v2504, 2147483648
        %v2644 = vsel %vm2642, %v2643, %v2641
        %v2645 = vrsqrt.pop %v2505
        %v2646 = vmul.f32 %v2505, %v2645
        %vm2647 = vcmp.eq.f32.partialorder %v2505, inf
        %v2648 = vsel %vm2647, %v2505, %v2646
        %vm2649 = vcmp.eq.f32.partialorder %v2505, 0.0
        %v2650 = vand.u32 %v2505, 2147483648
        %v2651 = vsel %vm2649, %v2650, %v2648
        %v2652 = vrsqrt.pop %v2506
        %v2653 = vmul.f32 %v2506, %v2652
        %vm2654 = vcmp.eq.f32.partialorder %v2506, inf
        %v2655 = vsel %vm2654, %v2506, %v2653
        %vm2656 = vcmp.eq.f32.partialorder %v2506, 0.0
        %v2657 = vand.u32 %v2506, 2147483648
        %v2658 = vsel %vm2656, %v2657, %v2655
        %v2659 = vrsqrt.pop %v2507
        %v2660 = vmul.f32 %v2507, %v2659
        %vm2661 = vcmp.eq.f32.partialorder %v2507, inf
        %v2662 = vsel %vm2661, %v2507, %v2660
        %vm2663 = vcmp.eq.f32.partialorder %v2507, 0.0
        %v2664 = vand.u32 %v2507, 2147483648
        %v2665 = vsel %vm2663, %v2664, %v2662
        %v2666 = vrsqrt.pop %v2508
        %v2667 = vmul.f32 %v2508, %v2666
        %vm2668 = vcmp.eq.f32.partialorder %v2508, inf
        %v2669 = vsel %vm2668, %v2508, %v2667
        %vm2670 = vcmp.eq.f32.partialorder %v2508, 0.0
        %v2671 = vand.u32 %v2508, 2147483648
        %v2672 = vsel %vm2670, %v2671, %v2669
        %v2673 = vrsqrt.pop %v2509
        %v2674 = vmul.f32 %v2509, %v2673
        %vm2675 = vcmp.eq.f32.partialorder %v2509, inf
        %v2676 = vsel %vm2675, %v2509, %v2674
        %vm2677 = vcmp.eq.f32.partialorder %v2509, 0.0
        %v2678 = vand.u32 %v2509, 2147483648
        %v2679 = vsel %vm2677, %v2678, %v2676
        %v2680 = vrsqrt.pop %v2510
        %v2681 = vmul.f32 %v2510, %v2680
        %vm2682 = vcmp.eq.f32.partialorder %v2510, inf
        %v2683 = vsel %vm2682, %v2510, %v2681
        %vm2684 = vcmp.eq.f32.partialorder %v2510, 0.0
        %v2685 = vand.u32 %v2510, 2147483648
        %v2686 = vsel %vm2684, %v2685, %v2683
        %v2687 = vrsqrt.pop %v2511
        %v2688 = vmul.f32 %v2511, %v2687
        %vm2689 = vcmp.eq.f32.partialorder %v2511, inf
        %v2690 = vsel %vm2689, %v2511, %v2688
        %vm2691 = vcmp.eq.f32.partialorder %v2511, 0.0
        %v2692 = vand.u32 %v2511, 2147483648
        %v2693 = vsel %vm2691, %v2692, %v2690
        %v2694 = vrsqrt.pop %v2512
        %v2695 = vmul.f32 %v2512, %v2694
        %vm2696 = vcmp.eq.f32.partialorder %v2512, inf
        %v2697 = vsel %vm2696, %v2512, %v2695
        %vm2698 = vcmp.eq.f32.partialorder %v2512, 0.0
        %v2699 = vand.u32 %v2512, 2147483648
        %v2700 = vsel %vm2698, %v2699, %v2697
        %v2701 = vrsqrt.pop %v2513
        %v2702 = vmul.f32 %v2513, %v2701
        %vm2703 = vcmp.eq.f32.partialorder %v2513, inf
        %v2704 = vsel %vm2703, %v2513, %v2702
        %vm2705 = vcmp.eq.f32.partialorder %v2513, 0.0
        %v2706 = vand.u32 %v2513, 2147483648
        %v2707 = vsel %vm2705, %v2706, %v2704
        %v2708 = vrsqrt.pop %v2514
        %v2709 = vmul.f32 %v2514, %v2708
        %vm2710 = vcmp.eq.f32.partialorder %v2514, inf
        %v2711 = vsel %vm2710, %v2514, %v2709
        %vm2712 = vcmp.eq.f32.partialorder %v2514, 0.0
        %v2713 = vand.u32 %v2514, 2147483648
        %v2714 = vsel %vm2712, %v2713, %v2711
        %v2715 = vrsqrt.pop %v2515
        %v2716 = vmul.f32 %v2515, %v2715
        %vm2717 = vcmp.eq.f32.partialorder %v2515, inf
        %v2718 = vsel %vm2717, %v2515, %v2716
        %vm2719 = vcmp.eq.f32.partialorder %v2515, 0.0
        %v2720 = vand.u32 %v2515, 2147483648
        %v2721 = vsel %vm2719, %v2720, %v2718
        %v2722 = vrsqrt.pop %v2516
        %v2723 = vmul.f32 %v2516, %v2722
        %vm2724 = vcmp.eq.f32.partialorder %v2516, inf
        %v2725 = vsel %vm2724, %v2516, %v2723
        %vm2726 = vcmp.eq.f32.partialorder %v2516, 0.0
        %v2727 = vand.u32 %v2516, 2147483648
        %v2728 = vsel %vm2726, %v2727, %v2725
        %v2729 = vrsqrt.pop %v2517
        %v2730 = vmul.f32 %v2517, %v2729
        %vm2731 = vcmp.eq.f32.partialorder %v2517, inf
        %v2732 = vsel %vm2731, %v2517, %v2730
        %vm2733 = vcmp.eq.f32.partialorder %v2517, 0.0
        %v2734 = vand.u32 %v2517, 2147483648
        %v2735 = vsel %vm2733, %v2734, %v2732
        %v2736 = vrsqrt.pop %v2518
        %v2737 = vmul.f32 %v2518, %v2736
        %vm2738 = vcmp.eq.f32.partialorder %v2518, inf
        %v2739 = vsel %vm2738, %v2518, %v2737
        %vm2740 = vcmp.eq.f32.partialorder %v2518, 0.0
        %v2741 = vand.u32 %v2518, 2147483648
        %v2742 = vsel %vm2740, %v2741, %v2739
        %v2743 = vrsqrt.pop %v2519
        %v2744 = vmul.f32 %v2519, %v2743
        %vm2745 = vcmp.eq.f32.partialorder %v2519, inf
        %v2746 = vsel %vm2745, %v2519, %v2744
        %vm2747 = vcmp.eq.f32.partialorder %v2519, 0.0
        %v2748 = vand.u32 %v2519, 2147483648
        %v2749 = vsel %vm2747, %v2748, %v2746
        %v2750 = vrsqrt.pop %v2520
        %v2751 = vmul.f32 %v2520, %v2750
        %vm2752 = vcmp.eq.f32.partialorder %v2520, inf
        %v2753 = vsel %vm2752, %v2520, %v2751
        %vm2754 = vcmp.eq.f32.partialorder %v2520, 0.0
        %v2755 = vand.u32 %v2520, 2147483648
        %v2756 = vsel %vm2754, %v2755, %v2753
        %v2757 = vrsqrt.pop %v2521
        %v2758 = vmul.f32 %v2521, %v2757
        %vm2759 = vcmp.eq.f32.partialorder %v2521, inf
        %v2760 = vsel %vm2759, %v2521, %v2758
        %vm2761 = vcmp.eq.f32.partialorder %v2521, 0.0
        %v2762 = vand.u32 %v2521, 2147483648
        %v2763 = vsel %vm2761, %v2762, %v2760
        %v2764 = vrsqrt.pop %v2522
        %v2765 = vmul.f32 %v2522, %v2764
        %vm2766 = vcmp.eq.f32.partialorder %v2522, inf
        %v2767 = vsel %vm2766, %v2522, %v2765
        %vm2768 = vcmp.eq.f32.partialorder %v2522, 0.0
        %v2769 = vand.u32 %v2522, 2147483648
        %v2770 = vsel %vm2768, %v2769, %v2767
        %v2771 = vrsqrt.pop %v2523
        %v2772 = vmul.f32 %v2523, %v2771
        %vm2773 = vcmp.eq.f32.partialorder %v2523, inf
        %v2774 = vsel %vm2773, %v2523, %v2772
        %vm2775 = vcmp.eq.f32.partialorder %v2523, 0.0
        %v2776 = vand.u32 %v2523, 2147483648
        %v2777 = vsel %vm2775, %v2776, %v2774
        %v2778 = vrsqrt.pop %v2524
        %v2779 = vmul.f32 %v2524, %v2778
        %vm2780 = vcmp.eq.f32.partialorder %v2524, inf
        %v2781 = vsel %vm2780, %v2524, %v2779
        %vm2782 = vcmp.eq.f32.partialorder %v2524, 0.0
        %v2783 = vand.u32 %v2524, 2147483648
        %v2784 = vsel %vm2782, %v2783, %v2781
        %v2785 = vrsqrt.pop %v2525
        %v2786 = vmul.f32 %v2525, %v2785
        %vm2787 = vcmp.eq.f32.partialorder %v2525, inf
        %v2788 = vsel %vm2787, %v2525, %v2786
        %vm2789 = vcmp.eq.f32.partialorder %v2525, 0.0
        %v2790 = vand.u32 %v2525, 2147483648
        %v2791 = vsel %vm2789, %v2790, %v2788
        %v2792 = vrsqrt.pop %v2526
        %v2793 = vmul.f32 %v2526, %v2792
        %vm2794 = vcmp.eq.f32.partialorder %v2526, inf
        %v2795 = vsel %vm2794, %v2526, %v2793
        %vm2796 = vcmp.eq.f32.partialorder %v2526, 0.0
        %v2797 = vand.u32 %v2526, 2147483648
        %v2798 = vsel %vm2796, %v2797, %v2795
        %v2799 = vrsqrt.pop %v2527
        %v2800 = vmul.f32 %v2527, %v2799
        %vm2801 = vcmp.eq.f32.partialorder %v2527, inf
        %v2802 = vsel %vm2801, %v2527, %v2800
        %vm2803 = vcmp.eq.f32.partialorder %v2527, 0.0
        %v2804 = vand.u32 %v2527, 2147483648
        %v2805 = vsel %vm2803, %v2804, %v2802
        %v2806 = vrsqrt.pop %v2528
        %v2807 = vmul.f32 %v2528, %v2806
        %vm2808 = vcmp.eq.f32.partialorder %v2528, inf
        %v2809 = vsel %vm2808, %v2528, %v2807
        %vm2810 = vcmp.eq.f32.partialorder %v2528, 0.0
        %v2811 = vand.u32 %v2528, 2147483648
        %v2812 = vsel %vm2810, %v2811, %v2809
        %v2813 = vrsqrt.pop %v2529
        %v2814 = vmul.f32 %v2529, %v2813
        %vm2815 = vcmp.eq.f32.partialorder %v2529, inf
        %v2816 = vsel %vm2815, %v2529, %v2814
        %vm2817 = vcmp.eq.f32.partialorder %v2529, 0.0
        %v2818 = vand.u32 %v2529, 2147483648
        %v2819 = vsel %vm2817, %v2818, %v2816
        %v2820 = vrsqrt.pop %v2530
        %v2821 = vmul.f32 %v2530, %v2820
        %vm2822 = vcmp.eq.f32.partialorder %v2530, inf
        %v2823 = vsel %vm2822, %v2530, %v2821
        %vm2824 = vcmp.eq.f32.partialorder %v2530, 0.0
        %v2825 = vand.u32 %v2530, 2147483648
        %v2826 = vsel %vm2824, %v2825, %v2823
        %v2827 = vrsqrt.pop %v2531
        %v2828 = vmul.f32 %v2531, %v2827
        %vm2829 = vcmp.eq.f32.partialorder %v2531, inf
        %v2830 = vsel %vm2829, %v2531, %v2828
        %vm2831 = vcmp.eq.f32.partialorder %v2531, 0.0
        %v2832 = vand.u32 %v2531, 2147483648
        %v2833 = vsel %vm2831, %v2832, %v2830
        %v2834 = vrsqrt.pop %v2532
        %v2835 = vmul.f32 %v2532, %v2834
        %vm2836 = vcmp.eq.f32.partialorder %v2532, inf
        %v2837 = vsel %vm2836, %v2532, %v2835
        %vm2838 = vcmp.eq.f32.partialorder %v2532, 0.0
        %v2839 = vand.u32 %v2532, 2147483648
        %v2840 = vsel %vm2838, %v2839, %v2837
        %v2841 = vrsqrt.pop %v2533
        %v2842 = vmul.f32 %v2533, %v2841
        %vm2843 = vcmp.eq.f32.partialorder %v2533, inf
        %v2844 = vsel %vm2843, %v2533, %v2842
        %vm2845 = vcmp.eq.f32.partialorder %v2533, 0.0
        %v2846 = vand.u32 %v2533, 2147483648
        %v2847 = vsel %vm2845, %v2846, %v2844
        %v2848 = vrsqrt.pop %v2534
        %v2849 = vmul.f32 %v2534, %v2848
        %vm2850 = vcmp.eq.f32.partialorder %v2534, inf
        %v2851 = vsel %vm2850, %v2534, %v2849
        %vm2852 = vcmp.eq.f32.partialorder %v2534, 0.0
        %v2853 = vand.u32 %v2534, 2147483648
        %v2854 = vsel %vm2852, %v2853, %v2851
        %v2855 = vrsqrt.pop %v2535
        %v2856 = vmul.f32 %v2535, %v2855
        %vm2857 = vcmp.eq.f32.partialorder %v2535, inf
        %v2858 = vsel %vm2857, %v2535, %v2856
        %vm2859 = vcmp.eq.f32.partialorder %v2535, 0.0
        %v2860 = vand.u32 %v2535, 2147483648
        %v2861 = vsel %vm2859, %v2860, %v2858
        %v2862 = vrsqrt.pop %v2536
        %v2863 = vmul.f32 %v2536, %v2862
        %vm2864 = vcmp.eq.f32.partialorder %v2536, inf
        %v2865 = vsel %vm2864, %v2536, %v2863
        %vm2866 = vcmp.eq.f32.partialorder %v2536, 0.0
        %v2867 = vand.u32 %v2536, 2147483648
        %v2868 = vsel %vm2866, %v2867, %v2865
        %v2869 = vrsqrt.pop %v2537
        %v2870 = vmul.f32 %v2537, %v2869
        %vm2871 = vcmp.eq.f32.partialorder %v2537, inf
        %v2872 = vsel %vm2871, %v2537, %v2870
        %vm2873 = vcmp.eq.f32.partialorder %v2537, 0.0
        %v2874 = vand.u32 %v2537, 2147483648
        %v2875 = vsel %vm2873, %v2874, %v2872
        %v2876 = vrsqrt.pop %v2538
        %v2877 = vmul.f32 %v2538, %v2876
        %vm2878 = vcmp.eq.f32.partialorder %v2538, inf
        %v2879 = vsel %vm2878, %v2538, %v2877
        %vm2880 = vcmp.eq.f32.partialorder %v2538, 0.0
        %v2881 = vand.u32 %v2538, 2147483648
        %v2882 = vsel %vm2880, %v2881, %v2879
        %v2883 = vrsqrt.pop %v2539
        %v2884 = vmul.f32 %v2539, %v2883
        %vm2885 = vcmp.eq.f32.partialorder %v2539, inf
        %v2886 = vsel %vm2885, %v2539, %v2884
        %vm2887 = vcmp.eq.f32.partialorder %v2539, 0.0
        %v2888 = vand.u32 %v2539, 2147483648
        %v2889 = vsel %vm2887, %v2888, %v2886
        %v2890 = vrsqrt.pop %v2540
        %v2891 = vmul.f32 %v2540, %v2890
        %vm2892 = vcmp.eq.f32.partialorder %v2540, inf
        %v2893 = vsel %vm2892, %v2540, %v2891
        %vm2894 = vcmp.eq.f32.partialorder %v2540, 0.0
        %v2895 = vand.u32 %v2540, 2147483648
        %v2896 = vsel %vm2894, %v2895, %v2893
        %v2897 = vrsqrt.pop %v2541
        %v2898 = vmul.f32 %v2541, %v2897
        %vm2899 = vcmp.eq.f32.partialorder %v2541, inf
        %v2900 = vsel %vm2899, %v2541, %v2898
        %vm2901 = vcmp.eq.f32.partialorder %v2541, 0.0
        %v2902 = vand.u32 %v2541, 2147483648
        %v2903 = vsel %vm2901, %v2902, %v2900
        %v2904 = vrsqrt.pop %v2542
        %v2905 = vmul.f32 %v2542, %v2904
        %vm2906 = vcmp.eq.f32.partialorder %v2542, inf
        %v2907 = vsel %vm2906, %v2542, %v2905
        %vm2908 = vcmp.eq.f32.partialorder %v2542, 0.0
        %v2909 = vand.u32 %v2542, 2147483648
        %v2910 = vsel %vm2908, %v2909, %v2907
        %v2911 = vrsqrt.pop %v2543
        %v2912 = vmul.f32 %v2543, %v2911
        %vm2913 = vcmp.eq.f32.partialorder %v2543, inf
        %v2914 = vsel %vm2913, %v2543, %v2912
        %vm2915 = vcmp.eq.f32.partialorder %v2543, 0.0
        %v2916 = vand.u32 %v2543, 2147483648
        %v2917 = vsel %vm2915, %v2916, %v2914
        %v2918 = vrsqrt.pop %v2544
        %v2919 = vmul.f32 %v2544, %v2918
        %vm2920 = vcmp.eq.f32.partialorder %v2544, inf
        %v2921 = vsel %vm2920, %v2544, %v2919
        %vm2922 = vcmp.eq.f32.partialorder %v2544, 0.0
        %v2923 = vand.u32 %v2544, 2147483648
        %v2924 = vsel %vm2922, %v2923, %v2921
        %v2925 = vrsqrt.pop %v2545
        %v2926 = vmul.f32 %v2545, %v2925
        %vm2927 = vcmp.eq.f32.partialorder %v2545, inf
        %v2928 = vsel %vm2927, %v2545, %v2926
        %vm2929 = vcmp.eq.f32.partialorder %v2545, 0.0
        %v2930 = vand.u32 %v2545, 2147483648
        %v2931 = vsel %vm2929, %v2930, %v2928
        %v2932 = vrsqrt.pop %v2546
        %v2933 = vmul.f32 %v2546, %v2932
        %vm2934 = vcmp.eq.f32.partialorder %v2546, inf
        %v2935 = vsel %vm2934, %v2546, %v2933
        %vm2936 = vcmp.eq.f32.partialorder %v2546, 0.0
        %v2937 = vand.u32 %v2546, 2147483648
        %v2938 = vsel %vm2936, %v2937, %v2935
        %v2939 = vrsqrt.pop %v2547
        %v2940 = vmul.f32 %v2547, %v2939
        %vm2941 = vcmp.eq.f32.partialorder %v2547, inf
        %v2942 = vsel %vm2941, %v2547, %v2940
        %vm2943 = vcmp.eq.f32.partialorder %v2547, 0.0
        %v2944 = vand.u32 %v2547, 2147483648
        %v2945 = vsel %vm2943, %v2944, %v2942
        %v2946 = vrsqrt.pop %v2548
        %v2947 = vmul.f32 %v2548, %v2946
        %vm2948 = vcmp.eq.f32.partialorder %v2548, inf
        %v2949 = vsel %vm2948, %v2548, %v2947
        %vm2950 = vcmp.eq.f32.partialorder %v2548, 0.0
        %v2951 = vand.u32 %v2548, 2147483648
        %v2952 = vsel %vm2950, %v2951, %v2949
        %v2953 = vrsqrt.pop %v2549
        %v2954 = vmul.f32 %v2549, %v2953
        %vm2955 = vcmp.eq.f32.partialorder %v2549, inf
        %v2956 = vsel %vm2955, %v2549, %v2954
        %vm2957 = vcmp.eq.f32.partialorder %v2549, 0.0
        %v2958 = vand.u32 %v2549, 2147483648
        %v2959 = vsel %vm2957, %v2958, %v2956
        %v2960 = vrsqrt.pop %v2550
        %v2961 = vmul.f32 %v2550, %v2960
        %vm2962 = vcmp.eq.f32.partialorder %v2550, inf
        %v2963 = vsel %vm2962, %v2550, %v2961
        %vm2964 = vcmp.eq.f32.partialorder %v2550, 0.0
        %v2965 = vand.u32 %v2550, 2147483648
        %v2966 = vsel %vm2964, %v2965, %v2963
        %v2967 = vrsqrt.pop %v2551
        %v2968 = vmul.f32 %v2551, %v2967
        %vm2969 = vcmp.eq.f32.partialorder %v2551, inf
        %v2970 = vsel %vm2969, %v2551, %v2968
        %vm2971 = vcmp.eq.f32.partialorder %v2551, 0.0
        %v2972 = vand.u32 %v2551, 2147483648
        %v2973 = vsel %vm2971, %v2972, %v2970
        %v2974 = vrsqrt.pop %v2552
        %v2975 = vmul.f32 %v2552, %v2974
        %vm2976 = vcmp.eq.f32.partialorder %v2552, inf
        %v2977 = vsel %vm2976, %v2552, %v2975
        %vm2978 = vcmp.eq.f32.partialorder %v2552, 0.0
        %v2979 = vand.u32 %v2552, 2147483648
        %v2980 = vsel %vm2978, %v2979, %v2977
        %v2981 = vrsqrt.pop %v2553
        %v2982 = vmul.f32 %v2553, %v2981
        %vm2983 = vcmp.eq.f32.partialorder %v2553, inf
        %v2984 = vsel %vm2983, %v2553, %v2982
        %vm2985 = vcmp.eq.f32.partialorder %v2553, 0.0
        %v2986 = vand.u32 %v2553, 2147483648
        %v2987 = vsel %vm2985, %v2986, %v2984
        %v2988 = vrsqrt.pop %v2554
        %v2989 = vmul.f32 %v2554, %v2988
        %vm2990 = vcmp.eq.f32.partialorder %v2554, inf
        %v2991 = vsel %vm2990, %v2554, %v2989
        %vm2992 = vcmp.eq.f32.partialorder %v2554, 0.0
        %v2993 = vand.u32 %v2554, 2147483648
        %v2994 = vsel %vm2992, %v2993, %v2991
        %v2995 = vrsqrt.pop %v2555
        %v2996 = vmul.f32 %v2555, %v2995
        %vm2997 = vcmp.eq.f32.partialorder %v2555, inf
        %v2998 = vsel %vm2997, %v2555, %v2996
        %vm2999 = vcmp.eq.f32.partialorder %v2555, 0.0
        %v3000 = vand.u32 %v2555, 2147483648
        %v3001 = vsel %vm2999, %v3000, %v2998
        %v3002 = vrsqrt.pop %v2556
        %v3003 = vmul.f32 %v2556, %v3002
        %vm3004 = vcmp.eq.f32.partialorder %v2556, inf
        %v3005 = vsel %vm3004, %v2556, %v3003
        %vm3006 = vcmp.eq.f32.partialorder %v2556, 0.0
        %v3007 = vand.u32 %v2556, 2147483648
        %v3008 = vsel %vm3006, %v3007, %v3005
        %v3009 = vrsqrt.pop %v2557
        %v3010 = vmul.f32 %v2557, %v3009
        %vm3011 = vcmp.eq.f32.partialorder %v2557, inf
        %v3012 = vsel %vm3011, %v2557, %v3010
        %vm3013 = vcmp.eq.f32.partialorder %v2557, 0.0
        %v3014 = vand.u32 %v2557, 2147483648
        %v3015 = vsel %vm3013, %v3014, %v3012
        %v3016 = vrsqrt.pop %v2558
        %v3017 = vmul.f32 %v2558, %v3016
        %vm3018 = vcmp.eq.f32.partialorder %v2558, inf
        %v3019 = vsel %vm3018, %v2558, %v3017
        %vm3020 = vcmp.eq.f32.partialorder %v2558, 0.0
        %v3021 = vand.u32 %v2558, 2147483648
        %v3022 = vsel %vm3020, %v3021, %v3019
        %v3023 = vrsqrt.pop %v2559
        %v3024 = vmul.f32 %v2559, %v3023
        %vm3025 = vcmp.eq.f32.partialorder %v2559, inf
        %v3026 = vsel %vm3025, %v2559, %v3024
        %vm3027 = vcmp.eq.f32.partialorder %v2559, 0.0
        %v3028 = vand.u32 %v2559, 2147483648
        %v3029 = vsel %vm3027, %v3028, %v3026
        %v3030 = vrsqrt.pop %v2560
        %v3031 = vmul.f32 %v2560, %v3030
        %vm3032 = vcmp.eq.f32.partialorder %v2560, inf
        %v3033 = vsel %vm3032, %v2560, %v3031
        %vm3034 = vcmp.eq.f32.partialorder %v2560, 0.0
        %v3035 = vand.u32 %v2560, 2147483648
        %v3036 = vsel %vm3034, %v3035, %v3033
        %v3037 = vrsqrt.pop %v2561
        %v3038 = vmul.f32 %v2561, %v3037
        %vm3039 = vcmp.eq.f32.partialorder %v2561, inf
        %v3040 = vsel %vm3039, %v2561, %v3038
        %vm3041 = vcmp.eq.f32.partialorder %v2561, 0.0
        %v3042 = vand.u32 %v2561, 2147483648
        %v3043 = vsel %vm3041, %v3042, %v3040
        %v3044 = vrsqrt.pop %v2562
        %v3045 = vmul.f32 %v2562, %v3044
        %vm3046 = vcmp.eq.f32.partialorder %v2562, inf
        %v3047 = vsel %vm3046, %v2562, %v3045
        %vm3048 = vcmp.eq.f32.partialorder %v2562, 0.0
        %v3049 = vand.u32 %v2562, 2147483648
        %v3050 = vsel %vm3048, %v3049, %v3047
        %v3051 = vrsqrt.pop %v2563
        %v3052 = vmul.f32 %v2563, %v3051
        %vm3053 = vcmp.eq.f32.partialorder %v2563, inf
        %v3054 = vsel %vm3053, %v2563, %v3052
        %vm3055 = vcmp.eq.f32.partialorder %v2563, 0.0
        %v3056 = vand.u32 %v2563, 2147483648
        %v3057 = vsel %vm3055, %v3056, %v3054
        %v3058 = vrsqrt.pop %v2564
        %v3059 = vmul.f32 %v2564, %v3058
        %vm3060 = vcmp.eq.f32.partialorder %v2564, inf
        %v3061 = vsel %vm3060, %v2564, %v3059
        %vm3062 = vcmp.eq.f32.partialorder %v2564, 0.0
        %v3063 = vand.u32 %v2564, 2147483648
        %v3064 = vsel %vm3062, %v3063, %v3061
        %v3065 = vrsqrt.pop %v2565
        %v3066 = vmul.f32 %v2565, %v3065
        %vm3067 = vcmp.eq.f32.partialorder %v2565, inf
        %v3068 = vsel %vm3067, %v2565, %v3066
        %vm3069 = vcmp.eq.f32.partialorder %v2565, 0.0
        %v3070 = vand.u32 %v2565, 2147483648
        %v3071 = vsel %vm3069, %v3070, %v3068
        %v3072 = vrsqrt.pop %v2566
        %v3073 = vmul.f32 %v2566, %v3072
        %vm3074 = vcmp.eq.f32.partialorder %v2566, inf
        %v3075 = vsel %vm3074, %v2566, %v3073
        %vm3076 = vcmp.eq.f32.partialorder %v2566, 0.0
        %v3077 = vand.u32 %v2566, 2147483648
        %v3078 = vsel %vm3076, %v3077, %v3075
        %v3079 = vrsqrt.pop %v2567
        %v3080 = vmul.f32 %v2567, %v3079
        %vm3081 = vcmp.eq.f32.partialorder %v2567, inf
        %v3082 = vsel %vm3081, %v2567, %v3080
        %vm3083 = vcmp.eq.f32.partialorder %v2567, 0.0
        %v3084 = vand.u32 %v2567, 2147483648
        %v3085 = vsel %vm3083, %v3084, %v3082
        %v3086 = vrsqrt.pop %v2568
        %v3087 = vmul.f32 %v2568, %v3086
        %vm3088 = vcmp.eq.f32.partialorder %v2568, inf
        %v3089 = vsel %vm3088, %v2568, %v3087
        %vm3090 = vcmp.eq.f32.partialorder %v2568, 0.0
        %v3091 = vand.u32 %v2568, 2147483648
        %v3092 = vsel %vm3090, %v3091, %v3089
        %v3093 = vrsqrt.pop %v2569
        %v3094 = vmul.f32 %v2569, %v3093
        %vm3095 = vcmp.eq.f32.partialorder %v2569, inf
        %v3096 = vsel %vm3095, %v2569, %v3094
        %vm3097 = vcmp.eq.f32.partialorder %v2569, 0.0
        %v3098 = vand.u32 %v2569, 2147483648
        %v3099 = vsel %vm3097, %v3098, %v3096
        %v3100 = vrsqrt.pop %v2570
        %v3101 = vmul.f32 %v2570, %v3100
        %vm3102 = vcmp.eq.f32.partialorder %v2570, inf
        %v3103 = vsel %vm3102, %v2570, %v3101
        %vm3104 = vcmp.eq.f32.partialorder %v2570, 0.0
        %v3105 = vand.u32 %v2570, 2147483648
        %v3106 = vsel %vm3104, %v3105, %v3103
        %v3107 = vrsqrt.pop %v2571
        %v3108 = vmul.f32 %v2571, %v3107
        %vm3109 = vcmp.eq.f32.partialorder %v2571, inf
        %v3110 = vsel %vm3109, %v2571, %v3108
        %vm3111 = vcmp.eq.f32.partialorder %v2571, 0.0
        %v3112 = vand.u32 %v2571, 2147483648
        %v3113 = vsel %vm3111, %v3112, %v3110
        %v3114 = vrsqrt.pop %v2572
        %v3115 = vmul.f32 %v2572, %v3114
        %vm3116 = vcmp.eq.f32.partialorder %v2572, inf
        %v3117 = vsel %vm3116, %v2572, %v3115
        %vm3118 = vcmp.eq.f32.partialorder %v2572, 0.0
        %v3119 = vand.u32 %v2572, 2147483648
        %v3120 = vsel %vm3118, %v3119, %v3117
        %v3121 = vrsqrt.pop %v2573
        %v3122 = vmul.f32 %v2573, %v3121
        %vm3123 = vcmp.eq.f32.partialorder %v2573, inf
        %v3124 = vsel %vm3123, %v2573, %v3122
        %vm3125 = vcmp.eq.f32.partialorder %v2573, 0.0
        %v3126 = vand.u32 %v2573, 2147483648
        %v3127 = vsel %vm3125, %v3126, %v3124
        %v3128 = vrsqrt.pop %v2574
        %v3129 = vmul.f32 %v2574, %v3128
        %vm3130 = vcmp.eq.f32.partialorder %v2574, inf
        %v3131 = vsel %vm3130, %v2574, %v3129
        %vm3132 = vcmp.eq.f32.partialorder %v2574, 0.0
        %v3133 = vand.u32 %v2574, 2147483648
        %v3134 = vsel %vm3132, %v3133, %v3131
        %v3135 = vrsqrt.pop %v2575
        %v3136 = vmul.f32 %v2575, %v3135
        %vm3137 = vcmp.eq.f32.partialorder %v2575, inf
        %v3138 = vsel %vm3137, %v2575, %v3136
        %vm3139 = vcmp.eq.f32.partialorder %v2575, 0.0
        %v3140 = vand.u32 %v2575, 2147483648
        %v3141 = vsel %vm3139, %v3140, %v3138
        %v3142 = vrsqrt.pop %v2576
        %v3143 = vmul.f32 %v2576, %v3142
        %vm3144 = vcmp.eq.f32.partialorder %v2576, inf
        %v3145 = vsel %vm3144, %v2576, %v3143
        %vm3146 = vcmp.eq.f32.partialorder %v2576, 0.0
        %v3147 = vand.u32 %v2576, 2147483648
        %v3148 = vsel %vm3146, %v3147, %v3145
        %v3149 = vrsqrt.pop %v2577
        %v3150 = vmul.f32 %v2577, %v3149
        %vm3151 = vcmp.eq.f32.partialorder %v2577, inf
        %v3152 = vsel %vm3151, %v2577, %v3150
        %vm3153 = vcmp.eq.f32.partialorder %v2577, 0.0
        %v3154 = vand.u32 %v2577, 2147483648
        %v3155 = vsel %vm3153, %v3154, %v3152
        %v3156 = vrsqrt.pop %v2578
        %v3157 = vmul.f32 %v2578, %v3156
        %vm3158 = vcmp.eq.f32.partialorder %v2578, inf
        %v3159 = vsel %vm3158, %v2578, %v3157
        %vm3160 = vcmp.eq.f32.partialorder %v2578, 0.0
        %v3161 = vand.u32 %v2578, 2147483648
        %v3162 = vsel %vm3160, %v3161, %v3159
        %v3163 = vrsqrt.pop %v2579
        %v3164 = vmul.f32 %v2579, %v3163
        %vm3165 = vcmp.eq.f32.partialorder %v2579, inf
        %v3166 = vsel %vm3165, %v2579, %v3164
        %vm3167 = vcmp.eq.f32.partialorder %v2579, 0.0
        %v3168 = vand.u32 %v2579, 2147483648
        %v3169 = vsel %vm3167, %v3168, %v3166
        %v3170 = vrsqrt.pop %v2580
        %v3171 = vmul.f32 %v2580, %v3170
        %vm3172 = vcmp.eq.f32.partialorder %v2580, inf
        %v3173 = vsel %vm3172, %v2580, %v3171
        %vm3174 = vcmp.eq.f32.partialorder %v2580, 0.0
        %v3175 = vand.u32 %v2580, 2147483648
        %v3176 = vsel %vm3174, %v3175, %v3173
        %v3177 = vrsqrt.pop %v2581
        %v3178 = vmul.f32 %v2581, %v3177
        %vm3179 = vcmp.eq.f32.partialorder %v2581, inf
        %v3180 = vsel %vm3179, %v2581, %v3178
        %vm3181 = vcmp.eq.f32.partialorder %v2581, 0.0
        %v3182 = vand.u32 %v2581, 2147483648
        %v3183 = vsel %vm3181, %v3182, %v3180
        %v3184 = vrsqrt.pop %v2582
        %v3185 = vmul.f32 %v2582, %v3184
        %vm3186 = vcmp.eq.f32.partialorder %v2582, inf
        %v3187 = vsel %vm3186, %v2582, %v3185
        %vm3188 = vcmp.eq.f32.partialorder %v2582, 0.0
        %v3189 = vand.u32 %v2582, 2147483648
        %v3190 = vsel %vm3188, %v3189, %v3187
        %v3191 = vrsqrt.pop %v2583
        %v3192 = vmul.f32 %v2583, %v3191
        %vm3193 = vcmp.eq.f32.partialorder %v2583, inf
        %v3194 = vsel %vm3193, %v2583, %v3192
        %vm3195 = vcmp.eq.f32.partialorder %v2583, 0.0
        %v3196 = vand.u32 %v2583, 2147483648
        %v3197 = vsel %vm3195, %v3196, %v3194
        %v3198 = vrsqrt.pop %v2584
        %v3199 = vmul.f32 %v2584, %v3198
        %vm3200 = vcmp.eq.f32.partialorder %v2584, inf
        %v3201 = vsel %vm3200, %v2584, %v3199
        %vm3202 = vcmp.eq.f32.partialorder %v2584, 0.0
        %v3203 = vand.u32 %v2584, 2147483648
        %v3204 = vsel %vm3202, %v3203, %v3201
        %v3205 = vrsqrt.pop %v2585
        %v3206 = vmul.f32 %v2585, %v3205
        %vm3207 = vcmp.eq.f32.partialorder %v2585, inf
        %v3208 = vsel %vm3207, %v2585, %v3206
        %vm3209 = vcmp.eq.f32.partialorder %v2585, 0.0
        %v3210 = vand.u32 %v2585, 2147483648
        %v3211 = vsel %vm3209, %v3210, %v3208
        %v3212 = vrsqrt.pop %v2586
        %v3213 = vmul.f32 %v2586, %v3212
        %vm3214 = vcmp.eq.f32.partialorder %v2586, inf
        %v3215 = vsel %vm3214, %v2586, %v3213
        %vm3216 = vcmp.eq.f32.partialorder %v2586, 0.0
        %v3217 = vand.u32 %v2586, 2147483648
        %v3218 = vsel %vm3216, %v3217, %v3215
        %v3219 = vrsqrt.pop %v2587
        %v3220 = vmul.f32 %v2587, %v3219
        %vm3221 = vcmp.eq.f32.partialorder %v2587, inf
        %v3222 = vsel %vm3221, %v2587, %v3220
        %vm3223 = vcmp.eq.f32.partialorder %v2587, 0.0
        %v3224 = vand.u32 %v2587, 2147483648
        %v3225 = vsel %vm3223, %v3224, %v3222
        %v3226 = vrsqrt.pop %v2588
        %v3227 = vmul.f32 %v2588, %v3226
        %vm3228 = vcmp.eq.f32.partialorder %v2588, inf
        %v3229 = vsel %vm3228, %v2588, %v3227
        %vm3230 = vcmp.eq.f32.partialorder %v2588, 0.0
        %v3231 = vand.u32 %v2588, 2147483648
        %v3232 = vsel %vm3230, %v3231, %v3229
        %v3233 = vrsqrt.pop %v2589
        %v3234 = vmul.f32 %v2589, %v3233
        %vm3235 = vcmp.eq.f32.partialorder %v2589, inf
        %v3236 = vsel %vm3235, %v2589, %v3234
        %vm3237 = vcmp.eq.f32.partialorder %v2589, 0.0
        %v3238 = vand.u32 %v2589, 2147483648
        %v3239 = vsel %vm3237, %v3238, %v3236
        %v3240 = vrsqrt.pop %v2590
        %v3241 = vmul.f32 %v2590, %v3240
        %vm3242 = vcmp.eq.f32.partialorder %v2590, inf
        %v3243 = vsel %vm3242, %v2590, %v3241
        %vm3244 = vcmp.eq.f32.partialorder %v2590, 0.0
        %v3245 = vand.u32 %v2590, 2147483648
        %v3246 = vsel %vm3244, %v3245, %v3243
        %v3247 = vrsqrt.pop %v2591
        %v3248 = vmul.f32 %v2591, %v3247
        %vm3249 = vcmp.eq.f32.partialorder %v2591, inf
        %v3250 = vsel %vm3249, %v2591, %v3248
        %vm3251 = vcmp.eq.f32.partialorder %v2591, 0.0
        %v3252 = vand.u32 %v2591, 2147483648
        %v3253 = vsel %vm3251, %v3252, %v3250
        %v3254 = vrsqrt.pop %v2592
        %v3255 = vmul.f32 %v2592, %v3254
        %vm3256 = vcmp.eq.f32.partialorder %v2592, inf
        %v3257 = vsel %vm3256, %v2592, %v3255
        %vm3258 = vcmp.eq.f32.partialorder %v2592, 0.0
        %v3259 = vand.u32 %v2592, 2147483648
        %v3260 = vsel %vm3258, %v3259, %v3257
        %v3261 = vrsqrt.pop %v2593
        %v3262 = vmul.f32 %v2593, %v3261
        %vm3263 = vcmp.eq.f32.partialorder %v2593, inf
        %v3264 = vsel %vm3263, %v2593, %v3262
        %vm3265 = vcmp.eq.f32.partialorder %v2593, 0.0
        %v3266 = vand.u32 %v2593, 2147483648
        %v3267 = vsel %vm3265, %v3266, %v3264
        %v3268 = vrsqrt.pop %v2594
        %v3269 = vmul.f32 %v2594, %v3268
        %vm3270 = vcmp.eq.f32.partialorder %v2594, inf
        %v3271 = vsel %vm3270, %v2594, %v3269
        %vm3272 = vcmp.eq.f32.partialorder %v2594, 0.0
        %v3273 = vand.u32 %v2594, 2147483648
        %v3274 = vsel %vm3272, %v3273, %v3271
        %v3275 = vrsqrt.pop %v2595
        %v3276 = vmul.f32 %v2595, %v3275
        %vm3277 = vcmp.eq.f32.partialorder %v2595, inf
        %v3278 = vsel %vm3277, %v2595, %v3276
        %vm3279 = vcmp.eq.f32.partialorder %v2595, 0.0
        %v3280 = vand.u32 %v2595, 2147483648
        %v3281 = vsel %vm3279, %v3280, %v3278
        %v3282 = vrsqrt.pop %v2596
        %v3283 = vmul.f32 %v2596, %v3282
        %vm3284 = vcmp.eq.f32.partialorder %v2596, inf
        %v3285 = vsel %vm3284, %v2596, %v3283
        %vm3286 = vcmp.eq.f32.partialorder %v2596, 0.0
        %v3287 = vand.u32 %v2596, 2147483648
        %v3288 = vsel %vm3286, %v3287, %v3285
        %v3289 = vrsqrt.pop %v2597
        %v3290 = vmul.f32 %v2597, %v3289
        %vm3291 = vcmp.eq.f32.partialorder %v2597, inf
        %v3292 = vsel %vm3291, %v2597, %v3290
        %vm3293 = vcmp.eq.f32.partialorder %v2597, 0.0
        %v3294 = vand.u32 %v2597, 2147483648
        %v3295 = vsel %vm3293, %v3294, %v3292
        %v3296 = vrsqrt.pop %v2598
        %v3297 = vmul.f32 %v2598, %v3296
        %vm3298 = vcmp.eq.f32.partialorder %v2598, inf
        %v3299 = vsel %vm3298, %v2598, %v3297
        %vm3300 = vcmp.eq.f32.partialorder %v2598, 0.0
        %v3301 = vand.u32 %v2598, 2147483648
        %v3302 = vsel %vm3300, %v3301, %v3299
        %v3303 = vrsqrt.pop %v2599
        %v3304 = vmul.f32 %v2599, %v3303
        %vm3305 = vcmp.eq.f32.partialorder %v2599, inf
        %v3306 = vsel %vm3305, %v2599, %v3304
        %vm3307 = vcmp.eq.f32.partialorder %v2599, 0.0
        %v3308 = vand.u32 %v2599, 2147483648
        %v3309 = vsel %vm3307, %v3308, %v3306
        %v3310 = vrsqrt.pop %v2600
        %v3311 = vmul.f32 %v2600, %v3310
        %vm3312 = vcmp.eq.f32.partialorder %v2600, inf
        %v3313 = vsel %vm3312, %v2600, %v3311
        %vm3314 = vcmp.eq.f32.partialorder %v2600, 0.0
        %v3315 = vand.u32 %v2600, 2147483648
        %v3316 = vsel %vm3314, %v3315, %v3313
        %v3317 = vrsqrt.pop %v2601
        %v3318 = vmul.f32 %v2601, %v3317
        %vm3319 = vcmp.eq.f32.partialorder %v2601, inf
        %v3320 = vsel %vm3319, %v2601, %v3318
        %vm3321 = vcmp.eq.f32.partialorder %v2601, 0.0
        %v3322 = vand.u32 %v2601, 2147483648
        %v3323 = vsel %vm3321, %v3322, %v3320
        %v3324 = vrsqrt.pop %v2602
        %v3325 = vmul.f32 %v2602, %v3324
        %vm3326 = vcmp.eq.f32.partialorder %v2602, inf
        %v3327 = vsel %vm3326, %v2602, %v3325
        %vm3328 = vcmp.eq.f32.partialorder %v2602, 0.0
        %v3329 = vand.u32 %v2602, 2147483648
        %v3330 = vsel %vm3328, %v3329, %v3327
        %v3331 = vrsqrt.pop %v2603
        %v3332 = vmul.f32 %v2603, %v3331
        %vm3333 = vcmp.eq.f32.partialorder %v2603, inf
        %v3334 = vsel %vm3333, %v2603, %v3332
        %vm3335 = vcmp.eq.f32.partialorder %v2603, 0.0
        %v3336 = vand.u32 %v2603, 2147483648
        %v3337 = vsel %vm3335, %v3336, %v3334
        %v3338 = vrsqrt.pop %v2604
        %v3339 = vmul.f32 %v2604, %v3338
        %vm3340 = vcmp.eq.f32.partialorder %v2604, inf
        %v3341 = vsel %vm3340, %v2604, %v3339
        %vm3342 = vcmp.eq.f32.partialorder %v2604, 0.0
        %v3343 = vand.u32 %v2604, 2147483648
        %v3344 = vsel %vm3342, %v3343, %v3341
        %v3345 = vrsqrt.pop %v2605
        %v3346 = vmul.f32 %v2605, %v3345
        %vm3347 = vcmp.eq.f32.partialorder %v2605, inf
        %v3348 = vsel %vm3347, %v2605, %v3346
        %vm3349 = vcmp.eq.f32.partialorder %v2605, 0.0
        %v3350 = vand.u32 %v2605, 2147483648
        %v3351 = vsel %vm3349, %v3350, %v3348
        %v3352 = vrsqrt.pop %v2606
        %v3353 = vmul.f32 %v2606, %v3352
        %vm3354 = vcmp.eq.f32.partialorder %v2606, inf
        %v3355 = vsel %vm3354, %v2606, %v3353
        %vm3356 = vcmp.eq.f32.partialorder %v2606, 0.0
        %v3357 = vand.u32 %v2606, 2147483648
        %v3358 = vsel %vm3356, %v3357, %v3355
        %v3359 = vrsqrt.pop %v2607
        %v3360 = vmul.f32 %v2607, %v3359
        %vm3361 = vcmp.eq.f32.partialorder %v2607, inf
        %v3362 = vsel %vm3361, %v2607, %v3360
        %vm3363 = vcmp.eq.f32.partialorder %v2607, 0.0
        %v3364 = vand.u32 %v2607, 2147483648
        %v3365 = vsel %vm3363, %v3364, %v3362
        %v3366 = vrsqrt.pop %v2608
        %v3367 = vmul.f32 %v2608, %v3366
        %vm3368 = vcmp.eq.f32.partialorder %v2608, inf
        %v3369 = vsel %vm3368, %v2608, %v3367
        %vm3370 = vcmp.eq.f32.partialorder %v2608, 0.0
        %v3371 = vand.u32 %v2608, 2147483648
        %v3372 = vsel %vm3370, %v3371, %v3369
        %v3373 = vrsqrt.pop %v2609
        %v3374 = vmul.f32 %v2609, %v3373
        %vm3375 = vcmp.eq.f32.partialorder %v2609, inf
        %v3376 = vsel %vm3375, %v2609, %v3374
        %vm3377 = vcmp.eq.f32.partialorder %v2609, 0.0
        %v3378 = vand.u32 %v2609, 2147483648
        %v3379 = vsel %vm3377, %v3378, %v3376
        %v3380 = vrsqrt.pop %v2610
        %v3381 = vmul.f32 %v2610, %v3380
        %vm3382 = vcmp.eq.f32.partialorder %v2610, inf
        %v3383 = vsel %vm3382, %v2610, %v3381
        %vm3384 = vcmp.eq.f32.partialorder %v2610, 0.0
        %v3385 = vand.u32 %v2610, 2147483648
        %v3386 = vsel %vm3384, %v3385, %v3383
        %v3387 = vrsqrt.pop %v2611
        %v3388 = vmul.f32 %v2611, %v3387
        %vm3389 = vcmp.eq.f32.partialorder %v2611, inf
        %v3390 = vsel %vm3389, %v2611, %v3388
        %vm3391 = vcmp.eq.f32.partialorder %v2611, 0.0
        %v3392 = vand.u32 %v2611, 2147483648
        %v3393 = vsel %vm3391, %v3392, %v3390
        %v3394 = vrsqrt.pop %v2612
        %v3395 = vmul.f32 %v2612, %v3394
        %vm3396 = vcmp.eq.f32.partialorder %v2612, inf
        %v3397 = vsel %vm3396, %v2612, %v3395
        %vm3398 = vcmp.eq.f32.partialorder %v2612, 0.0
        %v3399 = vand.u32 %v2612, 2147483648
        %v3400 = vsel %vm3398, %v3399, %v3397
        %v3401 = vrsqrt.pop %v2613
        %v3402 = vmul.f32 %v2613, %v3401
        %vm3403 = vcmp.eq.f32.partialorder %v2613, inf
        %v3404 = vsel %vm3403, %v2613, %v3402
        %vm3405 = vcmp.eq.f32.partialorder %v2613, 0.0
        %v3406 = vand.u32 %v2613, 2147483648
        %v3407 = vsel %vm3405, %v3406, %v3404
        %v3408 = vrsqrt.pop %v2614
        %v3409 = vmul.f32 %v2614, %v3408
        %vm3410 = vcmp.eq.f32.partialorder %v2614, inf
        %v3411 = vsel %vm3410, %v2614, %v3409
        %vm3412 = vcmp.eq.f32.partialorder %v2614, 0.0
        %v3413 = vand.u32 %v2614, 2147483648
        %v3414 = vsel %vm3412, %v3413, %v3411
        %v3415 = vrsqrt.pop %v2615
        %v3416 = vmul.f32 %v2615, %v3415
        %vm3417 = vcmp.eq.f32.partialorder %v2615, inf
        %v3418 = vsel %vm3417, %v2615, %v3416
        %vm3419 = vcmp.eq.f32.partialorder %v2615, 0.0
        %v3420 = vand.u32 %v2615, 2147483648
        %v3421 = vsel %vm3419, %v3420, %v3418
        %v3422 = vrsqrt.pop %v2616
        %v3423 = vmul.f32 %v2616, %v3422
        %vm3424 = vcmp.eq.f32.partialorder %v2616, inf
        %v3425 = vsel %vm3424, %v2616, %v3423
        %vm3426 = vcmp.eq.f32.partialorder %v2616, 0.0
        %v3427 = vand.u32 %v2616, 2147483648
        %v3428 = vsel %vm3426, %v3427, %v3425
        %v3429 = vrsqrt.pop %v2617
        %v3430 = vmul.f32 %v2617, %v3429
        %vm3431 = vcmp.eq.f32.partialorder %v2617, inf
        %v3432 = vsel %vm3431, %v2617, %v3430
        %vm3433 = vcmp.eq.f32.partialorder %v2617, 0.0
        %v3434 = vand.u32 %v2617, 2147483648
        %v3435 = vsel %vm3433, %v3434, %v3432
        %v3436 = vrsqrt.pop %v2618
        %v3437 = vmul.f32 %v2618, %v3436
        %vm3438 = vcmp.eq.f32.partialorder %v2618, inf
        %v3439 = vsel %vm3438, %v2618, %v3437
        %vm3440 = vcmp.eq.f32.partialorder %v2618, 0.0
        %v3441 = vand.u32 %v2618, 2147483648
        %v3442 = vsel %vm3440, %v3441, %v3439
        %v3443 = vrsqrt.pop %v2619
        %v3444 = vmul.f32 %v2619, %v3443
        %vm3445 = vcmp.eq.f32.partialorder %v2619, inf
        %v3446 = vsel %vm3445, %v2619, %v3444
        %vm3447 = vcmp.eq.f32.partialorder %v2619, 0.0
        %v3448 = vand.u32 %v2619, 2147483648
        %v3449 = vsel %vm3447, %v3448, %v3446
        %v3450 = vrsqrt.pop %v2620
        %v3451 = vmul.f32 %v2620, %v3450
        %vm3452 = vcmp.eq.f32.partialorder %v2620, inf
        %v3453 = vsel %vm3452, %v2620, %v3451
        %vm3454 = vcmp.eq.f32.partialorder %v2620, 0.0
        %v3455 = vand.u32 %v2620, 2147483648
        %v3456 = vsel %vm3454, %v3455, %v3453
        %v3457 = vrsqrt.pop %v2621
        %v3458 = vmul.f32 %v2621, %v3457
        %vm3459 = vcmp.eq.f32.partialorder %v2621, inf
        %v3460 = vsel %vm3459, %v2621, %v3458
        %vm3461 = vcmp.eq.f32.partialorder %v2621, 0.0
        %v3462 = vand.u32 %v2621, 2147483648
        %v3463 = vsel %vm3461, %v3462, %v3460
        %v3464 = vrsqrt.pop %v2622
        %v3465 = vmul.f32 %v2622, %v3464
        %vm3466 = vcmp.eq.f32.partialorder %v2622, inf
        %v3467 = vsel %vm3466, %v2622, %v3465
        %vm3468 = vcmp.eq.f32.partialorder %v2622, 0.0
        %v3469 = vand.u32 %v2622, 2147483648
        %v3470 = vsel %vm3468, %v3469, %v3467
        %v3471 = vrsqrt.pop %v2623
        %v3472 = vmul.f32 %v2623, %v3471
        %vm3473 = vcmp.eq.f32.partialorder %v2623, inf
        %v3474 = vsel %vm3473, %v2623, %v3472
        %vm3475 = vcmp.eq.f32.partialorder %v2623, 0.0
        %v3476 = vand.u32 %v2623, 2147483648
        %v3477 = vsel %vm3475, %v3476, %v3474
        %v3478 = vrsqrt.pop %v2624
        %v3479 = vmul.f32 %v2624, %v3478
        %vm3480 = vcmp.eq.f32.partialorder %v2624, inf
        %v3481 = vsel %vm3480, %v2624, %v3479
        %vm3482 = vcmp.eq.f32.partialorder %v2624, 0.0
        %v3483 = vand.u32 %v2624, 2147483648
        %v3484 = vsel %vm3482, %v3483, %v3481
        %v3485 = vrsqrt.pop %v2625
        %v3486 = vmul.f32 %v2625, %v3485
        %vm3487 = vcmp.eq.f32.partialorder %v2625, inf
        %v3488 = vsel %vm3487, %v2625, %v3486
        %vm3489 = vcmp.eq.f32.partialorder %v2625, 0.0
        %v3490 = vand.u32 %v2625, 2147483648
        %v3491 = vsel %vm3489, %v3490, %v3488
        %v3492 = vrsqrt.pop %v2626
        %v3493 = vmul.f32 %v2626, %v3492
        %vm3494 = vcmp.eq.f32.partialorder %v2626, inf
        %v3495 = vsel %vm3494, %v2626, %v3493
        %vm3496 = vcmp.eq.f32.partialorder %v2626, 0.0
        %v3497 = vand.u32 %v2626, 2147483648
        %v3498 = vsel %vm3496, %v3497, %v3495
        %v3499 = vrsqrt.pop %v2627
        %v3500 = vmul.f32 %v2627, %v3499
        %vm3501 = vcmp.eq.f32.partialorder %v2627, inf
        %v3502 = vsel %vm3501, %v2627, %v3500
        %vm3503 = vcmp.eq.f32.partialorder %v2627, 0.0
        %v3504 = vand.u32 %v2627, 2147483648
        %v3505 = vsel %vm3503, %v3504, %v3502
        %v3506 = vrsqrt.pop %v2628
        %v3507 = vmul.f32 %v2628, %v3506
        %vm3508 = vcmp.eq.f32.partialorder %v2628, inf
        %v3509 = vsel %vm3508, %v2628, %v3507
        %vm3510 = vcmp.eq.f32.partialorder %v2628, 0.0
        %v3511 = vand.u32 %v2628, 2147483648
        %v3512 = vsel %vm3510, %v3511, %v3509
        %v3513 = vrsqrt.pop %v2629
        %v3514 = vmul.f32 %v2629, %v3513
        %vm3515 = vcmp.eq.f32.partialorder %v2629, inf
        %v3516 = vsel %vm3515, %v2629, %v3514
        %vm3517 = vcmp.eq.f32.partialorder %v2629, 0.0
        %v3518 = vand.u32 %v2629, 2147483648
        %v3519 = vsel %vm3517, %v3518, %v3516
        %v3520 = vrsqrt.pop %v2630
        %v3521 = vmul.f32 %v2630, %v3520
        %vm3522 = vcmp.eq.f32.partialorder %v2630, inf
        %v3523 = vsel %vm3522, %v2630, %v3521
        %vm3524 = vcmp.eq.f32.partialorder %v2630, 0.0
        %v3525 = vand.u32 %v2630, 2147483648
        %v3526 = vsel %vm3524, %v3525, %v3523
        %3527 = vst [vmem:[%s284] sm:$0xff] %v2637
        %3528 = vst [vmem:[%s284 + $0x8] sm:$0xff] %v2644
        %3529 = vst [vmem:[%s284 + $0x10] sm:$0xff] %v2651
        %3530 = vst [vmem:[%s284 + $0x18] sm:$0xff] %v2658
        %3531 = vst [vmem:[%s284 + $0x20] sm:$0xff] %v2665
        %3532 = vst [vmem:[%s284 + $0x28] sm:$0xff] %v2672
        %3533 = vst [vmem:[%s284 + $0x30] sm:$0xff] %v2679
        %3534 = vst [vmem:[%s284 + $0x38] sm:$0xff] %v2686
        %3535 = vst [vmem:[%s284 + $0x40] sm:$0xff] %v2693
        %3536 = vst [vmem:[%s284 + $0x48] sm:$0xff] %v2700
        %3537 = vst [vmem:[%s284 + $0x50] sm:$0xff] %v2707
        %3538 = vst [vmem:[%s284 + $0x58] sm:$0xff] %v2714
        %3539 = vst [vmem:[%s284 + $0x60] sm:$0xff] %v2721
        %3540 = vst [vmem:[%s284 + $0x68] sm:$0xff] %v2728
        %3541 = vst [vmem:[%s284 + $0x70] sm:$0xff] %v2735
        %3542 = vst [vmem:[%s284 + $0x78] sm:$0xff] %v2742
        %3543 = vst [vmem:[%s284 + $0x80] sm:$0xff] %v2749
        %3544 = vst [vmem:[%s284 + $0x88] sm:$0xff] %v2756
        %3545 = vst [vmem:[%s284 + $0x90] sm:$0xff] %v2763
        %3546 = vst [vmem:[%s284 + $0x98] sm:$0xff] %v2770
        %3547 = vst [vmem:[%s284 + $0xa0] sm:$0xff] %v2777
        %3548 = vst [vmem:[%s284 + $0xa8] sm:$0xff] %v2784
        %3549 = vst [vmem:[%s284 + $0xb0] sm:$0xff] %v2791
        %3550 = vst [vmem:[%s284 + $0xb8] sm:$0xff] %v2798
        %3551 = vst [vmem:[%s284 + $0xc0] sm:$0xff] %v2805
        %3552 = vst [vmem:[%s284 + $0xc8] sm:$0xff] %v2812
        %3553 = vst [vmem:[%s284 + $0xd0] sm:$0xff] %v2819
        %3554 = vst [vmem:[%s284 + $0xd8] sm:$0xff] %v2826
        %3555 = vst [vmem:[%s284 + $0xe0] sm:$0xff] %v2833
        %3556 = vst [vmem:[%s284 + $0xe8] sm:$0xff] %v2840
        %3557 = vst [vmem:[%s284 + $0xf0] sm:$0xff] %v2847
        %3558 = vst [vmem:[%s284 + $0xf8] sm:$0xff] %v2854
        %3559 = vst [vmem:[%s284 + $0x100] sm:$0xff] %v2861
        %3560 = vst [vmem:[%s284 + $0x108] sm:$0xff] %v2868
        %3561 = vst [vmem:[%s284 + $0x110] sm:$0xff] %v2875
        %3562 = vst [vmem:[%s284 + $0x118] sm:$0xff] %v2882
        %3563 = vst [vmem:[%s284 + $0x120] sm:$0xff] %v2889
        %3564 = vst [vmem:[%s284 + $0x128] sm:$0xff] %v2896
        %3565 = vst [vmem:[%s284 + $0x130] sm:$0xff] %v2903
        %3566 = vst [vmem:[%s284 + $0x138] sm:$0xff] %v2910
        %3567 = vst [vmem:[%s284 + $0x140] sm:$0xff] %v2917
        %3568 = vst [vmem:[%s284 + $0x148] sm:$0xff] %v2924
        %3569 = vst [vmem:[%s284 + $0x150] sm:$0xff] %v2931
        %3570 = vst [vmem:[%s284 + $0x158] sm:$0xff] %v2938
        %3571 = vst [vmem:[%s284 + $0x160] sm:$0xff] %v2945
        %3572 = vst [vmem:[%s284 + $0x168] sm:$0xff] %v2952
        %3573 = vst [vmem:[%s284 + $0x170] sm:$0xff] %v2959
        %3574 = vst [vmem:[%s284 + $0x178] sm:$0xff] %v2966
        %3575 = vst [vmem:[%s284 + $0x180] sm:$0xff] %v2973
        %3576 = vst [vmem:[%s284 + $0x188] sm:$0xff] %v2980
        %3577 = vst [vmem:[%s284 + $0x190] sm:$0xff] %v2987
        %3578 = vst [vmem:[%s284 + $0x198] sm:$0xff] %v2994
        %3579 = vst [vmem:[%s284 + $0x1a0] sm:$0xff] %v3001
        %3580 = vst [vmem:[%s284 + $0x1a8] sm:$0xff] %v3008
        %3581 = vst [vmem:[%s284 + $0x1b0] sm:$0xff] %v3015
        %3582 = vst [vmem:[%s284 + $0x1b8] sm:$0xff] %v3022
        %3583 = vst [vmem:[%s284 + $0x1c0] sm:$0xff] %v3029
        %3584 = vst [vmem:[%s284 + $0x1c8] sm:$0xff] %v3036
        %3585 = vst [vmem:[%s284 + $0x1d0] sm:$0xff] %v3043
        %3586 = vst [vmem:[%s284 + $0x1d8] sm:$0xff] %v3050
        %3587 = vst [vmem:[%s284 + $0x1e0] sm:$0xff] %v3057
        %3588 = vst [vmem:[%s284 + $0x1e8] sm:$0xff] %v3064
        %3589 = vst [vmem:[%s284 + $0x1f0] sm:$0xff] %v3071
        %3590 = vst [vmem:[%s284 + $0x1f8] sm:$0xff] %v3078
        %3591 = vst [vmem:[%s284 + $0x200] sm:$0xff] %v3085
        %3592 = vst [vmem:[%s284 + $0x208] sm:$0xff] %v3092
        %3593 = vst [vmem:[%s284 + $0x210] sm:$0xff] %v3099
        %3594 = vst [vmem:[%s284 + $0x218] sm:$0xff] %v3106
        %3595 = vst [vmem:[%s284 + $0x220] sm:$0xff] %v3113
        %3596 = vst [vmem:[%s284 + $0x228] sm:$0xff] %v3120
        %3597 = vst [vmem:[%s284 + $0x230] sm:$0xff] %v3127
        %3598 = vst [vmem:[%s284 + $0x238] sm:$0xff] %v3134
        %3599 = vst [vmem:[%s284 + $0x240] sm:$0xff] %v3141
        %3600 = vst [vmem:[%s284 + $0x248] sm:$0xff] %v3148
        %3601 = vst [vmem:[%s284 + $0x250] sm:$0xff] %v3155
        %3602 = vst [vmem:[%s284 + $0x258] sm:$0xff] %v3162
        %3603 = vst [vmem:[%s284 + $0x260] sm:$0xff] %v3169
        %3604 = vst [vmem:[%s284 + $0x268] sm:$0xff] %v3176
        %3605 = vst [vmem:[%s284 + $0x270] sm:$0xff] %v3183
        %3606 = vst [vmem:[%s284 + $0x278] sm:$0xff] %v3190
        %3607 = vst [vmem:[%s284 + $0x280] sm:$0xff] %v3197
        %3608 = vst [vmem:[%s284 + $0x288] sm:$0xff] %v3204
        %3609 = vst [vmem:[%s284 + $0x290] sm:$0xff] %v3211
        %3610 = vst [vmem:[%s284 + $0x298] sm:$0xff] %v3218
        %3611 = vst [vmem:[%s284 + $0x2a0] sm:$0xff] %v3225
        %3612 = vst [vmem:[%s284 + $0x2a8] sm:$0xff] %v3232
        %3613 = vst [vmem:[%s284 + $0x2b0] sm:$0xff] %v3239
        %3614 = vst [vmem:[%s284 + $0x2b8] sm:$0xff] %v3246
        %3615 = vst [vmem:[%s284 + $0x2c0] sm:$0xff] %v3253
        %3616 = vst [vmem:[%s284 + $0x2c8] sm:$0xff] %v3260
        %3617 = vst [vmem:[%s284 + $0x2d0] sm:$0xff] %v3267
        %3618 = vst [vmem:[%s284 + $0x2d8] sm:$0xff] %v3274
        %3619 = vst [vmem:[%s284 + $0x2e0] sm:$0xff] %v3281
        %3620 = vst [vmem:[%s284 + $0x2e8] sm:$0xff] %v3288
        %3621 = vst [vmem:[%s284 + $0x2f0] sm:$0xff] %v3295
        %3622 = vst [vmem:[%s284 + $0x2f8] sm:$0xff] %v3302
        %3623 = vst [vmem:[%s284 + $0x300] sm:$0xff] %v3309
        %3624 = vst [vmem:[%s284 + $0x308] sm:$0xff] %v3316
        %3625 = vst [vmem:[%s284 + $0x310] sm:$0xff] %v3323
        %3626 = vst [vmem:[%s284 + $0x318] sm:$0xff] %v3330
        %3627 = vst [vmem:[%s284 + $0x320] sm:$0xff] %v3337
        %3628 = vst [vmem:[%s284 + $0x328] sm:$0xff] %v3344
        %3629 = vst [vmem:[%s284 + $0x330] sm:$0xff] %v3351
        %3630 = vst [vmem:[%s284 + $0x338] sm:$0xff] %v3358
        %3631 = vst [vmem:[%s284 + $0x340] sm:$0xff] %v3365
        %3632 = vst [vmem:[%s284 + $0x348] sm:$0xff] %v3372
        %3633 = vst [vmem:[%s284 + $0x350] sm:$0xff] %v3379
        %3634 = vst [vmem:[%s284 + $0x358] sm:$0xff] %v3386
        %3635 = vst [vmem:[%s284 + $0x360] sm:$0xff] %v3393
        %3636 = vst [vmem:[%s284 + $0x368] sm:$0xff] %v3400
        %3637 = vst [vmem:[%s284 + $0x370] sm:$0xff] %v3407
        %3638 = vst [vmem:[%s284 + $0x378] sm:$0xff] %v3414
        %3639 = vst [vmem:[%s284 + $0x380] sm:$0xff] %v3421
        %3640 = vst [vmem:[%s284 + $0x388] sm:$0xff] %v3428
        %3641 = vst [vmem:[%s284 + $0x390] sm:$0xff] %v3435
        %3642 = vst [vmem:[%s284 + $0x398] sm:$0xff] %v3442
        %3643 = vst [vmem:[%s284 + $0x3a0] sm:$0xff] %v3449
        %3644 = vst [vmem:[%s284 + $0x3a8] sm:$0xff] %v3456
        %3645 = vst [vmem:[%s284 + $0x3b0] sm:$0xff] %v3463
        %3646 = vst [vmem:[%s284 + $0x3b8] sm:$0xff] %v3470
        %3647 = vst [vmem:[%s284 + $0x3c0] sm:$0xff] %v3477
        %3648 = vst [vmem:[%s284 + $0x3c8] sm:$0xff] %v3484
        %3649 = vst [vmem:[%s284 + $0x3d0] sm:$0xff] %v3491
        %3650 = vst [vmem:[%s284 + $0x3d8] sm:$0xff] %v3498
        %3651 = vst [vmem:[%s284 + $0x3e0] sm:$0xff] %v3505
        %3652 = vst [vmem:[%s284 + $0x3e8] sm:$0xff] %v3512
        %3653 = vst [vmem:[%s284 + $0x3f0] sm:$0xff] %v3519
        %3654 = vst [vmem:[%s284 + $0x3f8] sm:$0xff] %v3526
        %s3655 = sand.u32 %s148, 1
        %s3656 = scalar_lea.sflag [#allocation4], %s3655
        %s3657 = sand.u32 %s148, 1
        %s3658 = smul.addr %s3657, 1024
        %s3659 = scalar_lea.vmem [#allocation7], %s3658
        // Predicated region
        $region45: #{tpu_custom_call.1} parent=35 // pred_check
          %p3660 = pneg %p158
        $region46: #{tpu_custom_call.1} parent=35 // pred_check_branch
          %3662 = sbr.rel (%p3660) target = $region48
        $region47: #{tpu_custom_call.1} parent=35 // pred_region
          %s3663 = smul.u32 32, %s26
          %s3664 = smul.u32 4, %s27
          %s3666 = ssub.s32 16384, 16384
          %3667 = vsyncadd %s3656, %s3666
          %s3668 = smul.addr %s3663, 8
          %s3669 = sadd.s32 %s3664, %s3668
          %s3670 = smul.addr %s3669, 128
          %s3671 = scalar_lea.hbm %s4, %s3670
          %s3672 = sshll.u32 %s3659, 4
          %s3673 = int_to_ptr.vmem [resolvable:$true] %s3672
          %3678 = dma.vmem_to_hbm [thread:$0]  %s3673, 16384, %s3671, %s3656, 512, 1024, 32
        $region48: #{tpu_custom_call.1} parent=35 // pred_fallthru
          _
      $region36: #{tpu_custom_call.1} parent=5 // pred_fallthru
        _
      %p3679 = scmp.le.s32.totalorder 2, %s17
      // Predicated region
      $region49: #{tpu_custom_call.1} parent=5 // pred_check
        %p3680 = pneg %p3679
      $region50: #{tpu_custom_call.1} parent=5 // pred_check_branch
        %3682 = sbr.rel (%p3680) target = $region52
      $region51: #{tpu_custom_call.1} parent=5 // pred_region
        %s3683 = ssub.s32 %s17, 2
        // Predicated region
        $region53: #{tpu_custom_call.1} parent=51 // pred_check
          %p3684 = pneg %p164
        $region54: #{tpu_custom_call.1} parent=51 // pred_check_branch
          %3686 = sbr.rel (%p3684) target = $region56
        $region55: #{tpu_custom_call.1} parent=51 // pred_region
          %s3687 = sand.u32 %s149, 1
          %s3688 = scalar_lea.sflag [#allocation4], %s3687
          %s3689 = sand.u32 %s149, 1
          %s3690 = smul.addr %s3689, 1024
          %s3691 = scalar_lea.vmem [#allocation7], %s3690
          %3692 = dma.done %s3688, 16384
        $region56: #{tpu_custom_call.1} parent=51 // pred_fallthru
          _
      $region52: #{tpu_custom_call.1} parent=5 // pred_fallthru
        _
    $region6: #{tpu_custom_call.1} parent=1 // loop_footer
      %s21 = sadd.s32 1, %s17
    $region7: #{tpu_custom_call.1} parent=1 // loop_footer_branch
      %16 = sbr.rel target = $region3
    $region8: #{tpu_custom_call.1} parent=1 // loop_exit
      _
    %3693 = vsyncpa [#allocation3], 1
    %s3694 = scalar_lea.sflag [#allocation3], 1
    %3695 = vsyncpa %s3694, 1
    %3696 = vsyncpa [#allocation6], 1
    %s3697 = scalar_lea.sflag [#allocation6], 1
    %3698 = vsyncpa %s3697, 1
    %3699 = vsyncpa [#allocation4], 1
    %s3700 = scalar_lea.sflag [#allocation4], 1
    %3701 = vsyncpa %s3700, 1

</llo_original>
